<compile_context>
chip_gen: v6e
topology: v6e:2x2x1
jax: 0.10.0
libtpu: 0.0.40
codegen_flags: <defaults>
</compile_context>

<pallas_src>
import math
from functools import partial

import numpy as np
import jax
import jax.numpy as jnp
from jax import lax
from jax.experimental import pallas as pl

# ----------------------------- config (small) -----------------------------
BATCH = 2
SEQ_LEN = 8          # sequence_len
FEATURE_NUM = 4      # feature_num (channels -> encoder tokens)
HIDDEN_DIM = 32      # hidden_dim (d_model)
FC_DIM = 64          # fc_layer_dim (d_ff)
N_LAYERS = 2         # rnn_num_layers (e_layers)
N_HEADS = 2          # feature_head_num
ACTIVATION = "relu"  # fc_activation

EPS = 1e-5
SCALE = 1.0 / math.sqrt(HIDDEN_DIM)   # self.factor, used as attention scale
D_HEAD = HIDDEN_DIM                    # d_keys = d_values = d_model
HD = N_HEADS * D_HEAD
BN_SCALE = 1.0 / math.sqrt(1.0 + EPS)  # eval-mode BatchNorm1d with default running stats
N_TOK = BATCH * FEATURE_NUM
SLAB_WIDTH = max(HIDDEN_DIM, FC_DIM, SEQ_LEN, D_HEAD, N_TOK)   # 64


# ----------------------------- packed-slab layout -----------------------------
def _build_slab_layout():
    """Every weight gets an 8-row-aligned row range (lane offset 0) in one f32 slab."""
    off = {}
    cursor = 0

    def alloc(name, nrows):
        nonlocal cursor
        off[name] = cursor
        cursor += ((nrows + 7) // 8) * 8   # 8-row aligned segments

    alloc("w_emb", SEQ_LEN)        # (L, D)
    alloc("b_emb", 1)              # (1, D)
    alloc("attn_bias", N_TOK)      # (B*C, B*C) block-diagonal additive mask
    for l in range(N_LAYERS):
        for h in range(N_HEADS):
            alloc(f"wq_{l}_{h}", HIDDEN_DIM); alloc(f"bq_{l}_{h}", 1)
            alloc(f"wk_{l}_{h}", HIDDEN_DIM); alloc(f"bk_{l}_{h}", 1)
            alloc(f"wv_{l}_{h}", HIDDEN_DIM); alloc(f"bv_{l}_{h}", 1)
            alloc(f"wo_{l}_{h}", D_HEAD)
        alloc(f"bo_{l}", 1)
        alloc(f"w1_{l}", HIDDEN_DIM); alloc(f"b1_{l}", 1)
        alloc(f"w2_{l}", FC_DIM);     alloc(f"b2_{l}", 1)
        alloc(f"g1_{l}", 1); alloc(f"be1_{l}", 1)
        alloc(f"g2_{l}", 1); alloc(f"be2_{l}", 1)
    return off, cursor


SLAB_OFF, SLAB_ROWS = _build_slab_layout()   # 936 rows x 64 cols f32 (~234 KB, VMEM-resident)


# ----------------------------- fused Pallas kernel -----------------------------
def itransformer_kernel(x_ref, w_ref, o_ref, *, off, batch, channels,
                        n_layers, n_heads, d_model, d_head, fc_dim, seq_len,
                        activation):
    """Whole forward pass on a [B*C, L] variate-major input slab.

    x_ref: (B*C, L) rows are (batch, variate) time series.
    w_ref: (SLAB_ROWS, SLAB_WIDTH) packed weight slab (see _build_slab_layout).
    o_ref: (B*C, D).
    """
    n_tok = batch * channels

    def mat(name, nrows, ncols):
        r = off[name]                       # static Python int -> static ref slice
        return w_ref[r:r + nrows, :ncols]

    # ---- RevIN('norm', affine=False): per-(b,c) stats over the time axis (lane axis)
    x = x_ref[...]                                                   # [B*C, L]
    mu = jnp.mean(x, axis=-1, keepdims=True)
    var = jnp.mean((x - mu) ** 2, axis=-1, keepdims=True)            # biased variance
    xn = (x - mu) * lax.rsqrt(var + EPS)

    # ---- temporal_embedding: Linear(L -> D) on every variate token, one matmul
    z = jnp.dot(xn, mat("w_emb", seq_len, d_model),
                preferred_element_type=jnp.float32) + mat("b_emb", 1, d_model)   # [B*C, D]

    # ---- block-diagonal attention bias (host constant; tokens attend within own batch)
    attn_bias = mat("attn_bias", n_tok, n_tok)                        # [B*C, B*C]

    for l in range(n_layers):                                         # static layer loop
        # ---- multi-head attention; all projections per-head, lane offset 0 (no lane slicing)
        att = None
        for h in range(n_heads):                                      # static head loop
            # SCALE already folded into wq/bq on the host.
            q = jnp.dot(z, mat(f"wq_{l}_{h}", d_model, d_head),
                        preferred_element_type=jnp.float32) + mat(f"bq_{l}_{h}", 1, d_head)
            k = jnp.dot(z, mat(f"wk_{l}_{h}", d_model, d_head),
                        preferred_element_type=jnp.float32) + mat(f"bk_{l}_{h}", 1, d_head)
            v = jnp.dot(z, mat(f"wv_{l}_{h}", d_model, d_head),
                        preferred_element_type=jnp.float32) + mat(f"bv_{l}_{h}", 1, d_head)
            s = lax.dot_general(q, k, (((1,), (1,)), ((), ())),
                                preferred_element_type=jnp.float32)   # [B*C, B*C]
            s = s + attn_bias
            s = s - jnp.max(s, axis=-1, keepdims=True)                # kept: layer-0 z unbounded
            p = jnp.exp(s)
            p = p * pl.reciprocal(jnp.sum(p, axis=-1, keepdims=True), approx=True)
            hv = jnp.dot(p, v, preferred_element_type=jnp.float32)    # [B*C, d_head]
            # per-head output projection + accumulate (no lane concat)
            contrib = jnp.dot(hv, mat(f"wo_{l}_{h}", d_head, d_model),
                              preferred_element_type=jnp.float32)
            att = contrib if att is None else att + contrib

        # ---- residual + LayerNorm 1
        z = z + att + mat(f"bo_{l}", 1, d_model)
        m1 = jnp.mean(z, axis=-1, keepdims=True)
        v1 = jnp.mean((z - m1) ** 2, axis=-1, keepdims=True)
        z = (z - m1) * lax.rsqrt(v1 + EPS) * mat(f"g1_{l}", 1, d_model) + mat(f"be1_{l}", 1, d_model)

        # ---- FFN (Conv1d kernel_size=1 == pointwise Linear) + residual + LayerNorm 2
        y = jnp.dot(z, mat(f"w1_{l}", d_model, fc_dim),
                    preferred_element_type=jnp.float32) + mat(f"b1_{l}", 1, fc_dim)
        if activation == "gelu":
            y = jax.nn.gelu(y)
        else:
            y = jnp.maximum(y, 0.0)
        y = jnp.dot(y, mat(f"w2_{l}", fc_dim, d_model),
                    preferred_element_type=jnp.float32) + mat(f"b2_{l}", 1, d_model)
        zz = z + y
        m2 = jnp.mean(zz, axis=-1, keepdims=True)
        v2 = jnp.mean((zz - m2) ** 2, axis=-1, keepdims=True)
        # last layer's g2/be2 already include the eval-mode BatchNorm scale (host-folded)
        z = (zz - m2) * lax.rsqrt(v2 + EPS) * mat(f"g2_{l}", 1, d_model) + mat(f"be2_{l}", 1, d_model)

    o_ref[...] = z                                                    # [B*C, D]


# ----------------------------- wrapper -----------------------------
def itransformer_forward(x, slab):
    """x: [B, L, C] -> output [B, C, D]. One pallas_call, two DMAs, everything VMEM-resident."""
    B, L, C = x.shape
    D = HIDDEN_DIM
    # The module's own permute(0,2,1) done as wrapper-side layout plumbing: the kernel
    # sees a variate-major [B*C, L] slab so RevIN stats become lane-axis reductions.
    x_rows = jnp.transpose(x, (0, 2, 1)).reshape(B * C, L)
    kern = partial(itransformer_kernel, off=SLAB_OFF, batch=B, channels=C,
                   n_layers=N_LAYERS, n_heads=N_HEADS, d_model=D, d_head=D_HEAD,
                   fc_dim=FC_DIM, seq_len=L, activation=ACTIVATION)
    out = pl.pallas_call(
        kern,
        out_shape=jax.ShapeDtypeStruct((B * C, D), jnp.float32),
        # no grid / no BlockSpecs: both inputs are brought into VMEM once and stay resident.
        # TODO(synk): if batch/channels scale up (esp. on v7x: 64 MiB VMEM, 2 TCs), add a
        # grid=(B,) batch split with parallel dimension_semantics instead of the bias trick.
    )(x_rows, slab)
    return out.reshape(B, C, D)


# ----------------------------- parameters -----------------------------
def init_params(key):
    def dense(k, fan_in, shape):
        bound = 1.0 / math.sqrt(fan_in)
        return jax.random.uniform(k, shape, jnp.float32, -bound, bound)

    keys = jax.random.split(key, 2 + N_LAYERS)
    params = {
        # temporal_embedding: Linear(seq_len, d_model); stored transposed [L, D]
        "w_emb": dense(keys[0], SEQ_LEN, (SEQ_LEN, HIDDEN_DIM)),
        "b_emb": dense(keys[1], SEQ_LEN, (1, HIDDEN_DIM)),
        "layers": [],
    }
    for l in range(N_LAYERS):
        ks = jax.random.split(keys[2 + l], 12)
        params["layers"].append({
            "wq": dense(ks[0], HIDDEN_DIM, (HIDDEN_DIM, HD)), "bq": dense(ks[1], HIDDEN_DIM, (1, HD)),
            "wk": dense(ks[2], HIDDEN_DIM, (HIDDEN_DIM, HD)), "bk": dense(ks[3], HIDDEN_DIM, (1, HD)),
            "wv": dense(ks[4], HIDDEN_DIM, (HIDDEN_DIM, HD)), "bv": dense(ks[5], HIDDEN_DIM, (1, HD)),
            "wo": dense(ks[6], HD, (HD, HIDDEN_DIM)),          "bo": dense(ks[7], HD, (1, HIDDEN_DIM)),
            "w1": dense(ks[8], HIDDEN_DIM, (HIDDEN_DIM, FC_DIM)), "b1": dense(ks[9], HIDDEN_DIM, (1, FC_DIM)),
            "w2": dense(ks[10], FC_DIM, (FC_DIM, HIDDEN_DIM)),    "b2": dense(ks[11], FC_DIM, (1, HIDDEN_DIM)),
            "g1": jnp.ones((1, HIDDEN_DIM), jnp.float32), "be1": jnp.zeros((1, HIDDEN_DIM), jnp.float32),
            "g2": jnp.ones((1, HIDDEN_DIM), jnp.float32), "be2": jnp.zeros((1, HIDDEN_DIM), jnp.float32),
        })
    return params


def pack_params(params):
    """Pack everything into one contiguous f32 slab:
       * per-head Q/K/V/Wo blocks (so the kernel never slices lanes),
       * attention scale folded into Wq/bq,
       * block-diagonal attention bias as a precomputed constant,
       * eval-mode BatchNorm1d(channels) scale folded into the last layer's LN2 affine."""
    slab = np.zeros((SLAB_ROWS, SLAB_WIDTH), np.float32)

    def put(name, arr):
        arr = np.asarray(arr, np.float32)
        r, c = arr.shape
        slab[SLAB_OFF[name]:SLAB_OFF[name] + r, :c] = arr

    put("w_emb", params["w_emb"])
    put("b_emb", params["b_emb"])
    rb = np.arange(N_TOK)[:, None] // FEATURE_NUM
    cb = np.arange(N_TOK)[None, :] // FEATURE_NUM
    put("attn_bias", np.where(rb == cb, 0.0, -1e30).astype(np.float32))

    for l, lp in enumerate(params["layers"]):
        for h in range(N_HEADS):
            sl = slice(h * D_HEAD, (h + 1) * D_HEAD)
            put(f"wq_{l}_{h}", np.asarray(lp["wq"])[:, sl] * SCALE)   # fold attention scale
            put(f"bq_{l}_{h}", np.asarray(lp["bq"])[:, sl] * SCALE)
            put(f"wk_{l}_{h}", np.asarray(lp["wk"])[:, sl])
            put(f"bk_{l}_{h}", np.asarray(lp["bk"])[:, sl])
            put(f"wv_{l}_{h}", np.asarray(lp["wv"])[:, sl])
            put(f"bv_{l}_{h}", np.asarray(lp["bv"])[:, sl])
            put(f"wo_{l}_{h}", np.asarray(lp["wo"])[sl, :])
        put(f"bo_{l}", lp["bo"])
        put(f"w1_{l}", lp["w1"]); put(f"b1_{l}", lp["b1"])
        put(f"w2_{l}", lp["w2"]); put(f"b2_{l}", lp["b2"])
        put(f"g1_{l}", lp["g1"]); put(f"be1_{l}", lp["be1"])
        g2, be2 = np.asarray(lp["g2"]), np.asarray(lp["be2"])
        if l == N_LAYERS - 1:                     # fold eval-mode BatchNorm (default stats)
            g2 = g2 * BN_SCALE
            be2 = be2 * BN_SCALE
        put(f"g2_{l}", g2); put(f"be2_{l}", be2)

    return jnp.asarray(slab)


# ----------------------------- plain-JAX reference -----------------------------
def _layernorm_ref(z, g, b):
    mu = jnp.mean(z, -1, keepdims=True)
    var = jnp.mean((z - mu) ** 2, -1, keepdims=True)
    return (z - mu) * lax.rsqrt(var + EPS) * g + b


def reference_forward(x, params):
    mean = jnp.mean(x, axis=1, keepdims=True)
    var = jnp.mean((x - mean) ** 2, axis=1, keepdims=True)
    xn = (x - mean) / jnp.sqrt(var + EPS)
    z = jnp.einsum("blc,ld->bcd", xn, params["w_emb"]) + params["b_emb"]
    for lp in params["layers"]:
        q = z @ lp["wq"] + lp["bq"]
        k = z @ lp["wk"] + lp["bk"]
        v = z @ lp["wv"] + lp["bv"]
        B, C, HD_ = q.shape
        qh = q.reshape(B, C, N_HEADS, D_HEAD)
        kh = k.reshape(B, C, N_HEADS, D_HEAD)
        vh = v.reshape(B, C, N_HEADS, D_HEAD)
        s = jnp.einsum("bqhe,bkhe->bhqk", qh, kh) * SCALE
        p = jax.nn.softmax(s, axis=-1)
        o = jnp.einsum("bhqk,bkhe->bqhe", p, vh).reshape(B, C, HD_)
        z = z + (o @ lp["wo"] + lp["bo"])
        z = _layernorm_ref(z, lp["g1"], lp["be1"])
        y = z @ lp["w1"] + lp["b1"]
        y = jax.nn.gelu(y) if ACTIVATION == "gelu" else jnp.maximum(y, 0.0)
        y = y @ lp["w2"] + lp["b2"]
        z = _layernorm_ref(z + y, lp["g2"], lp["be2"])
    return z * BN_SCALE


# ----------------------------- main -----------------------------
if __name__ == "__main__":
    key = jax.random.PRNGKey(0)
    kx, kp = jax.random.split(key)
    x = jax.random.normal(kx, (BATCH, SEQ_LEN, FEATURE_NUM), jnp.float32)
    params = init_params(kp)
    slab = pack_params(params)

    out = itransformer_forward(x, slab)
    out = jax.block_until_ready(out)
    assert out.shape == (BATCH, FEATURE_NUM, HIDDEN_DIM)

    ref = reference_forward(x, params)
    err = float(jnp.max(jnp.abs(out - ref)))
    # Tolerance covers the approximate EUP reciprocal (pl.reciprocal approx=True) in the
    # softmax denominator vs. the exact-division reference (~1e-4-level effect).
    if not math.isfinite(err) or err > 5e-3:
        raise AssertionError(f"Pallas output mismatch vs reference: max abs err = {err}")

    print("KERNEL_OK")
</pallas_src>

<mosaic_0001>
module attributes {stable_mosaic.version = 11 : i64} {
  func.func @itransformer_kernel(%arg0: memref<8x8xf32, #tpu.memory_space<vmem>>, %arg1: memref<936x64xf32, #tpu.memory_space<vmem>>, %arg2: memref<8x32xf32, #tpu.memory_space<vmem>>) attributes {dimension_semantics = [], scalar_prefetch = 0 : i64, scratch_operands = 0 : i64, tpu.core_type = #tpu.core_type<tc>} {
    %c0 = arith.constant 0 : index
    %c0_0 = arith.constant 0 : index
    %0 = vector.load %arg0[%c0, %c0_0] : memref<8x8xf32, #tpu.memory_space<vmem>>, vector<8x8xf32>
    %cst = arith.constant dense<0.000000e+00> : vector<8xf32>
    %1 = vector.multi_reduction <add>, %0, %cst [1] : vector<8x8xf32> to vector<8xf32>
    %2 = vector.shape_cast %1 : vector<8xf32> to vector<8x1xf32>
    %cst_1 = arith.constant 8.000000e+00 : f32
    %3 = vector.broadcast %cst_1 : f32 to vector<8x1xf32>
    %4 = arith.divf %2, %3 : vector<8x1xf32>
    %5 = vector.broadcast %4 : vector<8x1xf32> to vector<8x8xf32>
    %6 = arith.subf %0, %5 : vector<8x8xf32>
    %7 = arith.mulf %6, %6 : vector<8x8xf32>
    %cst_2 = arith.constant dense<0.000000e+00> : vector<8xf32>
    %8 = vector.multi_reduction <add>, %7, %cst_2 [1] : vector<8x8xf32> to vector<8xf32>
    %9 = vector.shape_cast %8 : vector<8xf32> to vector<8x1xf32>
    %cst_3 = arith.constant 8.000000e+00 : f32
    %10 = vector.broadcast %cst_3 : f32 to vector<8x1xf32>
    %11 = arith.divf %9, %10 : vector<8x1xf32>
    %12 = vector.broadcast %4 : vector<8x1xf32> to vector<8x8xf32>
    %13 = arith.subf %0, %12 : vector<8x8xf32>
    %cst_4 = arith.constant 9.99999974E-6 : f32
    %14 = vector.broadcast %cst_4 : f32 to vector<8x1xf32>
    %15 = arith.addf %11, %14 : vector<8x1xf32>
    %16 = math.rsqrt %15 : vector<8x1xf32>
    %17 = vector.broadcast %16 : vector<8x1xf32> to vector<8x8xf32>
    %18 = arith.mulf %13, %17 : vector<8x8xf32>
    %c0_5 = arith.constant 0 : index
    %c0_6 = arith.constant 0 : index
    %19 = vector.load %arg1[%c0_5, %c0_6] : memref<936x64xf32, #tpu.memory_space<vmem>>, vector<8x32xf32>
    %cst_7 = arith.constant dense<0.000000e+00> : vector<8x32xf32>
    %20 = tpu.matmul %18, %19, %cst_7 {dimension_numbers = #tpu.dot_dimension_numbers<[1], [0], [0], [1], [0, 0, 1, 1], [], []>} : vector<8x8xf32>, vector<8x32xf32>, vector<8x32xf32> -> vector<8x32xf32>
    %c8 = arith.constant 8 : index
    %c0_8 = arith.constant 0 : index
    %21 = vector.load %arg1[%c8, %c0_8] : memref<936x64xf32, #tpu.memory_space<vmem>>, vector<1x32xf32>
    %22 = vector.broadcast %21 : vector<1x32xf32> to vector<8x32xf32>
    %23 = arith.addf %20, %22 : vector<8x32xf32>
    %c16 = arith.constant 16 : index
    %c0_9 = arith.constant 0 : index
    %24 = vector.load %arg1[%c16, %c0_9] : memref<936x64xf32, #tpu.memory_space<vmem>>, vector<8x8xf32>
    %c24 = arith.constant 24 : index
    %c0_10 = arith.constant 0 : index
    %25 = vector.load %arg1[%c24, %c0_10] : memref<936x64xf32, #tpu.memory_space<vmem>>, vector<32x32xf32>
    %cst_11 = arith.constant dense<0.000000e+00> : vector<8x32xf32>
    %26 = tpu.matmul %23, %25, %cst_11 {dimension_numbers = #tpu.dot_dimension_numbers<[1], [0], [0], [1], [0, 0, 1, 1], [], []>} : vector<8x32xf32>, vector<32x32xf32>, vector<8x32xf32> -> vector<8x32xf32>
    %c56 = arith.constant 56 : index
    %c0_12 = arith.constant 0 : index
    %27 = vector.load %arg1[%c56, %c0_12] : memref<936x64xf32, #tpu.memory_space<vmem>>, vector<1x32xf32>
    %28 = vector.broadcast %27 : vector<1x32xf32> to vector<8x32xf32>
    %29 = arith.addf %26, %28 : vector<8x32xf32>
    %c64 = arith.constant 64 : index
    %c0_13 = arith.constant 0 : index
    %30 = vector.load %arg1[%c64, %c0_13] : memref<936x64xf32, #tpu.memory_space<vmem>>, vector<32x32xf32>
    %cst_14 = arith.constant dense<0.000000e+00> : vector<8x32xf32>
    %31 = tpu.matmul %23, %30, %cst_14 {dimension_numbers = #tpu.dot_dimension_numbers<[1], [0], [0], [1], [0, 0, 1, 1], [], []>} : vector<8x32xf32>, vector<32x32xf32>, vector<8x32xf32> -> vector<8x32xf32>
    %c96 = arith.constant 96 : index
    %c0_15 = arith.constant 0 : index
    %32 = vector.load %arg1[%c96, %c0_15] : memref<936x64xf32, #tpu.memory_space<vmem>>, vector<1x32xf32>
    %33 = vector.broadcast %32 : vector<1x32xf32> to vector<8x32xf32>
    %34 = arith.addf %31, %33 : vector<8x32xf32>
    %c104 = arith.constant 104 : index
    %c0_16 = arith.constant 0 : index
    %35 = vector.load %arg1[%c104, %c0_16] : memref<936x64xf32, #tpu.memory_space<vmem>>, vector<32x32xf32>
    %cst_17 = arith.constant dense<0.000000e+00> : vector<8x32xf32>
    %36 = tpu.matmul %23, %35, %cst_17 {dimension_numbers = #tpu.dot_dimension_numbers<[1], [0], [0], [1], [0, 0, 1, 1], [], []>} : vector<8x32xf32>, vector<32x32xf32>, vector<8x32xf32> -> vector<8x32xf32>
    %c136 = arith.constant 136 : index
    %c0_18 = arith.constant 0 : index
    %37 = vector.load %arg1[%c136, %c0_18] : memref<936x64xf32, #tpu.memory_space<vmem>>, vector<1x32xf32>
    %38 = vector.broadcast %37 : vector<1x32xf32> to vector<8x32xf32>
    %39 = arith.addf %36, %38 : vector<8x32xf32>
    %cst_19 = arith.constant dense<0.000000e+00> : vector<8x8xf32>
    %40 = tpu.matmul %29, %34, %cst_19 {dimension_numbers = #tpu.dot_dimension_numbers<[1], [1], [0], [0], [0, 0, 1, 0], [], []>} : vector<8x32xf32>, vector<8x32xf32>, vector<8x8xf32> -> vector<8x8xf32>
    %41 = arith.addf %40, %24 : vector<8x8xf32>
    %cst_20 = arith.constant dense<0xFF800000> : vector<8xf32>
    %42 = vector.multi_reduction <maximumf>, %41, %cst_20 [1] : vector<8x8xf32> to vector<8xf32>
    %43 = vector.shape_cast %42 : vector<8xf32> to vector<8x1xf32>
    %44 = vector.broadcast %43 : vector<8x1xf32> to vector<8x8xf32>
    %45 = arith.subf %41, %44 : vector<8x8xf32>
    %46 = math.exp %45 : vector<8x8xf32>
    %cst_21 = arith.constant dense<0.000000e+00> : vector<8xf32>
    %47 = vector.multi_reduction <add>, %46, %cst_21 [1] : vector<8x8xf32> to vector<8xf32>
    %48 = vector.shape_cast %47 : vector<8xf32> to vector<8x1xf32>
    %49 = tpu.reciprocal %48 {approx = true} : vector<8x1xf32> -> vector<8x1xf32>
    %50 = vector.broadcast %49 : vector<8x1xf32> to vector<8x8xf32>
    %51 = arith.mulf %46, %50 : vector<8x8xf32>
    %cst_22 = arith.constant dense<0.000000e+00> : vector<8x32xf32>
    %52 = tpu.matmul %51, %39, %cst_22 {dimension_numbers = #tpu.dot_dimension_numbers<[1], [0], [0], [1], [0, 0, 1, 1], [], []>} : vector<8x8xf32>, vector<8x32xf32>, vector<8x32xf32> -> vector<8x32xf32>
    %c144 = arith.constant 144 : index
    %c0_23 = arith.constant 0 : index
    %53 = vector.load %arg1[%c144, %c0_23] : memref<936x64xf32, #tpu.memory_space<vmem>>, vector<32x32xf32>
    %cst_24 = arith.constant dense<0.000000e+00> : vector<8x32xf32>
    %54 = tpu.matmul %52, %53, %cst_24 {dimension_numbers = #tpu.dot_dimension_numbers<[1], [0], [0], [1], [0, 0, 1, 1], [], []>} : vector<8x32xf32>, vector<32x32xf32>, vector<8x32xf32> -> vector<8x32xf32>
    %c176 = arith.constant 176 : index
    %c0_25 = arith.constant 0 : index
    %55 = vector.load %arg1[%c176, %c0_25] : memref<936x64xf32, #tpu.memory_space<vmem>>, vector<32x32xf32>
    %cst_26 = arith.constant dense<0.000000e+00> : vector<8x32xf32>
    %56 = tpu.matmul %23, %55, %cst_26 {dimension_numbers = #tpu.dot_dimension_numbers<[1], [0], [0], [1], [0, 0, 1, 1], [], []>} : vector<8x32xf32>, vector<32x32xf32>, vector<8x32xf32> -> vector<8x32xf32>
    %c208 = arith.constant 208 : index
    %c0_27 = arith.constant 0 : index
    %57 = vector.load %arg1[%c208, %c0_27] : memref<936x64xf32, #tpu.memory_space<vmem>>, vector<1x32xf32>
    %58 = vector.broadcast %57 : vector<1x32xf32> to vector<8x32xf32>
    %59 = arith.addf %56, %58 : vector<8x32xf32>
    %c216 = arith.constant 216 : index
    %c0_28 = arith.constant 0 : index
    %60 = vector.load %arg1[%c216, %c0_28] : memref<936x64xf32, #tpu.memory_space<vmem>>, vector<32x32xf32>
    %cst_29 = arith.constant dense<0.000000e+00> : vector<8x32xf32>
    %61 = tpu.matmul %23, %60, %cst_29 {dimension_numbers = #tpu.dot_dimension_numbers<[1], [0], [0], [1], [0, 0, 1, 1], [], []>} : vector<8x32xf32>, vector<32x32xf32>, vector<8x32xf32> -> vector<8x32xf32>
    %c248 = arith.constant 248 : index
    %c0_30 = arith.constant 0 : index
    %62 = vector.load %arg1[%c248, %c0_30] : memref<936x64xf32, #tpu.memory_space<vmem>>, vector<1x32xf32>
    %63 = vector.broadcast %62 : vector<1x32xf32> to vector<8x32xf32>
    %64 = arith.addf %61, %63 : vector<8x32xf32>
    %c256 = arith.constant 256 : index
    %c0_31 = arith.constant 0 : index
    %65 = vector.load %arg1[%c256, %c0_31] : memref<936x64xf32, #tpu.memory_space<vmem>>, vector<32x32xf32>
    %cst_32 = arith.constant dense<0.000000e+00> : vector<8x32xf32>
    %66 = tpu.matmul %23, %65, %cst_32 {dimension_numbers = #tpu.dot_dimension_numbers<[1], [0], [0], [1], [0, 0, 1, 1], [], []>} : vector<8x32xf32>, vector<32x32xf32>, vector<8x32xf32> -> vector<8x32xf32>
    %c288 = arith.constant 288 : index
    %c0_33 = arith.constant 0 : index
    %67 = vector.load %arg1[%c288, %c0_33] : memref<936x64xf32, #tpu.memory_space<vmem>>, vector<1x32xf32>
    %68 = vector.broadcast %67 : vector<1x32xf32> to vector<8x32xf32>
    %69 = arith.addf %66, %68 : vector<8x32xf32>
    %cst_34 = arith.constant dense<0.000000e+00> : vector<8x8xf32>
    %70 = tpu.matmul %59, %64, %cst_34 {dimension_numbers = #tpu.dot_dimension_numbers<[1], [1], [0], [0], [0, 0, 1, 0], [], []>} : vector<8x32xf32>, vector<8x32xf32>, vector<8x8xf32> -> vector<8x8xf32>
    %71 = arith.addf %70, %24 : vector<8x8xf32>
    %cst_35 = arith.constant dense<0xFF800000> : vector<8xf32>
    %72 = vector.multi_reduction <maximumf>, %71, %cst_35 [1] : vector<8x8xf32> to vector<8xf32>
    %73 = vector.shape_cast %72 : vector<8xf32> to vector<8x1xf32>
    %74 = vector.broadcast %73 : vector<8x1xf32> to vector<8x8xf32>
    %75 = arith.subf %71, %74 : vector<8x8xf32>
    %76 = math.exp %75 : vector<8x8xf32>
    %cst_36 = arith.constant dense<0.000000e+00> : vector<8xf32>
    %77 = vector.multi_reduction <add>, %76, %cst_36 [1] : vector<8x8xf32> to vector<8xf32>
    %78 = vector.shape_cast %77 : vector<8xf32> to vector<8x1xf32>
    %79 = tpu.reciprocal %78 {approx = true} : vector<8x1xf32> -> vector<8x1xf32>
    %80 = vector.broadcast %79 : vector<8x1xf32> to vector<8x8xf32>
    %81 = arith.mulf %76, %80 : vector<8x8xf32>
    %cst_37 = arith.constant dense<0.000000e+00> : vector<8x32xf32>
    %82 = tpu.matmul %81, %69, %cst_37 {dimension_numbers = #tpu.dot_dimension_numbers<[1], [0], [0], [1], [0, 0, 1, 1], [], []>} : vector<8x8xf32>, vector<8x32xf32>, vector<8x32xf32> -> vector<8x32xf32>
    %c296 = arith.constant 296 : index
    %c0_38 = arith.constant 0 : index
    %83 = vector.load %arg1[%c296, %c0_38] : memref<936x64xf32, #tpu.memory_space<vmem>>, vector<32x32xf32>
    %cst_39 = arith.constant dense<0.000000e+00> : vector<8x32xf32>
    %84 = tpu.matmul %82, %83, %cst_39 {dimension_numbers = #tpu.dot_dimension_numbers<[1], [0], [0], [1], [0, 0, 1, 1], [], []>} : vector<8x32xf32>, vector<32x32xf32>, vector<8x32xf32> -> vector<8x32xf32>
    %85 = arith.addf %54, %84 : vector<8x32xf32>
    %86 = arith.addf %23, %85 : vector<8x32xf32>
    %c328 = arith.constant 328 : index
    %c0_40 = arith.constant 0 : index
    %87 = vector.load %arg1[%c328, %c0_40] : memref<936x64xf32, #tpu.memory_space<vmem>>, vector<1x32xf32>
    %88 = vector.broadcast %87 : vector<1x32xf32> to vector<8x32xf32>
    %89 = arith.addf %86, %88 : vector<8x32xf32>
    %cst_41 = arith.constant dense<0.000000e+00> : vector<8xf32>
    %90 = vector.multi_reduction <add>, %89, %cst_41 [1] : vector<8x32xf32> to vector<8xf32>
    %91 = vector.shape_cast %90 : vector<8xf32> to vector<8x1xf32>
    %cst_42 = arith.constant 3.200000e+01 : f32
    %92 = vector.broadcast %cst_42 : f32 to vector<8x1xf32>
    %93 = arith.divf %91, %92 : vector<8x1xf32>
    %94 = vector.broadcast %93 : vector<8x1xf32> to vector<8x32xf32>
    %95 = arith.subf %89, %94 : vector<8x32xf32>
    %96 = arith.mulf %95, %95 : vector<8x32xf32>
    %cst_43 = arith.constant dense<0.000000e+00> : vector<8xf32>
    %97 = vector.multi_reduction <add>, %96, %cst_43 [1] : vector<8x32xf32> to vector<8xf32>
    %98 = vector.shape_cast %97 : vector<8xf32> to vector<8x1xf32>
    %cst_44 = arith.constant 3.200000e+01 : f32
    %99 = vector.broadcast %cst_44 : f32 to vector<8x1xf32>
    %100 = arith.divf %98, %99 : vector<8x1xf32>
    %101 = vector.broadcast %93 : vector<8x1xf32> to vector<8x32xf32>
    %102 = arith.subf %89, %101 : vector<8x32xf32>
    %cst_45 = arith.constant 9.99999974E-6 : f32
    %103 = vector.broadcast %cst_45 : f32 to vector<8x1xf32>
    %104 = arith.addf %100, %103 : vector<8x1xf32>
    %105 = math.rsqrt %104 : vector<8x1xf32>
    %106 = vector.broadcast %105 : vector<8x1xf32> to vector<8x32xf32>
    %107 = arith.mulf %102, %106 : vector<8x32xf32>
    %c448 = arith.constant 448 : index
    %c0_46 = arith.constant 0 : index
    %108 = vector.load %arg1[%c448, %c0_46] : memref<936x64xf32, #tpu.memory_space<vmem>>, vector<1x32xf32>
    %109 = vector.broadcast %108 : vector<1x32xf32> to vector<8x32xf32>
    %110 = arith.mulf %107, %109 : vector<8x32xf32>
    %c456 = arith.constant 456 : index
    %c0_47 = arith.constant 0 : index
    %111 = vector.load %arg1[%c456, %c0_47] : memref<936x64xf32, #tpu.memory_space<vmem>>, vector<1x32xf32>
    %112 = vector.broadcast %111 : vector<1x32xf32> to vector<8x32xf32>
    %113 = arith.addf %110, %112 : vector<8x32xf32>
    %c336 = arith.constant 336 : index
    %c0_48 = arith.constant 0 : index
    %114 = vector.load %arg1[%c336, %c0_48] : memref<936x64xf32, #tpu.memory_space<vmem>>, vector<32x64xf32>
    %cst_49 = arith.constant dense<0.000000e+00> : vector<8x64xf32>
    %115 = tpu.matmul %113, %114, %cst_49 {dimension_numbers = #tpu.dot_dimension_numbers<[1], [0], [0], [1], [0, 0, 1, 1], [], []>} : vector<8x32xf32>, vector<32x64xf32>, vector<8x64xf32> -> vector<8x64xf32>
    %c368 = arith.constant 368 : index
    %c0_50 = arith.constant 0 : index
    %116 = vector.load %arg1[%c368, %c0_50] : memref<936x64xf32, #tpu.memory_space<vmem>>, vector<1x64xf32>
    %117 = vector.broadcast %116 : vector<1x64xf32> to vector<8x64xf32>
    %118 = arith.addf %115, %117 : vector<8x64xf32>
    %cst_51 = arith.constant 0.000000e+00 : f32
    %119 = vector.broadcast %cst_51 : f32 to vector<8x64xf32>
    %120 = arith.maximumf %118, %119 : vector<8x64xf32>
    %c376 = arith.constant 376 : index
    %c0_52 = arith.constant 0 : index
    %121 = vector.load %arg1[%c376, %c0_52] : memref<936x64xf32, #tpu.memory_space<vmem>>, vector<64x32xf32>
    %cst_53 = arith.constant dense<0.000000e+00> : vector<8x32xf32>
    %122 = tpu.matmul %120, %121, %cst_53 {dimension_numbers = #tpu.dot_dimension_numbers<[1], [0], [0], [1], [0, 0, 1, 1], [], []>} : vector<8x64xf32>, vector<64x32xf32>, vector<8x32xf32> -> vector<8x32xf32>
    %c440 = arith.constant 440 : index
    %c0_54 = arith.constant 0 : index
    %123 = vector.load %arg1[%c440, %c0_54] : memref<936x64xf32, #tpu.memory_space<vmem>>, vector<1x32xf32>
    %124 = vector.broadcast %123 : vector<1x32xf32> to vector<8x32xf32>
    %125 = arith.addf %122, %124 : vector<8x32xf32>
    %126 = arith.addf %113, %125 : vector<8x32xf32>
    %cst_55 = arith.constant dense<0.000000e+00> : vector<8xf32>
    %127 = vector.multi_reduction <add>, %126, %cst_55 [1] : vector<8x32xf32> to vector<8xf32>
    %128 = vector.shape_cast %127 : vector<8xf32> to vector<8x1xf32>
    %cst_56 = arith.constant 3.200000e+01 : f32
    %129 = vector.broadcast %cst_56 : f32 to vector<8x1xf32>
    %130 = arith.divf %128, %129 : vector<8x1xf32>
    %131 = vector.broadcast %130 : vector<8x1xf32> to vector<8x32xf32>
    %132 = arith.subf %126, %131 : vector<8x32xf32>
    %133 = arith.mulf %132, %132 : vector<8x32xf32>
    %cst_57 = arith.constant dense<0.000000e+00> : vector<8xf32>
    %134 = vector.multi_reduction <add>, %133, %cst_57 [1] : vector<8x32xf32> to vector<8xf32>
    %135 = vector.shape_cast %134 : vector<8xf32> to vector<8x1xf32>
    %cst_58 = arith.constant 3.200000e+01 : f32
    %136 = vector.broadcast %cst_58 : f32 to vector<8x1xf32>
    %137 = arith.divf %135, %136 : vector<8x1xf32>
    %138 = vector.broadcast %130 : vector<8x1xf32> to vector<8x32xf32>
    %139 = arith.subf %126, %138 : vector<8x32xf32>
    %cst_59 = arith.constant 9.99999974E-6 : f32
    %140 = vector.broadcast %cst_59 : f32 to vector<8x1xf32>
    %141 = arith.addf %137, %140 : vector<8x1xf32>
    %142 = math.rsqrt %141 : vector<8x1xf32>
    %143 = vector.broadcast %142 : vector<8x1xf32> to vector<8x32xf32>
    %144 = arith.mulf %139, %143 : vector<8x32xf32>
    %c464 = arith.constant 464 : index
    %c0_60 = arith.constant 0 : index
    %145 = vector.load %arg1[%c464, %c0_60] : memref<936x64xf32, #tpu.memory_space<vmem>>, vector<1x32xf32>
    %146 = vector.broadcast %145 : vector<1x32xf32> to vector<8x32xf32>
    %147 = arith.mulf %144, %146 : vector<8x32xf32>
    %c472 = arith.constant 472 : index
    %c0_61 = arith.constant 0 : index
    %148 = vector.load %arg1[%c472, %c0_61] : memref<936x64xf32, #tpu.memory_space<vmem>>, vector<1x32xf32>
    %149 = vector.broadcast %148 : vector<1x32xf32> to vector<8x32xf32>
    %150 = arith.addf %147, %149 : vector<8x32xf32>
    %c480 = arith.constant 480 : index
    %c0_62 = arith.constant 0 : index
    %151 = vector.load %arg1[%c480, %c0_62] : memref<936x64xf32, #tpu.memory_space<vmem>>, vector<32x32xf32>
    %cst_63 = arith.constant dense<0.000000e+00> : vector<8x32xf32>
    %152 = tpu.matmul %150, %151, %cst_63 {dimension_numbers = #tpu.dot_dimension_numbers<[1], [0], [0], [1], [0, 0, 1, 1], [], []>} : vector<8x32xf32>, vector<32x32xf32>, vector<8x32xf32> -> vector<8x32xf32>
    %c512 = arith.constant 512 : index
    %c0_64 = arith.constant 0 : index
    %153 = vector.load %arg1[%c512, %c0_64] : memref<936x64xf32, #tpu.memory_space<vmem>>, vector<1x32xf32>
    %154 = vector.broadcast %153 : vector<1x32xf32> to vector<8x32xf32>
    %155 = arith.addf %152, %154 : vector<8x32xf32>
    %c520 = arith.constant 520 : index
    %c0_65 = arith.constant 0 : index
    %156 = vector.load %arg1[%c520, %c0_65] : memref<936x64xf32, #tpu.memory_space<vmem>>, vector<32x32xf32>
    %cst_66 = arith.constant dense<0.000000e+00> : vector<8x32xf32>
    %157 = tpu.matmul %150, %156, %cst_66 {dimension_numbers = #tpu.dot_dimension_numbers<[1], [0], [0], [1], [0, 0, 1, 1], [], []>} : vector<8x32xf32>, vector<32x32xf32>, vector<8x32xf32> -> vector<8x32xf32>
    %c552 = arith.constant 552 : index
    %c0_67 = arith.constant 0 : index
    %158 = vector.load %arg1[%c552, %c0_67] : memref<936x64xf32, #tpu.memory_space<vmem>>, vector<1x32xf32>
    %159 = vector.broadcast %158 : vector<1x32xf32> to vector<8x32xf32>
    %160 = arith.addf %157, %159 : vector<8x32xf32>
    %c560 = arith.constant 560 : index
    %c0_68 = arith.constant 0 : index
    %161 = vector.load %arg1[%c560, %c0_68] : memref<936x64xf32, #tpu.memory_space<vmem>>, vector<32x32xf32>
    %cst_69 = arith.constant dense<0.000000e+00> : vector<8x32xf32>
    %162 = tpu.matmul %150, %161, %cst_69 {dimension_numbers = #tpu.dot_dimension_numbers<[1], [0], [0], [1], [0, 0, 1, 1], [], []>} : vector<8x32xf32>, vector<32x32xf32>, vector<8x32xf32> -> vector<8x32xf32>
    %c592 = arith.constant 592 : index
    %c0_70 = arith.constant 0 : index
    %163 = vector.load %arg1[%c592, %c0_70] : memref<936x64xf32, #tpu.memory_space<vmem>>, vector<1x32xf32>
    %164 = vector.broadcast %163 : vector<1x32xf32> to vector<8x32xf32>
    %165 = arith.addf %162, %164 : vector<8x32xf32>
    %cst_71 = arith.constant dense<0.000000e+00> : vector<8x8xf32>
    %166 = tpu.matmul %155, %160, %cst_71 {dimension_numbers = #tpu.dot_dimension_numbers<[1], [1], [0], [0], [0, 0, 1, 0], [], []>} : vector<8x32xf32>, vector<8x32xf32>, vector<8x8xf32> -> vector<8x8xf32>
    %167 = arith.addf %166, %24 : vector<8x8xf32>
    %cst_72 = arith.constant dense<0xFF800000> : vector<8xf32>
    %168 = vector.multi_reduction <maximumf>, %167, %cst_72 [1] : vector<8x8xf32> to vector<8xf32>
    %169 = vector.shape_cast %168 : vector<8xf32> to vector<8x1xf32>
    %170 = vector.broadcast %169 : vector<8x1xf32> to vector<8x8xf32>
    %171 = arith.subf %167, %170 : vector<8x8xf32>
    %172 = math.exp %171 : vector<8x8xf32>
    %cst_73 = arith.constant dense<0.000000e+00> : vector<8xf32>
    %173 = vector.multi_reduction <add>, %172, %cst_73 [1] : vector<8x8xf32> to vector<8xf32>
    %174 = vector.shape_cast %173 : vector<8xf32> to vector<8x1xf32>
    %175 = tpu.reciprocal %174 {approx = true} : vector<8x1xf32> -> vector<8x1xf32>
    %176 = vector.broadcast %175 : vector<8x1xf32> to vector<8x8xf32>
    %177 = arith.mulf %172, %176 : vector<8x8xf32>
    %cst_74 = arith.constant dense<0.000000e+00> : vector<8x32xf32>
    %178 = tpu.matmul %177, %165, %cst_74 {dimension_numbers = #tpu.dot_dimension_numbers<[1], [0], [0], [1], [0, 0, 1, 1], [], []>} : vector<8x8xf32>, vector<8x32xf32>, vector<8x32xf32> -> vector<8x32xf32>
    %c600 = arith.constant 600 : index
    %c0_75 = arith.constant 0 : index
    %179 = vector.load %arg1[%c600, %c0_75] : memref<936x64xf32, #tpu.memory_space<vmem>>, vector<32x32xf32>
    %cst_76 = arith.constant dense<0.000000e+00> : vector<8x32xf32>
    %180 = tpu.matmul %178, %179, %cst_76 {dimension_numbers = #tpu.dot_dimension_numbers<[1], [0], [0], [1], [0, 0, 1, 1], [], []>} : vector<8x32xf32>, vector<32x32xf32>, vector<8x32xf32> -> vector<8x32xf32>
    %c632 = arith.constant 632 : index
    %c0_77 = arith.constant 0 : index
    %181 = vector.load %arg1[%c632, %c0_77] : memref<936x64xf32, #tpu.memory_space<vmem>>, vector<32x32xf32>
    %cst_78 = arith.constant dense<0.000000e+00> : vector<8x32xf32>
    %182 = tpu.matmul %150, %181, %cst_78 {dimension_numbers = #tpu.dot_dimension_numbers<[1], [0], [0], [1], [0, 0, 1, 1], [], []>} : vector<8x32xf32>, vector<32x32xf32>, vector<8x32xf32> -> vector<8x32xf32>
    %c664 = arith.constant 664 : index
    %c0_79 = arith.constant 0 : index
    %183 = vector.load %arg1[%c664, %c0_79] : memref<936x64xf32, #tpu.memory_space<vmem>>, vector<1x32xf32>
    %184 = vector.broadcast %183 : vector<1x32xf32> to vector<8x32xf32>
    %185 = arith.addf %182, %184 : vector<8x32xf32>
    %c672 = arith.constant 672 : index
    %c0_80 = arith.constant 0 : index
    %186 = vector.load %arg1[%c672, %c0_80] : memref<936x64xf32, #tpu.memory_space<vmem>>, vector<32x32xf32>
    %cst_81 = arith.constant dense<0.000000e+00> : vector<8x32xf32>
    %187 = tpu.matmul %150, %186, %cst_81 {dimension_numbers = #tpu.dot_dimension_numbers<[1], [0], [0], [1], [0, 0, 1, 1], [], []>} : vector<8x32xf32>, vector<32x32xf32>, vector<8x32xf32> -> vector<8x32xf32>
    %c704 = arith.constant 704 : index
    %c0_82 = arith.constant 0 : index
    %188 = vector.load %arg1[%c704, %c0_82] : memref<936x64xf32, #tpu.memory_space<vmem>>, vector<1x32xf32>
    %189 = vector.broadcast %188 : vector<1x32xf32> to vector<8x32xf32>
    %190 = arith.addf %187, %189 : vector<8x32xf32>
    %c712 = arith.constant 712 : index
    %c0_83 = arith.constant 0 : index
    %191 = vector.load %arg1[%c712, %c0_83] : memref<936x64xf32, #tpu.memory_space<vmem>>, vector<32x32xf32>
    %cst_84 = arith.constant dense<0.000000e+00> : vector<8x32xf32>
    %192 = tpu.matmul %150, %191, %cst_84 {dimension_numbers = #tpu.dot_dimension_numbers<[1], [0], [0], [1], [0, 0, 1, 1], [], []>} : vector<8x32xf32>, vector<32x32xf32>, vector<8x32xf32> -> vector<8x32xf32>
    %c744 = arith.constant 744 : index
    %c0_85 = arith.constant 0 : index
    %193 = vector.load %arg1[%c744, %c0_85] : memref<936x64xf32, #tpu.memory_space<vmem>>, vector<1x32xf32>
    %194 = vector.broadcast %193 : vector<1x32xf32> to vector<8x32xf32>
    %195 = arith.addf %192, %194 : vector<8x32xf32>
    %cst_86 = arith.constant dense<0.000000e+00> : vector<8x8xf32>
    %196 = tpu.matmul %185, %190, %cst_86 {dimension_numbers = #tpu.dot_dimension_numbers<[1], [1], [0], [0], [0, 0, 1, 0], [], []>} : vector<8x32xf32>, vector<8x32xf32>, vector<8x8xf32> -> vector<8x8xf32>
    %197 = arith.addf %196, %24 : vector<8x8xf32>
    %cst_87 = arith.constant dense<0xFF800000> : vector<8xf32>
    %198 = vector.multi_reduction <maximumf>, %197, %cst_87 [1] : vector<8x8xf32> to vector<8xf32>
    %199 = vector.shape_cast %198 : vector<8xf32> to vector<8x1xf32>
    %200 = vector.broadcast %199 : vector<8x1xf32> to vector<8x8xf32>
    %201 = arith.subf %197, %200 : vector<8x8xf32>
    %202 = math.exp %201 : vector<8x8xf32>
    %cst_88 = arith.constant dense<0.000000e+00> : vector<8xf32>
    %203 = vector.multi_reduction <add>, %202, %cst_88 [1] : vector<8x8xf32> to vector<8xf32>
    %204 = vector.shape_cast %203 : vector<8xf32> to vector<8x1xf32>
    %205 = tpu.reciprocal %204 {approx = true} : vector<8x1xf32> -> vector<8x1xf32>
    %206 = vector.broadcast %205 : vector<8x1xf32> to vector<8x8xf32>
    %207 = arith.mulf %202, %206 : vector<8x8xf32>
    %cst_89 = arith.constant dense<0.000000e+00> : vector<8x32xf32>
    %208 = tpu.matmul %207, %195, %cst_89 {dimension_numbers = #tpu.dot_dimension_numbers<[1], [0], [0], [1], [0, 0, 1, 1], [], []>} : vector<8x8xf32>, vector<8x32xf32>, vector<8x32xf32> -> vector<8x32xf32>
    %c752 = arith.constant 752 : index
    %c0_90 = arith.constant 0 : index
    %209 = vector.load %arg1[%c752, %c0_90] : memref<936x64xf32, #tpu.memory_space<vmem>>, vector<32x32xf32>
    %cst_91 = arith.constant dense<0.000000e+00> : vector<8x32xf32>
    %210 = tpu.matmul %208, %209, %cst_91 {dimension_numbers = #tpu.dot_dimension_numbers<[1], [0], [0], [1], [0, 0, 1, 1], [], []>} : vector<8x32xf32>, vector<32x32xf32>, vector<8x32xf32> -> vector<8x32xf32>
    %211 = arith.addf %180, %210 : vector<8x32xf32>
    %212 = arith.addf %150, %211 : vector<8x32xf32>
    %c784 = arith.constant 784 : index
    %c0_92 = arith.constant 0 : index
    %213 = vector.load %arg1[%c784, %c0_92] : memref<936x64xf32, #tpu.memory_space<vmem>>, vector<1x32xf32>
    %214 = vector.broadcast %213 : vector<1x32xf32> to vector<8x32xf32>
    %215 = arith.addf %212, %214 : vector<8x32xf32>
    %cst_93 = arith.constant dense<0.000000e+00> : vector<8xf32>
    %216 = vector.multi_reduction <add>, %215, %cst_93 [1] : vector<8x32xf32> to vector<8xf32>
    %217 = vector.shape_cast %216 : vector<8xf32> to vector<8x1xf32>
    %cst_94 = arith.constant 3.200000e+01 : f32
    %218 = vector.broadcast %cst_94 : f32 to vector<8x1xf32>
    %219 = arith.divf %217, %218 : vector<8x1xf32>
    %220 = vector.broadcast %219 : vector<8x1xf32> to vector<8x32xf32>
    %221 = arith.subf %215, %220 : vector<8x32xf32>
    %222 = arith.mulf %221, %221 : vector<8x32xf32>
    %cst_95 = arith.constant dense<0.000000e+00> : vector<8xf32>
    %223 = vector.multi_reduction <add>, %222, %cst_95 [1] : vector<8x32xf32> to vector<8xf32>
    %224 = vector.shape_cast %223 : vector<8xf32> to vector<8x1xf32>
    %cst_96 = arith.constant 3.200000e+01 : f32
    %225 = vector.broadcast %cst_96 : f32 to vector<8x1xf32>
    %226 = arith.divf %224, %225 : vector<8x1xf32>
    %227 = vector.broadcast %219 : vector<8x1xf32> to vector<8x32xf32>
    %228 = arith.subf %215, %227 : vector<8x32xf32>
    %cst_97 = arith.constant 9.99999974E-6 : f32
    %229 = vector.broadcast %cst_97 : f32 to vector<8x1xf32>
    %230 = arith.addf %226, %229 : vector<8x1xf32>
    %231 = math.rsqrt %230 : vector<8x1xf32>
    %232 = vector.broadcast %231 : vector<8x1xf32> to vector<8x32xf32>
    %233 = arith.mulf %228, %232 : vector<8x32xf32>
    %c904 = arith.constant 904 : index
    %c0_98 = arith.constant 0 : index
    %234 = vector.load %arg1[%c904, %c0_98] : memref<936x64xf32, #tpu.memory_space<vmem>>, vector<1x32xf32>
    %235 = vector.broadcast %234 : vector<1x32xf32> to vector<8x32xf32>
    %236 = arith.mulf %233, %235 : vector<8x32xf32>
    %c912 = arith.constant 912 : index
    %c0_99 = arith.constant 0 : index
    %237 = vector.load %arg1[%c912, %c0_99] : memref<936x64xf32, #tpu.memory_space<vmem>>, vector<1x32xf32>
    %238 = vector.broadcast %237 : vector<1x32xf32> to vector<8x32xf32>
    %239 = arith.addf %236, %238 : vector<8x32xf32>
    %c792 = arith.constant 792 : index
    %c0_100 = arith.constant 0 : index
    %240 = vector.load %arg1[%c792, %c0_100] : memref<936x64xf32, #tpu.memory_space<vmem>>, vector<32x64xf32>
    %cst_101 = arith.constant dense<0.000000e+00> : vector<8x64xf32>
    %241 = tpu.matmul %239, %240, %cst_101 {dimension_numbers = #tpu.dot_dimension_numbers<[1], [0], [0], [1], [0, 0, 1, 1], [], []>} : vector<8x32xf32>, vector<32x64xf32>, vector<8x64xf32> -> vector<8x64xf32>
    %c824 = arith.constant 824 : index
    %c0_102 = arith.constant 0 : index
    %242 = vector.load %arg1[%c824, %c0_102] : memref<936x64xf32, #tpu.memory_space<vmem>>, vector<1x64xf32>
    %243 = vector.broadcast %242 : vector<1x64xf32> to vector<8x64xf32>
    %244 = arith.addf %241, %243 : vector<8x64xf32>
    %cst_103 = arith.constant 0.000000e+00 : f32
    %245 = vector.broadcast %cst_103 : f32 to vector<8x64xf32>
    %246 = arith.maximumf %244, %245 : vector<8x64xf32>
    %c832 = arith.constant 832 : index
    %c0_104 = arith.constant 0 : index
    %247 = vector.load %arg1[%c832, %c0_104] : memref<936x64xf32, #tpu.memory_space<vmem>>, vector<64x32xf32>
    %cst_105 = arith.constant dense<0.000000e+00> : vector<8x32xf32>
    %248 = tpu.matmul %246, %247, %cst_105 {dimension_numbers = #tpu.dot_dimension_numbers<[1], [0], [0], [1], [0, 0, 1, 1], [], []>} : vector<8x64xf32>, vector<64x32xf32>, vector<8x32xf32> -> vector<8x32xf32>
    %c896 = arith.constant 896 : index
    %c0_106 = arith.constant 0 : index
    %249 = vector.load %arg1[%c896, %c0_106] : memref<936x64xf32, #tpu.memory_space<vmem>>, vector<1x32xf32>
    %250 = vector.broadcast %249 : vector<1x32xf32> to vector<8x32xf32>
    %251 = arith.addf %248, %250 : vector<8x32xf32>
    %252 = arith.addf %239, %251 : vector<8x32xf32>
    %cst_107 = arith.constant dense<0.000000e+00> : vector<8xf32>
    %253 = vector.multi_reduction <add>, %252, %cst_107 [1] : vector<8x32xf32> to vector<8xf32>
    %254 = vector.shape_cast %253 : vector<8xf32> to vector<8x1xf32>
    %cst_108 = arith.constant 3.200000e+01 : f32
    %255 = vector.broadcast %cst_108 : f32 to vector<8x1xf32>
    %256 = arith.divf %254, %255 : vector<8x1xf32>
    %257 = vector.broadcast %256 : vector<8x1xf32> to vector<8x32xf32>
    %258 = arith.subf %252, %257 : vector<8x32xf32>
    %259 = arith.mulf %258, %258 : vector<8x32xf32>
    %cst_109 = arith.constant dense<0.000000e+00> : vector<8xf32>
    %260 = vector.multi_reduction <add>, %259, %cst_109 [1] : vector<8x32xf32> to vector<8xf32>
    %261 = vector.shape_cast %260 : vector<8xf32> to vector<8x1xf32>
    %cst_110 = arith.constant 3.200000e+01 : f32
    %262 = vector.broadcast %cst_110 : f32 to vector<8x1xf32>
    %263 = arith.divf %261, %262 : vector<8x1xf32>
    %264 = vector.broadcast %256 : vector<8x1xf32> to vector<8x32xf32>
    %265 = arith.subf %252, %264 : vector<8x32xf32>
    %cst_111 = arith.constant 9.99999974E-6 : f32
    %266 = vector.broadcast %cst_111 : f32 to vector<8x1xf32>
    %267 = arith.addf %263, %266 : vector<8x1xf32>
    %268 = math.rsqrt %267 : vector<8x1xf32>
    %269 = vector.broadcast %268 : vector<8x1xf32> to vector<8x32xf32>
    %270 = arith.mulf %265, %269 : vector<8x32xf32>
    %c920 = arith.constant 920 : index
    %c0_112 = arith.constant 0 : index
    %271 = vector.load %arg1[%c920, %c0_112] : memref<936x64xf32, #tpu.memory_space<vmem>>, vector<1x32xf32>
    %272 = vector.broadcast %271 : vector<1x32xf32> to vector<8x32xf32>
    %273 = arith.mulf %270, %272 : vector<8x32xf32>
    %c928 = arith.constant 928 : index
    %c0_113 = arith.constant 0 : index
    %274 = vector.load %arg1[%c928, %c0_113] : memref<936x64xf32, #tpu.memory_space<vmem>>, vector<1x32xf32>
    %275 = vector.broadcast %274 : vector<1x32xf32> to vector<8x32xf32>
    %276 = arith.addf %273, %275 : vector<8x32xf32>
    %c0_114 = arith.constant 0 : index
    %c0_115 = arith.constant 0 : index
    %277 = vector.load %arg2[%c0_114, %c0_115] : memref<8x32xf32, #tpu.memory_space<vmem>>, vector<8x32xf32>
    tpu.vector_store %arg2[%c0_114, %c0_115], %276 {strides = array<i32>} : memref<8x32xf32, #tpu.memory_space<vmem>>, vector<8x32xf32>,
    return
  }
}

</mosaic_0001>

<llo_original>
// kernel: tpu_custom_call.1
$region0: #{tpu_custom_call.1}
  #allocation0 [shape = 'u32[]', space=smem, size = 0x4, offset = 0x4, fixed_abs, tag = 'smem constant byte address 0x4 - core index']
  #allocation1 [shape = 'u32[144,128]{1,0:T(1,128)}', space=vmem, size = 0x12000, scoped, tag = 'internal scratch']
  %s0 = inlined_call_operand.vmem [shape: f32[8,8], index: 0, kind: input, shape index: {}]
  %s1 = inlined_call_operand.vmem [shape: f32[936,64], index: 1, kind: input, shape index: {}]
  %s2 = inlined_call_operand.hbm [shape: f32[8,32], index: 2, kind: output, shape index: {}]
  %s3 = sld [smem:[#allocation0]]
  $region18: #{tpu_custom_call.1} parent=0
    _
  %s5 = ssub.s32 1, %s3
  %s6 = scalar_select 0, %s5, %s3
  $region1: #{tpu_custom_call.1} parent=0
    #allocation2 [shape = 'u8[4096]{0}', space=vmem, size = 0x1000, scoped, tag = 'output window, operand 0, single buffered']
    #allocation3 [shape = 's32[1]{0}', space=sflag, size = 0x4, scoped, tag = 'scoped memory for tpu_custom_call.1']
    %7 = vsyncpa [#allocation3], 0
    // Predicated region
    $region2: #{tpu_custom_call.1} parent=1 // pred_check
      _
    $region3: #{tpu_custom_call.1} parent=1 // pred_check_branch
      %9 = sbr.rel (0) target = $region5
    $region4: #{tpu_custom_call.1} parent=1 // pred_region
      _
    $region5: #{tpu_custom_call.1} parent=1 // pred_fallthru
      _
    // Predicated region
    $region6: #{tpu_custom_call.1} parent=1 // pred_check
      _
    $region7: #{tpu_custom_call.1} parent=1 // pred_check_branch
      %11 = sbr.rel (0) target = $region9
    $region8: #{tpu_custom_call.1} parent=1 // pred_region
      _
    $region9: #{tpu_custom_call.1} parent=1 // pred_fallthru
      _
    %v12 = vld [vmem:[%s0] sm:$0xff]
    %vm13 = vcmask 64512
    %v14 = vsel %vm13, %v12, 0.0
    %15 = vadd.xlane.f32.xlu0 %v14
    %v16 = vpop.xlane.xlu0 %15
    %v17 = vrcp.pop 8.0
    %v18 = vmul.f32 %v16, %v17
    %v19 = vsub.f32 %v12, %v18
    %v20 = vmul.f32 %v19, %v19
    %v21 = vsel %vm13, %v20, 0.0
    %22 = vadd.xlane.f32.xlu0 %v21
    %v23 = vpop.xlane.xlu0 %22
    %v24 = vmul.f32 %v23, %v17
    %v25 = vadd.f32 %v24, 1e-05
    %v26 = vrsqrt.pop %v25
    %v27 = vmul.f32 %v19, %v26
    %v28 = vld [vmem:[%s1] sm:$0xff]
    %v29 = vld [vmem:[%s1 + $0x8] sm:$0x1]
    %v30 = vlaneseq
    %v31 = vshrl.u32 %v30, 7
    %v32 = vsub.s32 0, %v31
    %v33 = vrot.slane %v29, %v32
    %v35 = vsel %vm13, %v27, 0
    %37 = vmatprep.subr.mxu0 0.0
    %38 = vmatpush1.msra.mxu0 0.0
    %39 = vmatprep.subr.mxu0 0.0
    %40 = vmatpush1.msra.mxu0 0.0
    %41 = vmatprep.subr.mxu0 0.0
    %42 = vmatpush1.msra.mxu0 0.0
    %43 = vmatprep.subr.mxu0 0.0
    %44 = vmatpush1.msra.mxu0 0.0
    %45 = vmatprep.subr.mxu0 0.0
    %46 = vmatpush1.msra.mxu0 0.0
    %47 = vmatprep.subr.mxu0 0.0
    %48 = vmatpush1.msra.mxu0 0.0
    %49 = vmatprep.subr.mxu0 0.0
    %50 = vmatpush1.msra.mxu0 0.0
    %51 = vmatprep.subr.mxu0 0.0
    %52 = vmatpush1.msra.mxu0 0.0
    %53 = vmatprep.subr.mxu0 0.0
    %54 = vmatpush1.msra.mxu0 0.0
    %55 = vmatprep.subr.mxu0 0.0
    %56 = vmatpush1.msra.mxu0 0.0
    %57 = vmatprep.subr.mxu0 0.0
    %58 = vmatpush1.msra.mxu0 0.0
    %59 = vmatprep.subr.mxu0 0.0
    %60 = vmatpush1.msra.mxu0 0.0
    %61 = vmatprep.subr.mxu0 0.0
    %62 = vmatpush1.msra.mxu0 0.0
    %63 = vmatprep.subr.mxu0 0.0
    %64 = vmatpush1.msra.mxu0 0.0
    %65 = vmatprep.subr.mxu0 0.0
    %66 = vmatpush1.msra.mxu0 0.0
    %67 = vmatprep.subr.mxu0 0.0
    %68 = vmatpush1.msra.mxu0 %v28
    %69 = vmatprep.subr.mxu0 0.0
    %70 = vmatpush2.msra.mxu0 0.0
    %71 = vmatprep.subr.mxu0 0.0
    %72 = vmatpush2.msra.mxu0 0.0
    %73 = vmatprep.subr.mxu0 0.0
    %74 = vmatpush2.msra.mxu0 0.0
    %75 = vmatprep.subr.mxu0 0.0
    %76 = vmatpush2.msra.mxu0 0.0
    %77 = vmatprep.subr.mxu0 0.0
    %78 = vmatpush2.msra.mxu0 0.0
    %79 = vmatprep.subr.mxu0 0.0
    %80 = vmatpush2.msra.mxu0 0.0
    %81 = vmatprep.subr.mxu0 0.0
    %82 = vmatpush2.msra.mxu0 0.0
    %83 = vmatprep.subr.mxu0 0.0
    %84 = vmatpush2.msra.mxu0 0.0
    %85 = vmatprep.subr.mxu0 0.0
    %86 = vmatpush2.msra.mxu0 0.0
    %87 = vmatprep.subr.mxu0 0.0
    %88 = vmatpush2.msra.mxu0 0.0
    %89 = vmatprep.subr.mxu0 0.0
    %90 = vmatpush2.msra.mxu0 0.0
    %91 = vmatprep.subr.mxu0 0.0
    %92 = vmatpush2.msra.mxu0 0.0
    %93 = vmatprep.subr.mxu0 0.0
    %94 = vmatpush2.msra.mxu0 0.0
    %95 = vmatprep.subr.mxu0 0.0
    %96 = vmatpush2.msra.mxu0 0.0
    %97 = vmatprep.subr.mxu0 0.0
    %98 = vmatpush2.msra.mxu0 0.0
    %99 = vmatprep.subr.mxu0 0.0
    %100 = vmatpush2.msra.mxu0 0.0
    %101 = vmatprep.mubr.f32.mxu0 0.0
    %102 = vmatmul.mubr.f32.gmra.mxu0 %v35
    %v103 = vpop.f32.mrf.mxu0
    %v104 = vadd.f32 %v33, %v103
    %v105 = vpop.f32.mrf.mxu0
    %106 = vdwg.mxu0
    %v107 = vld [vmem:[%s1 + $0x10] sm:$0xff]
    %v108 = vld [vmem:[%s1 + $0x18] sm:$0xff]
    %v109 = vld [vmem:[%s1 + $0x20] sm:$0xff]
    %v110 = vld [vmem:[%s1 + $0x28] sm:$0xff]
    %v111 = vld [vmem:[%s1 + $0x30] sm:$0xff]
    %v112 = vld [vmem:[%s1 + $0x38] sm:$0x1]
    %v113 = vlaneseq
    %v114 = vshrl.u32 %v113, 7
    %v115 = vsub.s32 0, %v114
    %v116 = vrot.slane %v112, %v115
    %vm117 = vcmask 261120
    %v119 = vsel %vm117, %v104, 0
    %121 = vmatprep.subr.mxu0 0.0
    %122 = vmatpush1.msra.mxu0 0.0
    %123 = vmatprep.subr.mxu0 0.0
    %124 = vmatpush1.msra.mxu0 0.0
    %125 = vmatprep.subr.mxu0 0.0
    %126 = vmatpush1.msra.mxu0 0.0
    %127 = vmatprep.subr.mxu0 0.0
    %128 = vmatpush1.msra.mxu0 0.0
    %129 = vmatprep.subr.mxu0 0.0
    %130 = vmatpush1.msra.mxu0 0.0
    %131 = vmatprep.subr.mxu0 0.0
    %132 = vmatpush1.msra.mxu0 0.0
    %133 = vmatprep.subr.mxu0 0.0
    %134 = vmatpush1.msra.mxu0 0.0
    %135 = vmatprep.subr.mxu0 0.0
    %136 = vmatpush1.msra.mxu0 0.0
    %137 = vmatprep.subr.mxu0 0.0
    %138 = vmatpush1.msra.mxu0 0.0
    %139 = vmatprep.subr.mxu0 0.0
    %140 = vmatpush1.msra.mxu0 0.0
    %141 = vmatprep.subr.mxu0 0.0
    %142 = vmatpush1.msra.mxu0 0.0
    %143 = vmatprep.subr.mxu0 0.0
    %144 = vmatpush1.msra.mxu0 0.0
    %145 = vmatprep.subr.mxu0 0.0
    %146 = vmatpush1.msra.mxu0 %v111
    %147 = vmatprep.subr.mxu0 0.0
    %148 = vmatpush1.msra.mxu0 %v110
    %149 = vmatprep.subr.mxu0 0.0
    %150 = vmatpush1.msra.mxu0 %v109
    %151 = vmatprep.subr.mxu0 0.0
    %152 = vmatpush1.msra.mxu0 %v108
    %153 = vmatprep.subr.mxu0 0.0
    %154 = vmatpush2.msra.mxu0 0.0
    %155 = vmatprep.subr.mxu0 0.0
    %156 = vmatpush2.msra.mxu0 0.0
    %157 = vmatprep.subr.mxu0 0.0
    %158 = vmatpush2.msra.mxu0 0.0
    %159 = vmatprep.subr.mxu0 0.0
    %160 = vmatpush2.msra.mxu0 0.0
    %161 = vmatprep.subr.mxu0 0.0
    %162 = vmatpush2.msra.mxu0 0.0
    %163 = vmatprep.subr.mxu0 0.0
    %164 = vmatpush2.msra.mxu0 0.0
    %165 = vmatprep.subr.mxu0 0.0
    %166 = vmatpush2.msra.mxu0 0.0
    %167 = vmatprep.subr.mxu0 0.0
    %168 = vmatpush2.msra.mxu0 0.0
    %169 = vmatprep.subr.mxu0 0.0
    %170 = vmatpush2.msra.mxu0 0.0
    %171 = vmatprep.subr.mxu0 0.0
    %172 = vmatpush2.msra.mxu0 0.0
    %173 = vmatprep.subr.mxu0 0.0
    %174 = vmatpush2.msra.mxu0 0.0
    %175 = vmatprep.subr.mxu0 0.0
    %176 = vmatpush2.msra.mxu0 0.0
    %177 = vmatprep.subr.mxu0 0.0
    %178 = vmatpush2.msra.mxu0 0.0
    %179 = vmatprep.subr.mxu0 0.0
    %180 = vmatpush2.msra.mxu0 0.0
    %181 = vmatprep.subr.mxu0 0.0
    %182 = vmatpush2.msra.mxu0 0.0
    %183 = vmatprep.subr.mxu0 0.0
    %184 = vmatpush2.msra.mxu0 0.0
    %185 = vmatprep.mubr.f32.mxu0 0.0
    %186 = vmatmul.mubr.f32.gmra.mxu0 %v119
    %v187 = vpop.f32.mrf.mxu0
    %v188 = vadd.f32 %v116, %v187
    %v189 = vpop.f32.mrf.mxu0
    %190 = vdwg.mxu0
    %v191 = vld [vmem:[%s1 + $0x40] sm:$0xff]
    %v192 = vld [vmem:[%s1 + $0x48] sm:$0xff]
    %v193 = vld [vmem:[%s1 + $0x50] sm:$0xff]
    %v194 = vld [vmem:[%s1 + $0x58] sm:$0xff]
    %v195 = vld [vmem:[%s1 + $0x60] sm:$0x1]
    %v196 = vlaneseq
    %v197 = vshrl.u32 %v196, 7
    %v198 = vsub.s32 0, %v197
    %v199 = vrot.slane %v195, %v198
    %200 = vmatprep.subr.mxu0 0.0
    %201 = vmatpush1.msra.mxu0 0.0
    %202 = vmatprep.subr.mxu0 0.0
    %203 = vmatpush1.msra.mxu0 0.0
    %204 = vmatprep.subr.mxu0 0.0
    %205 = vmatpush1.msra.mxu0 0.0
    %206 = vmatprep.subr.mxu0 0.0
    %207 = vmatpush1.msra.mxu0 0.0
    %208 = vmatprep.subr.mxu0 0.0
    %209 = vmatpush1.msra.mxu0 0.0
    %210 = vmatprep.subr.mxu0 0.0
    %211 = vmatpush1.msra.mxu0 0.0
    %212 = vmatprep.subr.mxu0 0.0
    %213 = vmatpush1.msra.mxu0 0.0
    %214 = vmatprep.subr.mxu0 0.0
    %215 = vmatpush1.msra.mxu0 0.0
    %216 = vmatprep.subr.mxu0 0.0
    %217 = vmatpush1.msra.mxu0 0.0
    %218 = vmatprep.subr.mxu0 0.0
    %219 = vmatpush1.msra.mxu0 0.0
    %220 = vmatprep.subr.mxu0 0.0
    %221 = vmatpush1.msra.mxu0 0.0
    %222 = vmatprep.subr.mxu0 0.0
    %223 = vmatpush1.msra.mxu0 0.0
    %224 = vmatprep.subr.mxu0 0.0
    %225 = vmatpush1.msra.mxu0 %v194
    %226 = vmatprep.subr.mxu0 0.0
    %227 = vmatpush1.msra.mxu0 %v193
    %228 = vmatprep.subr.mxu0 0.0
    %229 = vmatpush1.msra.mxu0 %v192
    %230 = vmatprep.subr.mxu0 0.0
    %231 = vmatpush1.msra.mxu0 %v191
    %232 = vmatprep.subr.mxu0 0.0
    %233 = vmatpush2.msra.mxu0 0.0
    %234 = vmatprep.subr.mxu0 0.0
    %235 = vmatpush2.msra.mxu0 0.0
    %236 = vmatprep.subr.mxu0 0.0
    %237 = vmatpush2.msra.mxu0 0.0
    %238 = vmatprep.subr.mxu0 0.0
    %239 = vmatpush2.msra.mxu0 0.0
    %240 = vmatprep.subr.mxu0 0.0
    %241 = vmatpush2.msra.mxu0 0.0
    %242 = vmatprep.subr.mxu0 0.0
    %243 = vmatpush2.msra.mxu0 0.0
    %244 = vmatprep.subr.mxu0 0.0
    %245 = vmatpush2.msra.mxu0 0.0
    %246 = vmatprep.subr.mxu0 0.0
    %247 = vmatpush2.msra.mxu0 0.0
    %248 = vmatprep.subr.mxu0 0.0
    %249 = vmatpush2.msra.mxu0 0.0
    %250 = vmatprep.subr.mxu0 0.0
    %251 = vmatpush2.msra.mxu0 0.0
    %252 = vmatprep.subr.mxu0 0.0
    %253 = vmatpush2.msra.mxu0 0.0
    %254 = vmatprep.subr.mxu0 0.0
    %255 = vmatpush2.msra.mxu0 0.0
    %256 = vmatprep.subr.mxu0 0.0
    %257 = vmatpush2.msra.mxu0 0.0
    %258 = vmatprep.subr.mxu0 0.0
    %259 = vmatpush2.msra.mxu0 0.0
    %260 = vmatprep.subr.mxu0 0.0
    %261 = vmatpush2.msra.mxu0 0.0
    %262 = vmatprep.subr.mxu0 0.0
    %263 = vmatpush2.msra.mxu0 0.0
    %264 = vmatprep.mubr.f32.mxu0 0.0
    %265 = vmatmul.mubr.f32.gmra.mxu0 %v119
    %v266 = vpop.f32.mrf.mxu0
    %v267 = vadd.f32 %v199, %v266
    %v268 = vpop.f32.mrf.mxu0
    %269 = vdwg.mxu0
    %v270 = vld [vmem:[%s1 + $0x68] sm:$0xff]
    %v271 = vld [vmem:[%s1 + $0x70] sm:$0xff]
    %v272 = vld [vmem:[%s1 + $0x78] sm:$0xff]
    %v273 = vld [vmem:[%s1 + $0x80] sm:$0xff]
    %v274 = vld [vmem:[%s1 + $0x88] sm:$0x1]
    %v275 = vlaneseq
    %v276 = vshrl.u32 %v275, 7
    %v277 = vsub.s32 0, %v276
    %v278 = vrot.slane %v274, %v277
    %279 = vmatprep.subr.mxu0 0.0
    %280 = vmatpush1.msra.mxu0 0.0
    %281 = vmatprep.subr.mxu0 0.0
    %282 = vmatpush1.msra.mxu0 0.0
    %283 = vmatprep.subr.mxu0 0.0
    %284 = vmatpush1.msra.mxu0 0.0
    %285 = vmatprep.subr.mxu0 0.0
    %286 = vmatpush1.msra.mxu0 0.0
    %287 = vmatprep.subr.mxu0 0.0
    %288 = vmatpush1.msra.mxu0 0.0
    %289 = vmatprep.subr.mxu0 0.0
    %290 = vmatpush1.msra.mxu0 0.0
    %291 = vmatprep.subr.mxu0 0.0
    %292 = vmatpush1.msra.mxu0 0.0
    %293 = vmatprep.subr.mxu0 0.0
    %294 = vmatpush1.msra.mxu0 0.0
    %295 = vmatprep.subr.mxu0 0.0
    %296 = vmatpush1.msra.mxu0 0.0
    %297 = vmatprep.subr.mxu0 0.0
    %298 = vmatpush1.msra.mxu0 0.0
    %299 = vmatprep.subr.mxu0 0.0
    %300 = vmatpush1.msra.mxu0 0.0
    %301 = vmatprep.subr.mxu0 0.0
    %302 = vmatpush1.msra.mxu0 0.0
    %303 = vmatprep.subr.mxu0 0.0
    %304 = vmatpush1.msra.mxu0 %v273
    %305 = vmatprep.subr.mxu0 0.0
    %306 = vmatpush1.msra.mxu0 %v272
    %307 = vmatprep.subr.mxu0 0.0
    %308 = vmatpush1.msra.mxu0 %v271
    %309 = vmatprep.subr.mxu0 0.0
    %310 = vmatpush1.msra.mxu0 %v270
    %311 = vmatprep.subr.mxu0 0.0
    %312 = vmatpush2.msra.mxu0 0.0
    %313 = vmatprep.subr.mxu0 0.0
    %314 = vmatpush2.msra.mxu0 0.0
    %315 = vmatprep.subr.mxu0 0.0
    %316 = vmatpush2.msra.mxu0 0.0
    %317 = vmatprep.subr.mxu0 0.0
    %318 = vmatpush2.msra.mxu0 0.0
    %319 = vmatprep.subr.mxu0 0.0
    %320 = vmatpush2.msra.mxu0 0.0
    %321 = vmatprep.subr.mxu0 0.0
    %322 = vmatpush2.msra.mxu0 0.0
    %323 = vmatprep.subr.mxu0 0.0
    %324 = vmatpush2.msra.mxu0 0.0
    %325 = vmatprep.subr.mxu0 0.0
    %326 = vmatpush2.msra.mxu0 0.0
    %327 = vmatprep.subr.mxu0 0.0
    %328 = vmatpush2.msra.mxu0 0.0
    %329 = vmatprep.subr.mxu0 0.0
    %330 = vmatpush2.msra.mxu0 0.0
    %331 = vmatprep.subr.mxu0 0.0
    %332 = vmatpush2.msra.mxu0 0.0
    %333 = vmatprep.subr.mxu0 0.0
    %334 = vmatpush2.msra.mxu0 0.0
    %335 = vmatprep.subr.mxu0 0.0
    %336 = vmatpush2.msra.mxu0 0.0
    %337 = vmatprep.subr.mxu0 0.0
    %338 = vmatpush2.msra.mxu0 0.0
    %339 = vmatprep.subr.mxu0 0.0
    %340 = vmatpush2.msra.mxu0 0.0
    %341 = vmatprep.subr.mxu0 0.0
    %342 = vmatpush2.msra.mxu0 0.0
    %343 = vmatprep.mubr.f32.mxu0 0.0
    %344 = vmatmul.mubr.f32.gmra.mxu0 %v119
    %v345 = vpop.f32.mrf.mxu0
    %v346 = vadd.f32 %v278, %v345
    %v347 = vpop.f32.mrf.mxu0
    %348 = vdwg.mxu0
    %v350 = vsel %vm117, %v188, 0
    %v353 = vsel %vm117, %v267, 0
    %355 = vmatprep.subr.mxu0 0.0
    %356 = vmatpush1.xpose.msra.mxu0 0.0
    %357 = vmatprep.subr.mxu0 0.0
    %358 = vmatpush1.xpose.msra.mxu0 0.0
    %359 = vmatprep.subr.mxu0 0.0
    %360 = vmatpush1.xpose.msra.mxu0 0.0
    %361 = vmatprep.subr.mxu0 0.0
    %362 = vmatpush1.xpose.msra.mxu0 0.0
    %363 = vmatprep.subr.mxu0 0.0
    %364 = vmatpush1.xpose.msra.mxu0 0.0
    %365 = vmatprep.subr.mxu0 0.0
    %366 = vmatpush1.xpose.msra.mxu0 0.0
    %367 = vmatprep.subr.mxu0 0.0
    %368 = vmatpush1.xpose.msra.mxu0 0.0
    %369 = vmatprep.subr.mxu0 0.0
    %370 = vmatpush1.xpose.msra.mxu0 0.0
    %371 = vmatprep.subr.mxu0 0.0
    %372 = vmatpush1.xpose.msra.mxu0 0.0
    %373 = vmatprep.subr.mxu0 0.0
    %374 = vmatpush1.xpose.msra.mxu0 0.0
    %375 = vmatprep.subr.mxu0 0.0
    %376 = vmatpush1.xpose.msra.mxu0 0.0
    %377 = vmatprep.subr.mxu0 0.0
    %378 = vmatpush1.xpose.msra.mxu0 0.0
    %379 = vmatprep.subr.mxu0 0.0
    %380 = vmatpush1.xpose.msra.mxu0 0.0
    %381 = vmatprep.subr.mxu0 0.0
    %382 = vmatpush1.xpose.msra.mxu0 0.0
    %383 = vmatprep.subr.mxu0 0.0
    %384 = vmatpush1.xpose.msra.mxu0 0.0
    %385 = vmatprep.subr.mxu0 0.0
    %386 = vmatpush1.xpose.msra.mxu0 %v353
    %387 = vmatprep.subr.mxu0 0.0
    %388 = vmatpush2.xpose.msra.mxu0 0.0
    %389 = vmatprep.subr.mxu0 0.0
    %390 = vmatpush2.xpose.msra.mxu0 0.0
    %391 = vmatprep.subr.mxu0 0.0
    %392 = vmatpush2.xpose.msra.mxu0 0.0
    %393 = vmatprep.subr.mxu0 0.0
    %394 = vmatpush2.xpose.msra.mxu0 0.0
    %395 = vmatprep.subr.mxu0 0.0
    %396 = vmatpush2.xpose.msra.mxu0 0.0
    %397 = vmatprep.subr.mxu0 0.0
    %398 = vmatpush2.xpose.msra.mxu0 0.0
    %399 = vmatprep.subr.mxu0 0.0
    %400 = vmatpush2.xpose.msra.mxu0 0.0
    %401 = vmatprep.subr.mxu0 0.0
    %402 = vmatpush2.xpose.msra.mxu0 0.0
    %403 = vmatprep.subr.mxu0 0.0
    %404 = vmatpush2.xpose.msra.mxu0 0.0
    %405 = vmatprep.subr.mxu0 0.0
    %406 = vmatpush2.xpose.msra.mxu0 0.0
    %407 = vmatprep.subr.mxu0 0.0
    %408 = vmatpush2.xpose.msra.mxu0 0.0
    %409 = vmatprep.subr.mxu0 0.0
    %410 = vmatpush2.xpose.msra.mxu0 0.0
    %411 = vmatprep.subr.mxu0 0.0
    %412 = vmatpush2.xpose.msra.mxu0 0.0
    %413 = vmatprep.subr.mxu0 0.0
    %414 = vmatpush2.xpose.msra.mxu0 0.0
    %415 = vmatprep.subr.mxu0 0.0
    %416 = vmatpush2.xpose.msra.mxu0 0.0
    %417 = vmatprep.subr.mxu0 0.0
    %418 = vmatpush2.xpose.msra.mxu0 0.0
    %419 = vmatprep.mubr.f32.mxu0 0.0
    %420 = vmatmul.mubr.f32.gmra.mxu0 %v350
    %v421 = vpop.f32.mrf.mxu0
    %v422 = vadd.f32 %v107, %v421
    %v423 = vpop.f32.mrf.mxu0
    %424 = vdwg.mxu0
    %v425 = vsel %vm13, %v422, -inf
    %426 = vmax.xlane.f32.xlu0 %v425
    %v427 = vpop.xlane.xlu0 %426
    %v428 = vsub.f32 %v422, %v427
    %v429 = vmul.f32 %v428, 1.442695
    %v430 = vpow.pop %v429
    %v431 = vsel %vm13, %v430, 0.0
    %432 = vadd.xlane.f32.xlu0 %v431
    %v433 = vpop.xlane.xlu0 %432
    %v434 = vrcp.pop %v433
    %v435 = vmul.f32 %v430, %v434
    %v437 = vsel %vm13, %v435, 0
    %439 = vmatprep.subr.mxu0 0.0
    %440 = vmatpush1.msra.mxu0 0.0
    %441 = vmatprep.subr.mxu0 0.0
    %442 = vmatpush1.msra.mxu0 0.0
    %443 = vmatprep.subr.mxu0 0.0
    %444 = vmatpush1.msra.mxu0 0.0
    %445 = vmatprep.subr.mxu0 0.0
    %446 = vmatpush1.msra.mxu0 0.0
    %447 = vmatprep.subr.mxu0 0.0
    %448 = vmatpush1.msra.mxu0 0.0
    %449 = vmatprep.subr.mxu0 0.0
    %450 = vmatpush1.msra.mxu0 0.0
    %451 = vmatprep.subr.mxu0 0.0
    %452 = vmatpush1.msra.mxu0 0.0
    %453 = vmatprep.subr.mxu0 0.0
    %454 = vmatpush1.msra.mxu0 0.0
    %455 = vmatprep.subr.mxu0 0.0
    %456 = vmatpush1.msra.mxu0 0.0
    %457 = vmatprep.subr.mxu0 0.0
    %458 = vmatpush1.msra.mxu0 0.0
    %459 = vmatprep.subr.mxu0 0.0
    %460 = vmatpush1.msra.mxu0 0.0
    %461 = vmatprep.subr.mxu0 0.0
    %462 = vmatpush1.msra.mxu0 0.0
    %463 = vmatprep.subr.mxu0 0.0
    %464 = vmatpush1.msra.mxu0 0.0
    %465 = vmatprep.subr.mxu0 0.0
    %466 = vmatpush1.msra.mxu0 0.0
    %467 = vmatprep.subr.mxu0 0.0
    %468 = vmatpush1.msra.mxu0 0.0
    %469 = vmatprep.subr.mxu0 0.0
    %470 = vmatpush1.msra.mxu0 %v346
    %471 = vmatprep.subr.mxu0 0.0
    %472 = vmatpush2.msra.mxu0 0.0
    %473 = vmatprep.subr.mxu0 0.0
    %474 = vmatpush2.msra.mxu0 0.0
    %475 = vmatprep.subr.mxu0 0.0
    %476 = vmatpush2.msra.mxu0 0.0
    %477 = vmatprep.subr.mxu0 0.0
    %478 = vmatpush2.msra.mxu0 0.0
    %479 = vmatprep.subr.mxu0 0.0
    %480 = vmatpush2.msra.mxu0 0.0
    %481 = vmatprep.subr.mxu0 0.0
    %482 = vmatpush2.msra.mxu0 0.0
    %483 = vmatprep.subr.mxu0 0.0
    %484 = vmatpush2.msra.mxu0 0.0
    %485 = vmatprep.subr.mxu0 0.0
    %486 = vmatpush2.msra.mxu0 0.0
    %487 = vmatprep.subr.mxu0 0.0
    %488 = vmatpush2.msra.mxu0 0.0
    %489 = vmatprep.subr.mxu0 0.0
    %490 = vmatpush2.msra.mxu0 0.0
    %491 = vmatprep.subr.mxu0 0.0
    %492 = vmatpush2.msra.mxu0 0.0
    %493 = vmatprep.subr.mxu0 0.0
    %494 = vmatpush2.msra.mxu0 0.0
    %495 = vmatprep.subr.mxu0 0.0
    %496 = vmatpush2.msra.mxu0 0.0
    %497 = vmatprep.subr.mxu0 0.0
    %498 = vmatpush2.msra.mxu0 0.0
    %499 = vmatprep.subr.mxu0 0.0
    %500 = vmatpush2.msra.mxu0 0.0
    %501 = vmatprep.subr.mxu0 0.0
    %502 = vmatpush2.msra.mxu0 0.0
    %503 = vmatprep.mubr.f32.mxu0 0.0
    %504 = vmatmul.mubr.f32.gmra.mxu0 %v437
    %v505 = vpop.f32.mrf.mxu0
    %v506 = vadd.f32 0.0, %v505
    %v507 = vpop.f32.mrf.mxu0
    %508 = vdwg.mxu0
    %v509 = vld [vmem:[%s1 + $0x90] sm:$0xff]
    %v510 = vld [vmem:[%s1 + $0x98] sm:$0xff]
    %v511 = vld [vmem:[%s1 + $0xa0] sm:$0xff]
    %v512 = vld [vmem:[%s1 + $0xa8] sm:$0xff]
    %v513 = vld [vmem:[%s1 + $0xb0] sm:$0xff]
    %v514 = vld [vmem:[%s1 + $0xb8] sm:$0xff]
    %v515 = vld [vmem:[%s1 + $0xc0] sm:$0xff]
    %v516 = vld [vmem:[%s1 + $0xc8] sm:$0xff]
    %v517 = vld [vmem:[%s1 + $0xd0] sm:$0x1]
    %v518 = vlaneseq
    %v519 = vshrl.u32 %v518, 7
    %v520 = vsub.s32 0, %v519
    %v521 = vrot.slane %v517, %v520
    %522 = vmatprep.subr.mxu0 0.0
    %523 = vmatpush1.msra.mxu0 0.0
    %524 = vmatprep.subr.mxu0 0.0
    %525 = vmatpush1.msra.mxu0 0.0
    %526 = vmatprep.subr.mxu0 0.0
    %527 = vmatpush1.msra.mxu0 0.0
    %528 = vmatprep.subr.mxu0 0.0
    %529 = vmatpush1.msra.mxu0 0.0
    %530 = vmatprep.subr.mxu0 0.0
    %531 = vmatpush1.msra.mxu0 0.0
    %532 = vmatprep.subr.mxu0 0.0
    %533 = vmatpush1.msra.mxu0 0.0
    %534 = vmatprep.subr.mxu0 0.0
    %535 = vmatpush1.msra.mxu0 0.0
    %536 = vmatprep.subr.mxu0 0.0
    %537 = vmatpush1.msra.mxu0 0.0
    %538 = vmatprep.subr.mxu0 0.0
    %539 = vmatpush1.msra.mxu0 0.0
    %540 = vmatprep.subr.mxu0 0.0
    %541 = vmatpush1.msra.mxu0 0.0
    %542 = vmatprep.subr.mxu0 0.0
    %543 = vmatpush1.msra.mxu0 0.0
    %544 = vmatprep.subr.mxu0 0.0
    %545 = vmatpush1.msra.mxu0 0.0
    %546 = vmatprep.subr.mxu0 0.0
    %547 = vmatpush1.msra.mxu0 %v516
    %548 = vmatprep.subr.mxu0 0.0
    %549 = vmatpush1.msra.mxu0 %v515
    %550 = vmatprep.subr.mxu0 0.0
    %551 = vmatpush1.msra.mxu0 %v514
    %552 = vmatprep.subr.mxu0 0.0
    %553 = vmatpush1.msra.mxu0 %v513
    %554 = vmatprep.subr.mxu0 0.0
    %555 = vmatpush2.msra.mxu0 0.0
    %556 = vmatprep.subr.mxu0 0.0
    %557 = vmatpush2.msra.mxu0 0.0
    %558 = vmatprep.subr.mxu0 0.0
    %559 = vmatpush2.msra.mxu0 0.0
    %560 = vmatprep.subr.mxu0 0.0
    %561 = vmatpush2.msra.mxu0 0.0
    %562 = vmatprep.subr.mxu0 0.0
    %563 = vmatpush2.msra.mxu0 0.0
    %564 = vmatprep.subr.mxu0 0.0
    %565 = vmatpush2.msra.mxu0 0.0
    %566 = vmatprep.subr.mxu0 0.0
    %567 = vmatpush2.msra.mxu0 0.0
    %568 = vmatprep.subr.mxu0 0.0
    %569 = vmatpush2.msra.mxu0 0.0
    %570 = vmatprep.subr.mxu0 0.0
    %571 = vmatpush2.msra.mxu0 0.0
    %572 = vmatprep.subr.mxu0 0.0
    %573 = vmatpush2.msra.mxu0 0.0
    %574 = vmatprep.subr.mxu0 0.0
    %575 = vmatpush2.msra.mxu0 0.0
    %576 = vmatprep.subr.mxu0 0.0
    %577 = vmatpush2.msra.mxu0 0.0
    %578 = vmatprep.subr.mxu0 0.0
    %579 = vmatpush2.msra.mxu0 0.0
    %580 = vmatprep.subr.mxu0 0.0
    %581 = vmatpush2.msra.mxu0 0.0
    %582 = vmatprep.subr.mxu0 0.0
    %583 = vmatpush2.msra.mxu0 0.0
    %584 = vmatprep.subr.mxu0 0.0
    %585 = vmatpush2.msra.mxu0 0.0
    %586 = vmatprep.mubr.f32.mxu0 0.0
    %587 = vmatmul.mubr.f32.gmra.mxu0 %v119
    %v588 = vpop.f32.mrf.mxu0
    %v589 = vadd.f32 %v521, %v588
    %v590 = vpop.f32.mrf.mxu0
    %591 = vdwg.mxu0
    %v592 = vld [vmem:[%s1 + $0xd8] sm:$0xff]
    %v593 = vld [vmem:[%s1 + $0xe0] sm:$0xff]
    %v594 = vld [vmem:[%s1 + $0xe8] sm:$0xff]
    %v595 = vld [vmem:[%s1 + $0xf0] sm:$0xff]
    %v596 = vld [vmem:[%s1 + $0xf8] sm:$0x1]
    %v597 = vlaneseq
    %v598 = vshrl.u32 %v597, 7
    %v599 = vsub.s32 0, %v598
    %v600 = vrot.slane %v596, %v599
    %601 = vmatprep.subr.mxu0 0.0
    %602 = vmatpush1.msra.mxu0 0.0
    %603 = vmatprep.subr.mxu0 0.0
    %604 = vmatpush1.msra.mxu0 0.0
    %605 = vmatprep.subr.mxu0 0.0
    %606 = vmatpush1.msra.mxu0 0.0
    %607 = vmatprep.subr.mxu0 0.0
    %608 = vmatpush1.msra.mxu0 0.0
    %609 = vmatprep.subr.mxu0 0.0
    %610 = vmatpush1.msra.mxu0 0.0
    %611 = vmatprep.subr.mxu0 0.0
    %612 = vmatpush1.msra.mxu0 0.0
    %613 = vmatprep.subr.mxu0 0.0
    %614 = vmatpush1.msra.mxu0 0.0
    %615 = vmatprep.subr.mxu0 0.0
    %616 = vmatpush1.msra.mxu0 0.0
    %617 = vmatprep.subr.mxu0 0.0
    %618 = vmatpush1.msra.mxu0 0.0
    %619 = vmatprep.subr.mxu0 0.0
    %620 = vmatpush1.msra.mxu0 0.0
    %621 = vmatprep.subr.mxu0 0.0
    %622 = vmatpush1.msra.mxu0 0.0
    %623 = vmatprep.subr.mxu0 0.0
    %624 = vmatpush1.msra.mxu0 0.0
    %625 = vmatprep.subr.mxu0 0.0
    %626 = vmatpush1.msra.mxu0 %v595
    %627 = vmatprep.subr.mxu0 0.0
    %628 = vmatpush1.msra.mxu0 %v594
    %629 = vmatprep.subr.mxu0 0.0
    %630 = vmatpush1.msra.mxu0 %v593
    %631 = vmatprep.subr.mxu0 0.0
    %632 = vmatpush1.msra.mxu0 %v592
    %633 = vmatprep.subr.mxu0 0.0
    %634 = vmatpush2.msra.mxu0 0.0
    %635 = vmatprep.subr.mxu0 0.0
    %636 = vmatpush2.msra.mxu0 0.0
    %637 = vmatprep.subr.mxu0 0.0
    %638 = vmatpush2.msra.mxu0 0.0
    %639 = vmatprep.subr.mxu0 0.0
    %640 = vmatpush2.msra.mxu0 0.0
    %641 = vmatprep.subr.mxu0 0.0
    %642 = vmatpush2.msra.mxu0 0.0
    %643 = vmatprep.subr.mxu0 0.0
    %644 = vmatpush2.msra.mxu0 0.0
    %645 = vmatprep.subr.mxu0 0.0
    %646 = vmatpush2.msra.mxu0 0.0
    %647 = vmatprep.subr.mxu0 0.0
    %648 = vmatpush2.msra.mxu0 0.0
    %649 = vmatprep.subr.mxu0 0.0
    %650 = vmatpush2.msra.mxu0 0.0
    %651 = vmatprep.subr.mxu0 0.0
    %652 = vmatpush2.msra.mxu0 0.0
    %653 = vmatprep.subr.mxu0 0.0
    %654 = vmatpush2.msra.mxu0 0.0
    %655 = vmatprep.subr.mxu0 0.0
    %656 = vmatpush2.msra.mxu0 0.0
    %657 = vmatprep.subr.mxu0 0.0
    %658 = vmatpush2.msra.mxu0 0.0
    %659 = vmatprep.subr.mxu0 0.0
    %660 = vmatpush2.msra.mxu0 0.0
    %661 = vmatprep.subr.mxu0 0.0
    %662 = vmatpush2.msra.mxu0 0.0
    %663 = vmatprep.subr.mxu0 0.0
    %664 = vmatpush2.msra.mxu0 0.0
    %665 = vmatprep.mubr.f32.mxu0 0.0
    %666 = vmatmul.mubr.f32.gmra.mxu0 %v119
    %v667 = vpop.f32.mrf.mxu0
    %v668 = vadd.f32 %v600, %v667
    %v669 = vpop.f32.mrf.mxu0
    %670 = vdwg.mxu0
    %v671 = vld [vmem:[%s1 + $0x100] sm:$0xff]
    %v672 = vld [vmem:[%s1 + $0x108] sm:$0xff]
    %v673 = vld [vmem:[%s1 + $0x110] sm:$0xff]
    %v674 = vld [vmem:[%s1 + $0x118] sm:$0xff]
    %v675 = vld [vmem:[%s1 + $0x120] sm:$0x1]
    %v676 = vlaneseq
    %v677 = vshrl.u32 %v676, 7
    %v678 = vsub.s32 0, %v677
    %v679 = vrot.slane %v675, %v678
    %680 = vmatprep.subr.mxu0 0.0
    %681 = vmatpush1.msra.mxu0 0.0
    %682 = vmatprep.subr.mxu0 0.0
    %683 = vmatpush1.msra.mxu0 0.0
    %684 = vmatprep.subr.mxu0 0.0
    %685 = vmatpush1.msra.mxu0 0.0
    %686 = vmatprep.subr.mxu0 0.0
    %687 = vmatpush1.msra.mxu0 0.0
    %688 = vmatprep.subr.mxu0 0.0
    %689 = vmatpush1.msra.mxu0 0.0
    %690 = vmatprep.subr.mxu0 0.0
    %691 = vmatpush1.msra.mxu0 0.0
    %692 = vmatprep.subr.mxu0 0.0
    %693 = vmatpush1.msra.mxu0 0.0
    %694 = vmatprep.subr.mxu0 0.0
    %695 = vmatpush1.msra.mxu0 0.0
    %696 = vmatprep.subr.mxu0 0.0
    %697 = vmatpush1.msra.mxu0 0.0
    %698 = vmatprep.subr.mxu0 0.0
    %699 = vmatpush1.msra.mxu0 0.0
    %700 = vmatprep.subr.mxu0 0.0
    %701 = vmatpush1.msra.mxu0 0.0
    %702 = vmatprep.subr.mxu0 0.0
    %703 = vmatpush1.msra.mxu0 0.0
    %704 = vmatprep.subr.mxu0 0.0
    %705 = vmatpush1.msra.mxu0 %v674
    %706 = vmatprep.subr.mxu0 0.0
    %707 = vmatpush1.msra.mxu0 %v673
    %708 = vmatprep.subr.mxu0 0.0
    %709 = vmatpush1.msra.mxu0 %v672
    %710 = vmatprep.subr.mxu0 0.0
    %711 = vmatpush1.msra.mxu0 %v671
    %712 = vmatprep.subr.mxu0 0.0
    %713 = vmatpush2.msra.mxu0 0.0
    %714 = vmatprep.subr.mxu0 0.0
    %715 = vmatpush2.msra.mxu0 0.0
    %716 = vmatprep.subr.mxu0 0.0
    %717 = vmatpush2.msra.mxu0 0.0
    %718 = vmatprep.subr.mxu0 0.0
    %719 = vmatpush2.msra.mxu0 0.0
    %720 = vmatprep.subr.mxu0 0.0
    %721 = vmatpush2.msra.mxu0 0.0
    %722 = vmatprep.subr.mxu0 0.0
    %723 = vmatpush2.msra.mxu0 0.0
    %724 = vmatprep.subr.mxu0 0.0
    %725 = vmatpush2.msra.mxu0 0.0
    %726 = vmatprep.subr.mxu0 0.0
    %727 = vmatpush2.msra.mxu0 0.0
    %728 = vmatprep.subr.mxu0 0.0
    %729 = vmatpush2.msra.mxu0 0.0
    %730 = vmatprep.subr.mxu0 0.0
    %731 = vmatpush2.msra.mxu0 0.0
    %732 = vmatprep.subr.mxu0 0.0
    %733 = vmatpush2.msra.mxu0 0.0
    %734 = vmatprep.subr.mxu0 0.0
    %735 = vmatpush2.msra.mxu0 0.0
    %736 = vmatprep.subr.mxu0 0.0
    %737 = vmatpush2.msra.mxu0 0.0
    %738 = vmatprep.subr.mxu0 0.0
    %739 = vmatpush2.msra.mxu0 0.0
    %740 = vmatprep.subr.mxu0 0.0
    %741 = vmatpush2.msra.mxu0 0.0
    %742 = vmatprep.subr.mxu0 0.0
    %743 = vmatpush2.msra.mxu0 0.0
    %744 = vmatprep.mubr.f32.mxu0 0.0
    %745 = vmatmul.mubr.f32.gmra.mxu0 %v119
    %v746 = vpop.f32.mrf.mxu0
    %v747 = vadd.f32 %v679, %v746
    %v748 = vpop.f32.mrf.mxu0
    %749 = vdwg.mxu0
    %v751 = vsel %vm117, %v589, 0
    %v754 = vsel %vm117, %v668, 0
    %756 = vmatprep.subr.mxu0 0.0
    %757 = vmatpush1.xpose.msra.mxu0 0.0
    %758 = vmatprep.subr.mxu0 0.0
    %759 = vmatpush1.xpose.msra.mxu0 0.0
    %760 = vmatprep.subr.mxu0 0.0
    %761 = vmatpush1.xpose.msra.mxu0 0.0
    %762 = vmatprep.subr.mxu0 0.0
    %763 = vmatpush1.xpose.msra.mxu0 0.0
    %764 = vmatprep.subr.mxu0 0.0
    %765 = vmatpush1.xpose.msra.mxu0 0.0
    %766 = vmatprep.subr.mxu0 0.0
    %767 = vmatpush1.xpose.msra.mxu0 0.0
    %768 = vmatprep.subr.mxu0 0.0
    %769 = vmatpush1.xpose.msra.mxu0 0.0
    %770 = vmatprep.subr.mxu0 0.0
    %771 = vmatpush1.xpose.msra.mxu0 0.0
    %772 = vmatprep.subr.mxu0 0.0
    %773 = vmatpush1.xpose.msra.mxu0 0.0
    %774 = vmatprep.subr.mxu0 0.0
    %775 = vmatpush1.xpose.msra.mxu0 0.0
    %776 = vmatprep.subr.mxu0 0.0
    %777 = vmatpush1.xpose.msra.mxu0 0.0
    %778 = vmatprep.subr.mxu0 0.0
    %779 = vmatpush1.xpose.msra.mxu0 0.0
    %780 = vmatprep.subr.mxu0 0.0
    %781 = vmatpush1.xpose.msra.mxu0 0.0
    %782 = vmatprep.subr.mxu0 0.0
    %783 = vmatpush1.xpose.msra.mxu0 0.0
    %784 = vmatprep.subr.mxu0 0.0
    %785 = vmatpush1.xpose.msra.mxu0 0.0
    %786 = vmatprep.subr.mxu0 0.0
    %787 = vmatpush1.xpose.msra.mxu0 %v754
    %788 = vmatprep.subr.mxu0 0.0
    %789 = vmatpush2.xpose.msra.mxu0 0.0
    %790 = vmatprep.subr.mxu0 0.0
    %791 = vmatpush2.xpose.msra.mxu0 0.0
    %792 = vmatprep.subr.mxu0 0.0
    %793 = vmatpush2.xpose.msra.mxu0 0.0
    %794 = vmatprep.subr.mxu0 0.0
    %795 = vmatpush2.xpose.msra.mxu0 0.0
    %796 = vmatprep.subr.mxu0 0.0
    %797 = vmatpush2.xpose.msra.mxu0 0.0
    %798 = vmatprep.subr.mxu0 0.0
    %799 = vmatpush2.xpose.msra.mxu0 0.0
    %800 = vmatprep.subr.mxu0 0.0
    %801 = vmatpush2.xpose.msra.mxu0 0.0
    %802 = vmatprep.subr.mxu0 0.0
    %803 = vmatpush2.xpose.msra.mxu0 0.0
    %804 = vmatprep.subr.mxu0 0.0
    %805 = vmatpush2.xpose.msra.mxu0 0.0
    %806 = vmatprep.subr.mxu0 0.0
    %807 = vmatpush2.xpose.msra.mxu0 0.0
    %808 = vmatprep.subr.mxu0 0.0
    %809 = vmatpush2.xpose.msra.mxu0 0.0
    %810 = vmatprep.subr.mxu0 0.0
    %811 = vmatpush2.xpose.msra.mxu0 0.0
    %812 = vmatprep.subr.mxu0 0.0
    %813 = vmatpush2.xpose.msra.mxu0 0.0
    %814 = vmatprep.subr.mxu0 0.0
    %815 = vmatpush2.xpose.msra.mxu0 0.0
    %816 = vmatprep.subr.mxu0 0.0
    %817 = vmatpush2.xpose.msra.mxu0 0.0
    %818 = vmatprep.subr.mxu0 0.0
    %819 = vmatpush2.xpose.msra.mxu0 0.0
    %820 = vmatprep.mubr.f32.mxu0 0.0
    %821 = vmatmul.mubr.f32.gmra.mxu0 %v751
    %v822 = vpop.f32.mrf.mxu0
    %v823 = vadd.f32 %v107, %v822
    %v824 = vpop.f32.mrf.mxu0
    %825 = vdwg.mxu0
    %v826 = vsel %vm13, %v823, -inf
    %827 = vmax.xlane.f32.xlu0 %v826
    %v828 = vpop.xlane.xlu0 %827
    %v829 = vsub.f32 %v823, %v828
    %v830 = vmul.f32 %v829, 1.442695
    %v831 = vpow.pop %v830
    %v832 = vsel %vm13, %v831, 0.0
    %833 = vadd.xlane.f32.xlu0 %v832
    %v834 = vpop.xlane.xlu0 %833
    %v835 = vrcp.pop %v834
    %v836 = vmul.f32 %v831, %v835
    %v838 = vsel %vm13, %v836, 0
    %840 = vmatprep.subr.mxu0 0.0
    %841 = vmatpush1.msra.mxu0 0.0
    %842 = vmatprep.subr.mxu0 0.0
    %843 = vmatpush1.msra.mxu0 0.0
    %844 = vmatprep.subr.mxu0 0.0
    %845 = vmatpush1.msra.mxu0 0.0
    %846 = vmatprep.subr.mxu0 0.0
    %847 = vmatpush1.msra.mxu0 0.0
    %848 = vmatprep.subr.mxu0 0.0
    %849 = vmatpush1.msra.mxu0 0.0
    %850 = vmatprep.subr.mxu0 0.0
    %851 = vmatpush1.msra.mxu0 0.0
    %852 = vmatprep.subr.mxu0 0.0
    %853 = vmatpush1.msra.mxu0 0.0
    %854 = vmatprep.subr.mxu0 0.0
    %855 = vmatpush1.msra.mxu0 0.0
    %856 = vmatprep.subr.mxu0 0.0
    %857 = vmatpush1.msra.mxu0 0.0
    %858 = vmatprep.subr.mxu0 0.0
    %859 = vmatpush1.msra.mxu0 0.0
    %860 = vmatprep.subr.mxu0 0.0
    %861 = vmatpush1.msra.mxu0 0.0
    %862 = vmatprep.subr.mxu0 0.0
    %863 = vmatpush1.msra.mxu0 0.0
    %864 = vmatprep.subr.mxu0 0.0
    %865 = vmatpush1.msra.mxu0 0.0
    %866 = vmatprep.subr.mxu0 0.0
    %867 = vmatpush1.msra.mxu0 0.0
    %868 = vmatprep.subr.mxu0 0.0
    %869 = vmatpush1.msra.mxu0 0.0
    %870 = vmatprep.subr.mxu0 0.0
    %871 = vmatpush1.msra.mxu0 %v747
    %872 = vmatprep.subr.mxu0 0.0
    %873 = vmatpush2.msra.mxu0 0.0
    %874 = vmatprep.subr.mxu0 0.0
    %875 = vmatpush2.msra.mxu0 0.0
    %876 = vmatprep.subr.mxu0 0.0
    %877 = vmatpush2.msra.mxu0 0.0
    %878 = vmatprep.subr.mxu0 0.0
    %879 = vmatpush2.msra.mxu0 0.0
    %880 = vmatprep.subr.mxu0 0.0
    %881 = vmatpush2.msra.mxu0 0.0
    %882 = vmatprep.subr.mxu0 0.0
    %883 = vmatpush2.msra.mxu0 0.0
    %884 = vmatprep.subr.mxu0 0.0
    %885 = vmatpush2.msra.mxu0 0.0
    %886 = vmatprep.subr.mxu0 0.0
    %887 = vmatpush2.msra.mxu0 0.0
    %888 = vmatprep.subr.mxu0 0.0
    %889 = vmatpush2.msra.mxu0 0.0
    %890 = vmatprep.subr.mxu0 0.0
    %891 = vmatpush2.msra.mxu0 0.0
    %892 = vmatprep.subr.mxu0 0.0
    %893 = vmatpush2.msra.mxu0 0.0
    %894 = vmatprep.subr.mxu0 0.0
    %895 = vmatpush2.msra.mxu0 0.0
    %896 = vmatprep.subr.mxu0 0.0
    %897 = vmatpush2.msra.mxu0 0.0
    %898 = vmatprep.subr.mxu0 0.0
    %899 = vmatpush2.msra.mxu0 0.0
    %900 = vmatprep.subr.mxu0 0.0
    %901 = vmatpush2.msra.mxu0 0.0
    %902 = vmatprep.subr.mxu0 0.0
    %903 = vmatpush2.msra.mxu0 0.0
    %904 = vmatprep.mubr.f32.mxu0 0.0
    %905 = vmatmul.mubr.f32.gmra.mxu0 %v838
    %v906 = vpop.f32.mrf.mxu0
    %v907 = vadd.f32 0.0, %v906
    %v908 = vpop.f32.mrf.mxu0
    %909 = vdwg.mxu0
    %v910 = vld [vmem:[%s1 + $0x128] sm:$0xff]
    %v911 = vld [vmem:[%s1 + $0x130] sm:$0xff]
    %v912 = vld [vmem:[%s1 + $0x138] sm:$0xff]
    %v913 = vld [vmem:[%s1 + $0x140] sm:$0xff]
    %v915 = vsel %vm117, %v907, 0
    %917 = vmatprep.subr.mxu0 0.0
    %918 = vmatpush1.msra.mxu0 0.0
    %919 = vmatprep.subr.mxu0 0.0
    %920 = vmatpush1.msra.mxu0 0.0
    %921 = vmatprep.subr.mxu0 0.0
    %922 = vmatpush1.msra.mxu0 0.0
    %923 = vmatprep.subr.mxu0 0.0
    %924 = vmatpush1.msra.mxu0 0.0
    %925 = vmatprep.subr.mxu0 0.0
    %926 = vmatpush1.msra.mxu0 0.0
    %927 = vmatprep.subr.mxu0 0.0
    %928 = vmatpush1.msra.mxu0 0.0
    %929 = vmatprep.subr.mxu0 0.0
    %930 = vmatpush1.msra.mxu0 0.0
    %931 = vmatprep.subr.mxu0 0.0
    %932 = vmatpush1.msra.mxu0 0.0
    %933 = vmatprep.subr.mxu0 0.0
    %934 = vmatpush1.msra.mxu0 0.0
    %935 = vmatprep.subr.mxu0 0.0
    %936 = vmatpush1.msra.mxu0 0.0
    %937 = vmatprep.subr.mxu0 0.0
    %938 = vmatpush1.msra.mxu0 0.0
    %939 = vmatprep.subr.mxu0 0.0
    %940 = vmatpush1.msra.mxu0 0.0
    %941 = vmatprep.subr.mxu0 0.0
    %942 = vmatpush1.msra.mxu0 %v913
    %943 = vmatprep.subr.mxu0 0.0
    %944 = vmatpush1.msra.mxu0 %v912
    %945 = vmatprep.subr.mxu0 0.0
    %946 = vmatpush1.msra.mxu0 %v911
    %947 = vmatprep.subr.mxu0 0.0
    %948 = vmatpush1.msra.mxu0 %v910
    %949 = vmatprep.subr.mxu0 0.0
    %950 = vmatpush2.msra.mxu0 0.0
    %951 = vmatprep.subr.mxu0 0.0
    %952 = vmatpush2.msra.mxu0 0.0
    %953 = vmatprep.subr.mxu0 0.0
    %954 = vmatpush2.msra.mxu0 0.0
    %955 = vmatprep.subr.mxu0 0.0
    %956 = vmatpush2.msra.mxu0 0.0
    %957 = vmatprep.subr.mxu0 0.0
    %958 = vmatpush2.msra.mxu0 0.0
    %959 = vmatprep.subr.mxu0 0.0
    %960 = vmatpush2.msra.mxu0 0.0
    %961 = vmatprep.subr.mxu0 0.0
    %962 = vmatpush2.msra.mxu0 0.0
    %963 = vmatprep.subr.mxu0 0.0
    %964 = vmatpush2.msra.mxu0 0.0
    %965 = vmatprep.subr.mxu0 0.0
    %966 = vmatpush2.msra.mxu0 0.0
    %967 = vmatprep.subr.mxu0 0.0
    %968 = vmatpush2.msra.mxu0 0.0
    %969 = vmatprep.subr.mxu0 0.0
    %970 = vmatpush2.msra.mxu0 0.0
    %971 = vmatprep.subr.mxu0 0.0
    %972 = vmatpush2.msra.mxu0 0.0
    %973 = vmatprep.subr.mxu0 0.0
    %974 = vmatpush2.msra.mxu0 0.0
    %975 = vmatprep.subr.mxu0 0.0
    %976 = vmatpush2.msra.mxu0 0.0
    %977 = vmatprep.subr.mxu0 0.0
    %978 = vmatpush2.msra.mxu0 0.0
    %979 = vmatprep.subr.mxu0 0.0
    %980 = vmatpush2.msra.mxu0 0.0
    %981 = vmatprep.mubr.f32.mxu0 0.0
    %982 = vmatmul.mubr.f32.gmra.mxu0 %v915
    %v983 = vpop.f32.mrf.mxu0
    %v984 = vadd.f32 0.0, %v983
    %v985 = vpop.f32.mrf.mxu0
    %986 = vdwg.mxu0
    %v988 = vsel %vm117, %v506, 0
    %990 = vmatprep.subr.mxu0 0.0
    %991 = vmatpush1.msra.mxu0 0.0
    %992 = vmatprep.subr.mxu0 0.0
    %993 = vmatpush1.msra.mxu0 0.0
    %994 = vmatprep.subr.mxu0 0.0
    %995 = vmatpush1.msra.mxu0 0.0
    %996 = vmatprep.subr.mxu0 0.0
    %997 = vmatpush1.msra.mxu0 0.0
    %998 = vmatprep.subr.mxu0 0.0
    %999 = vmatpush1.msra.mxu0 0.0
    %1000 = vmatprep.subr.mxu0 0.0
    %1001 = vmatpush1.msra.mxu0 0.0
    %1002 = vmatprep.subr.mxu0 0.0
    %1003 = vmatpush1.msra.mxu0 0.0
    %1004 = vmatprep.subr.mxu0 0.0
    %1005 = vmatpush1.msra.mxu0 0.0
    %1006 = vmatprep.subr.mxu0 0.0
    %1007 = vmatpush1.msra.mxu0 0.0
    %1008 = vmatprep.subr.mxu0 0.0
    %1009 = vmatpush1.msra.mxu0 0.0
    %1010 = vmatprep.subr.mxu0 0.0
    %1011 = vmatpush1.msra.mxu0 0.0
    %1012 = vmatprep.subr.mxu0 0.0
    %1013 = vmatpush1.msra.mxu0 0.0
    %1014 = vmatprep.subr.mxu0 0.0
    %1015 = vmatpush1.msra.mxu0 %v512
    %1016 = vmatprep.subr.mxu0 0.0
    %1017 = vmatpush1.msra.mxu0 %v511
    %1018 = vmatprep.subr.mxu0 0.0
    %1019 = vmatpush1.msra.mxu0 %v510
    %1020 = vmatprep.subr.mxu0 0.0
    %1021 = vmatpush1.msra.mxu0 %v509
    %1022 = vmatprep.subr.mxu0 0.0
    %1023 = vmatpush2.msra.mxu0 0.0
    %1024 = vmatprep.subr.mxu0 0.0
    %1025 = vmatpush2.msra.mxu0 0.0
    %1026 = vmatprep.subr.mxu0 0.0
    %1027 = vmatpush2.msra.mxu0 0.0
    %1028 = vmatprep.subr.mxu0 0.0
    %1029 = vmatpush2.msra.mxu0 0.0
    %1030 = vmatprep.subr.mxu0 0.0
    %1031 = vmatpush2.msra.mxu0 0.0
    %1032 = vmatprep.subr.mxu0 0.0
    %1033 = vmatpush2.msra.mxu0 0.0
    %1034 = vmatprep.subr.mxu0 0.0
    %1035 = vmatpush2.msra.mxu0 0.0
    %1036 = vmatprep.subr.mxu0 0.0
    %1037 = vmatpush2.msra.mxu0 0.0
    %1038 = vmatprep.subr.mxu0 0.0
    %1039 = vmatpush2.msra.mxu0 0.0
    %1040 = vmatprep.subr.mxu0 0.0
    %1041 = vmatpush2.msra.mxu0 0.0
    %1042 = vmatprep.subr.mxu0 0.0
    %1043 = vmatpush2.msra.mxu0 0.0
    %1044 = vmatprep.subr.mxu0 0.0
    %1045 = vmatpush2.msra.mxu0 0.0
    %1046 = vmatprep.subr.mxu0 0.0
    %1047 = vmatpush2.msra.mxu0 0.0
    %1048 = vmatprep.subr.mxu0 0.0
    %1049 = vmatpush2.msra.mxu0 0.0
    %1050 = vmatprep.subr.mxu0 0.0
    %1051 = vmatpush2.msra.mxu0 0.0
    %1052 = vmatprep.subr.mxu0 0.0
    %1053 = vmatpush2.msra.mxu0 0.0
    %1054 = vmatprep.mubr.f32.mxu0 0.0
    %1055 = vmatmul.mubr.f32.gmra.mxu0 %v988
    %v1056 = vpop.f32.mrf.mxu0
    %v1057 = vadd.f32 %v984, %v1056
    %v1058 = vpop.f32.mrf.mxu0
    %1059 = vdwg.mxu0
    %v1060 = vadd.f32 %v104, %v1057
    %v1061 = vld [vmem:[%s1 + $0x148] sm:$0x1]
    %v1062 = vlaneseq
    %v1063 = vshrl.u32 %v1062, 7
    %v1064 = vsub.s32 0, %v1063
    %v1065 = vrot.slane %v1061, %v1064
    %v1066 = vadd.f32 %v1060, %v1065
    %v1067 = vsel %vm117, %v1066, 0.0
    %1068 = vadd.xlane.f32.xlu0 %v1067
    %v1069 = vpop.xlane.xlu0 %1068
    %v1070 = vrcp.pop 32.0
    %v1071 = vmul.f32 %v1069, %v1070
    %v1072 = vsub.f32 %v1066, %v1071
    %v1073 = vmul.f32 %v1072, %v1072
    %v1074 = vsel %vm117, %v1073, 0.0
    %1075 = vadd.xlane.f32.xlu0 %v1074
    %v1076 = vpop.xlane.xlu0 %1075
    %v1077 = vmul.f32 %v1076, %v1070
    %v1078 = vadd.f32 %v1077, 1e-05
    %v1079 = vrsqrt.pop %v1078
    %v1080 = vmul.f32 %v1072, %v1079
    %v1081 = vld [vmem:[%s1 + $0x1c0] sm:$0x1]
    %v1082 = vlaneseq
    %v1083 = vshrl.u32 %v1082, 7
    %v1084 = vsub.s32 0, %v1083
    %v1085 = vrot.slane %v1081, %v1084
    %v1086 = vmul.f32 %v1080, %v1085
    %v1087 = vld [vmem:[%s1 + $0x1c8] sm:$0x1]
    %v1088 = vlaneseq
    %v1089 = vshrl.u32 %v1088, 7
    %v1090 = vsub.s32 0, %v1089
    %v1091 = vrot.slane %v1087, %v1090
    %v1092 = vadd.f32 %v1086, %v1091
    %v1093 = vld [vmem:[%s1 + $0x150] sm:$0xff]
    %v1094 = vld [vmem:[%s1 + $0x158] sm:$0xff]
    %v1095 = vld [vmem:[%s1 + $0x160] sm:$0xff]
    %v1096 = vld [vmem:[%s1 + $0x168] sm:$0xff]
    %v1097 = vld [vmem:[%s1 + $0x170] sm:$0x1]
    %v1098 = vlaneseq
    %v1099 = vshrl.u32 %v1098, 7
    %v1100 = vsub.s32 0, %v1099
    %v1101 = vrot.slane %v1097, %v1100
    %v1103 = vsel %vm117, %v1092, 0
    %1105 = vmatprep.subr.mxu0 0.0
    %1106 = vmatpush1.msra.mxu0 0.0
    %1107 = vmatprep.subr.mxu0 0.0
    %1108 = vmatpush1.msra.mxu0 0.0
    %1109 = vmatprep.subr.mxu0 0.0
    %1110 = vmatpush1.msra.mxu0 0.0
    %1111 = vmatprep.subr.mxu0 0.0
    %1112 = vmatpush1.msra.mxu0 0.0
    %1113 = vmatprep.subr.mxu0 0.0
    %1114 = vmatpush1.msra.mxu0 0.0
    %1115 = vmatprep.subr.mxu0 0.0
    %1116 = vmatpush1.msra.mxu0 0.0
    %1117 = vmatprep.subr.mxu0 0.0
    %1118 = vmatpush1.msra.mxu0 0.0
    %1119 = vmatprep.subr.mxu0 0.0
    %1120 = vmatpush1.msra.mxu0 0.0
    %1121 = vmatprep.subr.mxu0 0.0
    %1122 = vmatpush1.msra.mxu0 0.0
    %1123 = vmatprep.subr.mxu0 0.0
    %1124 = vmatpush1.msra.mxu0 0.0
    %1125 = vmatprep.subr.mxu0 0.0
    %1126 = vmatpush1.msra.mxu0 0.0
    %1127 = vmatprep.subr.mxu0 0.0
    %1128 = vmatpush1.msra.mxu0 0.0
    %1129 = vmatprep.subr.mxu0 0.0
    %1130 = vmatpush1.msra.mxu0 %v1096
    %1131 = vmatprep.subr.mxu0 0.0
    %1132 = vmatpush1.msra.mxu0 %v1095
    %1133 = vmatprep.subr.mxu0 0.0
    %1134 = vmatpush1.msra.mxu0 %v1094
    %1135 = vmatprep.subr.mxu0 0.0
    %1136 = vmatpush1.msra.mxu0 %v1093
    %1137 = vmatprep.subr.mxu0 0.0
    %1138 = vmatpush2.msra.mxu0 0.0
    %1139 = vmatprep.subr.mxu0 0.0
    %1140 = vmatpush2.msra.mxu0 0.0
    %1141 = vmatprep.subr.mxu0 0.0
    %1142 = vmatpush2.msra.mxu0 0.0
    %1143 = vmatprep.subr.mxu0 0.0
    %1144 = vmatpush2.msra.mxu0 0.0
    %1145 = vmatprep.subr.mxu0 0.0
    %1146 = vmatpush2.msra.mxu0 0.0
    %1147 = vmatprep.subr.mxu0 0.0
    %1148 = vmatpush2.msra.mxu0 0.0
    %1149 = vmatprep.subr.mxu0 0.0
    %1150 = vmatpush2.msra.mxu0 0.0
    %1151 = vmatprep.subr.mxu0 0.0
    %1152 = vmatpush2.msra.mxu0 0.0
    %1153 = vmatprep.subr.mxu0 0.0
    %1154 = vmatpush2.msra.mxu0 0.0
    %1155 = vmatprep.subr.mxu0 0.0
    %1156 = vmatpush2.msra.mxu0 0.0
    %1157 = vmatprep.subr.mxu0 0.0
    %1158 = vmatpush2.msra.mxu0 0.0
    %1159 = vmatprep.subr.mxu0 0.0
    %1160 = vmatpush2.msra.mxu0 0.0
    %1161 = vmatprep.subr.mxu0 0.0
    %1162 = vmatpush2.msra.mxu0 0.0
    %1163 = vmatprep.subr.mxu0 0.0
    %1164 = vmatpush2.msra.mxu0 0.0
    %1165 = vmatprep.subr.mxu0 0.0
    %1166 = vmatpush2.msra.mxu0 0.0
    %1167 = vmatprep.subr.mxu0 0.0
    %1168 = vmatpush2.msra.mxu0 0.0
    %1169 = vmatprep.mubr.f32.mxu0 0.0
    %1170 = vmatmul.mubr.f32.gmra.mxu0 %v1103
    %v1171 = vpop.f32.mrf.mxu0
    %v1172 = vadd.f32 %v1101, %v1171
    %v1173 = vpop.f32.mrf.mxu0
    %1174 = vdwg.mxu0
    %v1175 = vmax.f32 %v1172, 0.0
    %v1176 = vld [vmem:[%s1 + $0x178] sm:$0xff]
    %v1177 = vld [vmem:[%s1 + $0x180] sm:$0xff]
    %v1178 = vld [vmem:[%s1 + $0x188] sm:$0xff]
    %v1179 = vld [vmem:[%s1 + $0x190] sm:$0xff]
    %v1180 = vld [vmem:[%s1 + $0x198] sm:$0xff]
    %v1181 = vld [vmem:[%s1 + $0x1a0] sm:$0xff]
    %v1182 = vld [vmem:[%s1 + $0x1a8] sm:$0xff]
    %v1183 = vld [vmem:[%s1 + $0x1b0] sm:$0xff]
    %v1184 = vld [vmem:[%s1 + $0x1b8] sm:$0x1]
    %v1185 = vlaneseq
    %v1186 = vshrl.u32 %v1185, 7
    %v1187 = vsub.s32 0, %v1186
    %v1188 = vrot.slane %v1184, %v1187
    %vm1189 = vcmask 523264
    %v1191 = vsel %vm1189, %v1175, 0
    %1193 = vmatprep.subr.mxu0 0.0
    %1194 = vmatpush1.msra.mxu0 0.0
    %1195 = vmatprep.subr.mxu0 0.0
    %1196 = vmatpush1.msra.mxu0 0.0
    %1197 = vmatprep.subr.mxu0 0.0
    %1198 = vmatpush1.msra.mxu0 0.0
    %1199 = vmatprep.subr.mxu0 0.0
    %1200 = vmatpush1.msra.mxu0 0.0
    %1201 = vmatprep.subr.mxu0 0.0
    %1202 = vmatpush1.msra.mxu0 0.0
    %1203 = vmatprep.subr.mxu0 0.0
    %1204 = vmatpush1.msra.mxu0 0.0
    %1205 = vmatprep.subr.mxu0 0.0
    %1206 = vmatpush1.msra.mxu0 0.0
    %1207 = vmatprep.subr.mxu0 0.0
    %1208 = vmatpush1.msra.mxu0 0.0
    %1209 = vmatprep.subr.mxu0 0.0
    %1210 = vmatpush1.msra.mxu0 %v1183
    %1211 = vmatprep.subr.mxu0 0.0
    %1212 = vmatpush1.msra.mxu0 %v1182
    %1213 = vmatprep.subr.mxu0 0.0
    %1214 = vmatpush1.msra.mxu0 %v1181
    %1215 = vmatprep.subr.mxu0 0.0
    %1216 = vmatpush1.msra.mxu0 %v1180
    %1217 = vmatprep.subr.mxu0 0.0
    %1218 = vmatpush1.msra.mxu0 %v1179
    %1219 = vmatprep.subr.mxu0 0.0
    %1220 = vmatpush1.msra.mxu0 %v1178
    %1221 = vmatprep.subr.mxu0 0.0
    %1222 = vmatpush1.msra.mxu0 %v1177
    %1223 = vmatprep.subr.mxu0 0.0
    %1224 = vmatpush1.msra.mxu0 %v1176
    %1225 = vmatprep.subr.mxu0 0.0
    %1226 = vmatpush2.msra.mxu0 0.0
    %1227 = vmatprep.subr.mxu0 0.0
    %1228 = vmatpush2.msra.mxu0 0.0
    %1229 = vmatprep.subr.mxu0 0.0
    %1230 = vmatpush2.msra.mxu0 0.0
    %1231 = vmatprep.subr.mxu0 0.0
    %1232 = vmatpush2.msra.mxu0 0.0
    %1233 = vmatprep.subr.mxu0 0.0
    %1234 = vmatpush2.msra.mxu0 0.0
    %1235 = vmatprep.subr.mxu0 0.0
    %1236 = vmatpush2.msra.mxu0 0.0
    %1237 = vmatprep.subr.mxu0 0.0
    %1238 = vmatpush2.msra.mxu0 0.0
    %1239 = vmatprep.subr.mxu0 0.0
    %1240 = vmatpush2.msra.mxu0 0.0
    %1241 = vmatprep.subr.mxu0 0.0
    %1242 = vmatpush2.msra.mxu0 0.0
    %1243 = vmatprep.subr.mxu0 0.0
    %1244 = vmatpush2.msra.mxu0 0.0
    %1245 = vmatprep.subr.mxu0 0.0
    %1246 = vmatpush2.msra.mxu0 0.0
    %1247 = vmatprep.subr.mxu0 0.0
    %1248 = vmatpush2.msra.mxu0 0.0
    %1249 = vmatprep.subr.mxu0 0.0
    %1250 = vmatpush2.msra.mxu0 0.0
    %1251 = vmatprep.subr.mxu0 0.0
    %1252 = vmatpush2.msra.mxu0 0.0
    %1253 = vmatprep.subr.mxu0 0.0
    %1254 = vmatpush2.msra.mxu0 0.0
    %1255 = vmatprep.subr.mxu0 0.0
    %1256 = vmatpush2.msra.mxu0 0.0
    %1257 = vmatprep.mubr.f32.mxu0 0.0
    %1258 = vmatmul.mubr.f32.gmra.mxu0 %v1191
    %v1259 = vpop.f32.mrf.mxu0
    %v1260 = vadd.f32 %v1188, %v1259
    %v1261 = vpop.f32.mrf.mxu0
    %1262 = vdwg.mxu0
    %v1263 = vadd.f32 %v1092, %v1260
    %v1264 = vsel %vm117, %v1263, 0.0
    %1265 = vadd.xlane.f32.xlu0 %v1264
    %v1266 = vpop.xlane.xlu0 %1265
    %v1267 = vmul.f32 %v1266, %v1070
    %v1268 = vsub.f32 %v1263, %v1267
    %v1269 = vmul.f32 %v1268, %v1268
    %v1270 = vsel %vm117, %v1269, 0.0
    %1271 = vadd.xlane.f32.xlu0 %v1270
    %v1272 = vpop.xlane.xlu0 %1271
    %v1273 = vmul.f32 %v1272, %v1070
    %v1274 = vadd.f32 %v1273, 1e-05
    %v1275 = vrsqrt.pop %v1274
    %v1276 = vmul.f32 %v1268, %v1275
    %v1277 = vld [vmem:[%s1 + $0x1d0] sm:$0x1]
    %v1278 = vlaneseq
    %v1279 = vshrl.u32 %v1278, 7
    %v1280 = vsub.s32 0, %v1279
    %v1281 = vrot.slane %v1277, %v1280
    %v1282 = vmul.f32 %v1276, %v1281
    %v1283 = vld [vmem:[%s1 + $0x1d8] sm:$0x1]
    %v1284 = vlaneseq
    %v1285 = vshrl.u32 %v1284, 7
    %v1286 = vsub.s32 0, %v1285
    %v1287 = vrot.slane %v1283, %v1286
    %v1288 = vadd.f32 %v1282, %v1287
    %v1289 = vld [vmem:[%s1 + $0x1e0] sm:$0xff]
    %v1290 = vld [vmem:[%s1 + $0x1e8] sm:$0xff]
    %v1291 = vld [vmem:[%s1 + $0x1f0] sm:$0xff]
    %v1292 = vld [vmem:[%s1 + $0x1f8] sm:$0xff]
    %v1293 = vld [vmem:[%s1 + $0x200] sm:$0x1]
    %v1294 = vlaneseq
    %v1295 = vshrl.u32 %v1294, 7
    %v1296 = vsub.s32 0, %v1295
    %v1297 = vrot.slane %v1293, %v1296
    %v1299 = vsel %vm117, %v1288, 0
    %1301 = vmatprep.subr.mxu0 0.0
    %1302 = vmatpush1.msra.mxu0 0.0
    %1303 = vmatprep.subr.mxu0 0.0
    %1304 = vmatpush1.msra.mxu0 0.0
    %1305 = vmatprep.subr.mxu0 0.0
    %1306 = vmatpush1.msra.mxu0 0.0
    %1307 = vmatprep.subr.mxu0 0.0
    %1308 = vmatpush1.msra.mxu0 0.0
    %1309 = vmatprep.subr.mxu0 0.0
    %1310 = vmatpush1.msra.mxu0 0.0
    %1311 = vmatprep.subr.mxu0 0.0
    %1312 = vmatpush1.msra.mxu0 0.0
    %1313 = vmatprep.subr.mxu0 0.0
    %1314 = vmatpush1.msra.mxu0 0.0
    %1315 = vmatprep.subr.mxu0 0.0
    %1316 = vmatpush1.msra.mxu0 0.0
    %1317 = vmatprep.subr.mxu0 0.0
    %1318 = vmatpush1.msra.mxu0 0.0
    %1319 = vmatprep.subr.mxu0 0.0
    %1320 = vmatpush1.msra.mxu0 0.0
    %1321 = vmatprep.subr.mxu0 0.0
    %1322 = vmatpush1.msra.mxu0 0.0
    %1323 = vmatprep.subr.mxu0 0.0
    %1324 = vmatpush1.msra.mxu0 0.0
    %1325 = vmatprep.subr.mxu0 0.0
    %1326 = vmatpush1.msra.mxu0 %v1292
    %1327 = vmatprep.subr.mxu0 0.0
    %1328 = vmatpush1.msra.mxu0 %v1291
    %1329 = vmatprep.subr.mxu0 0.0
    %1330 = vmatpush1.msra.mxu0 %v1290
    %1331 = vmatprep.subr.mxu0 0.0
    %1332 = vmatpush1.msra.mxu0 %v1289
    %1333 = vmatprep.subr.mxu0 0.0
    %1334 = vmatpush2.msra.mxu0 0.0
    %1335 = vmatprep.subr.mxu0 0.0
    %1336 = vmatpush2.msra.mxu0 0.0
    %1337 = vmatprep.subr.mxu0 0.0
    %1338 = vmatpush2.msra.mxu0 0.0
    %1339 = vmatprep.subr.mxu0 0.0
    %1340 = vmatpush2.msra.mxu0 0.0
    %1341 = vmatprep.subr.mxu0 0.0
    %1342 = vmatpush2.msra.mxu0 0.0
    %1343 = vmatprep.subr.mxu0 0.0
    %1344 = vmatpush2.msra.mxu0 0.0
    %1345 = vmatprep.subr.mxu0 0.0
    %1346 = vmatpush2.msra.mxu0 0.0
    %1347 = vmatprep.subr.mxu0 0.0
    %1348 = vmatpush2.msra.mxu0 0.0
    %1349 = vmatprep.subr.mxu0 0.0
    %1350 = vmatpush2.msra.mxu0 0.0
    %1351 = vmatprep.subr.mxu0 0.0
    %1352 = vmatpush2.msra.mxu0 0.0
    %1353 = vmatprep.subr.mxu0 0.0
    %1354 = vmatpush2.msra.mxu0 0.0
    %1355 = vmatprep.subr.mxu0 0.0
    %1356 = vmatpush2.msra.mxu0 0.0
    %1357 = vmatprep.subr.mxu0 0.0
    %1358 = vmatpush2.msra.mxu0 0.0
    %1359 = vmatprep.subr.mxu0 0.0
    %1360 = vmatpush2.msra.mxu0 0.0
    %1361 = vmatprep.subr.mxu0 0.0
    %1362 = vmatpush2.msra.mxu0 0.0
    %1363 = vmatprep.subr.mxu0 0.0
    %1364 = vmatpush2.msra.mxu0 0.0
    %1365 = vmatprep.mubr.f32.mxu0 0.0
    %1366 = vmatmul.mubr.f32.gmra.mxu0 %v1299
    %v1367 = vpop.f32.mrf.mxu0
    %v1368 = vadd.f32 %v1297, %v1367
    %v1369 = vpop.f32.mrf.mxu0
    %1370 = vdwg.mxu0
    %v1371 = vld [vmem:[%s1 + $0x208] sm:$0xff]
    %v1372 = vld [vmem:[%s1 + $0x210] sm:$0xff]
    %v1373 = vld [vmem:[%s1 + $0x218] sm:$0xff]
    %v1374 = vld [vmem:[%s1 + $0x220] sm:$0xff]
    %v1375 = vld [vmem:[%s1 + $0x228] sm:$0x1]
    %v1376 = vlaneseq
    %v1377 = vshrl.u32 %v1376, 7
    %v1378 = vsub.s32 0, %v1377
    %v1379 = vrot.slane %v1375, %v1378
    %1380 = vmatprep.subr.mxu0 0.0
    %1381 = vmatpush1.msra.mxu0 0.0
    %1382 = vmatprep.subr.mxu0 0.0
    %1383 = vmatpush1.msra.mxu0 0.0
    %1384 = vmatprep.subr.mxu0 0.0
    %1385 = vmatpush1.msra.mxu0 0.0
    %1386 = vmatprep.subr.mxu0 0.0
    %1387 = vmatpush1.msra.mxu0 0.0
    %1388 = vmatprep.subr.mxu0 0.0
    %1389 = vmatpush1.msra.mxu0 0.0
    %1390 = vmatprep.subr.mxu0 0.0
    %1391 = vmatpush1.msra.mxu0 0.0
    %1392 = vmatprep.subr.mxu0 0.0
    %1393 = vmatpush1.msra.mxu0 0.0
    %1394 = vmatprep.subr.mxu0 0.0
    %1395 = vmatpush1.msra.mxu0 0.0
    %1396 = vmatprep.subr.mxu0 0.0
    %1397 = vmatpush1.msra.mxu0 0.0
    %1398 = vmatprep.subr.mxu0 0.0
    %1399 = vmatpush1.msra.mxu0 0.0
    %1400 = vmatprep.subr.mxu0 0.0
    %1401 = vmatpush1.msra.mxu0 0.0
    %1402 = vmatprep.subr.mxu0 0.0
    %1403 = vmatpush1.msra.mxu0 0.0
    %1404 = vmatprep.subr.mxu0 0.0
    %1405 = vmatpush1.msra.mxu0 %v1374
    %1406 = vmatprep.subr.mxu0 0.0
    %1407 = vmatpush1.msra.mxu0 %v1373
    %1408 = vmatprep.subr.mxu0 0.0
    %1409 = vmatpush1.msra.mxu0 %v1372
    %1410 = vmatprep.subr.mxu0 0.0
    %1411 = vmatpush1.msra.mxu0 %v1371
    %1412 = vmatprep.subr.mxu0 0.0
    %1413 = vmatpush2.msra.mxu0 0.0
    %1414 = vmatprep.subr.mxu0 0.0
    %1415 = vmatpush2.msra.mxu0 0.0
    %1416 = vmatprep.subr.mxu0 0.0
    %1417 = vmatpush2.msra.mxu0 0.0
    %1418 = vmatprep.subr.mxu0 0.0
    %1419 = vmatpush2.msra.mxu0 0.0
    %1420 = vmatprep.subr.mxu0 0.0
    %1421 = vmatpush2.msra.mxu0 0.0
    %1422 = vmatprep.subr.mxu0 0.0
    %1423 = vmatpush2.msra.mxu0 0.0
    %1424 = vmatprep.subr.mxu0 0.0
    %1425 = vmatpush2.msra.mxu0 0.0
    %1426 = vmatprep.subr.mxu0 0.0
    %1427 = vmatpush2.msra.mxu0 0.0
    %1428 = vmatprep.subr.mxu0 0.0
    %1429 = vmatpush2.msra.mxu0 0.0
    %1430 = vmatprep.subr.mxu0 0.0
    %1431 = vmatpush2.msra.mxu0 0.0
    %1432 = vmatprep.subr.mxu0 0.0
    %1433 = vmatpush2.msra.mxu0 0.0
    %1434 = vmatprep.subr.mxu0 0.0
    %1435 = vmatpush2.msra.mxu0 0.0
    %1436 = vmatprep.subr.mxu0 0.0
    %1437 = vmatpush2.msra.mxu0 0.0
    %1438 = vmatprep.subr.mxu0 0.0
    %1439 = vmatpush2.msra.mxu0 0.0
    %1440 = vmatprep.subr.mxu0 0.0
    %1441 = vmatpush2.msra.mxu0 0.0
    %1442 = vmatprep.subr.mxu0 0.0
    %1443 = vmatpush2.msra.mxu0 0.0
    %1444 = vmatprep.mubr.f32.mxu0 0.0
    %1445 = vmatmul.mubr.f32.gmra.mxu0 %v1299
    %v1446 = vpop.f32.mrf.mxu0
    %v1447 = vadd.f32 %v1379, %v1446
    %v1448 = vpop.f32.mrf.mxu0
    %1449 = vdwg.mxu0
    %v1450 = vld [vmem:[%s1 + $0x230] sm:$0xff]
    %v1451 = vld [vmem:[%s1 + $0x238] sm:$0xff]
    %v1452 = vld [vmem:[%s1 + $0x240] sm:$0xff]
    %v1453 = vld [vmem:[%s1 + $0x248] sm:$0xff]
    %v1454 = vld [vmem:[%s1 + $0x250] sm:$0x1]
    %v1455 = vlaneseq
    %v1456 = vshrl.u32 %v1455, 7
    %v1457 = vsub.s32 0, %v1456
    %v1458 = vrot.slane %v1454, %v1457
    %1459 = vmatprep.subr.mxu0 0.0
    %1460 = vmatpush1.msra.mxu0 0.0
    %1461 = vmatprep.subr.mxu0 0.0
    %1462 = vmatpush1.msra.mxu0 0.0
    %1463 = vmatprep.subr.mxu0 0.0
    %1464 = vmatpush1.msra.mxu0 0.0
    %1465 = vmatprep.subr.mxu0 0.0
    %1466 = vmatpush1.msra.mxu0 0.0
    %1467 = vmatprep.subr.mxu0 0.0
    %1468 = vmatpush1.msra.mxu0 0.0
    %1469 = vmatprep.subr.mxu0 0.0
    %1470 = vmatpush1.msra.mxu0 0.0
    %1471 = vmatprep.subr.mxu0 0.0
    %1472 = vmatpush1.msra.mxu0 0.0
    %1473 = vmatprep.subr.mxu0 0.0
    %1474 = vmatpush1.msra.mxu0 0.0
    %1475 = vmatprep.subr.mxu0 0.0
    %1476 = vmatpush1.msra.mxu0 0.0
    %1477 = vmatprep.subr.mxu0 0.0
    %1478 = vmatpush1.msra.mxu0 0.0
    %1479 = vmatprep.subr.mxu0 0.0
    %1480 = vmatpush1.msra.mxu0 0.0
    %1481 = vmatprep.subr.mxu0 0.0
    %1482 = vmatpush1.msra.mxu0 0.0
    %1483 = vmatprep.subr.mxu0 0.0
    %1484 = vmatpush1.msra.mxu0 %v1453
    %1485 = vmatprep.subr.mxu0 0.0
    %1486 = vmatpush1.msra.mxu0 %v1452
    %1487 = vmatprep.subr.mxu0 0.0
    %1488 = vmatpush1.msra.mxu0 %v1451
    %1489 = vmatprep.subr.mxu0 0.0
    %1490 = vmatpush1.msra.mxu0 %v1450
    %1491 = vmatprep.subr.mxu0 0.0
    %1492 = vmatpush2.msra.mxu0 0.0
    %1493 = vmatprep.subr.mxu0 0.0
    %1494 = vmatpush2.msra.mxu0 0.0
    %1495 = vmatprep.subr.mxu0 0.0
    %1496 = vmatpush2.msra.mxu0 0.0
    %1497 = vmatprep.subr.mxu0 0.0
    %1498 = vmatpush2.msra.mxu0 0.0
    %1499 = vmatprep.subr.mxu0 0.0
    %1500 = vmatpush2.msra.mxu0 0.0
    %1501 = vmatprep.subr.mxu0 0.0
    %1502 = vmatpush2.msra.mxu0 0.0
    %1503 = vmatprep.subr.mxu0 0.0
    %1504 = vmatpush2.msra.mxu0 0.0
    %1505 = vmatprep.subr.mxu0 0.0
    %1506 = vmatpush2.msra.mxu0 0.0
    %1507 = vmatprep.subr.mxu0 0.0
    %1508 = vmatpush2.msra.mxu0 0.0
    %1509 = vmatprep.subr.mxu0 0.0
    %1510 = vmatpush2.msra.mxu0 0.0
    %1511 = vmatprep.subr.mxu0 0.0
    %1512 = vmatpush2.msra.mxu0 0.0
    %1513 = vmatprep.subr.mxu0 0.0
    %1514 = vmatpush2.msra.mxu0 0.0
    %1515 = vmatprep.subr.mxu0 0.0
    %1516 = vmatpush2.msra.mxu0 0.0
    %1517 = vmatprep.subr.mxu0 0.0
    %1518 = vmatpush2.msra.mxu0 0.0
    %1519 = vmatprep.subr.mxu0 0.0
    %1520 = vmatpush2.msra.mxu0 0.0
    %1521 = vmatprep.subr.mxu0 0.0
    %1522 = vmatpush2.msra.mxu0 0.0
    %1523 = vmatprep.mubr.f32.mxu0 0.0
    %1524 = vmatmul.mubr.f32.gmra.mxu0 %v1299
    %v1525 = vpop.f32.mrf.mxu0
    %v1526 = vadd.f32 %v1458, %v1525
    %v1527 = vpop.f32.mrf.mxu0
    %1528 = vdwg.mxu0
    %v1530 = vsel %vm117, %v1368, 0
    %v1533 = vsel %vm117, %v1447, 0
    %1535 = vmatprep.subr.mxu0 0.0
    %1536 = vmatpush1.xpose.msra.mxu0 0.0
    %1537 = vmatprep.subr.mxu0 0.0
    %1538 = vmatpush1.xpose.msra.mxu0 0.0
    %1539 = vmatprep.subr.mxu0 0.0
    %1540 = vmatpush1.xpose.msra.mxu0 0.0
    %1541 = vmatprep.subr.mxu0 0.0
    %1542 = vmatpush1.xpose.msra.mxu0 0.0
    %1543 = vmatprep.subr.mxu0 0.0
    %1544 = vmatpush1.xpose.msra.mxu0 0.0
    %1545 = vmatprep.subr.mxu0 0.0
    %1546 = vmatpush1.xpose.msra.mxu0 0.0
    %1547 = vmatprep.subr.mxu0 0.0
    %1548 = vmatpush1.xpose.msra.mxu0 0.0
    %1549 = vmatprep.subr.mxu0 0.0
    %1550 = vmatpush1.xpose.msra.mxu0 0.0
    %1551 = vmatprep.subr.mxu0 0.0
    %1552 = vmatpush1.xpose.msra.mxu0 0.0
    %1553 = vmatprep.subr.mxu0 0.0
    %1554 = vmatpush1.xpose.msra.mxu0 0.0
    %1555 = vmatprep.subr.mxu0 0.0
    %1556 = vmatpush1.xpose.msra.mxu0 0.0
    %1557 = vmatprep.subr.mxu0 0.0
    %1558 = vmatpush1.xpose.msra.mxu0 0.0
    %1559 = vmatprep.subr.mxu0 0.0
    %1560 = vmatpush1.xpose.msra.mxu0 0.0
    %1561 = vmatprep.subr.mxu0 0.0
    %1562 = vmatpush1.xpose.msra.mxu0 0.0
    %1563 = vmatprep.subr.mxu0 0.0
    %1564 = vmatpush1.xpose.msra.mxu0 0.0
    %1565 = vmatprep.subr.mxu0 0.0
    %1566 = vmatpush1.xpose.msra.mxu0 %v1533
    %1567 = vmatprep.subr.mxu0 0.0
    %1568 = vmatpush2.xpose.msra.mxu0 0.0
    %1569 = vmatprep.subr.mxu0 0.0
    %1570 = vmatpush2.xpose.msra.mxu0 0.0
    %1571 = vmatprep.subr.mxu0 0.0
    %1572 = vmatpush2.xpose.msra.mxu0 0.0
    %1573 = vmatprep.subr.mxu0 0.0
    %1574 = vmatpush2.xpose.msra.mxu0 0.0
    %1575 = vmatprep.subr.mxu0 0.0
    %1576 = vmatpush2.xpose.msra.mxu0 0.0
    %1577 = vmatprep.subr.mxu0 0.0
    %1578 = vmatpush2.xpose.msra.mxu0 0.0
    %1579 = vmatprep.subr.mxu0 0.0
    %1580 = vmatpush2.xpose.msra.mxu0 0.0
    %1581 = vmatprep.subr.mxu0 0.0
    %1582 = vmatpush2.xpose.msra.mxu0 0.0
    %1583 = vmatprep.subr.mxu0 0.0
    %1584 = vmatpush2.xpose.msra.mxu0 0.0
    %1585 = vmatprep.subr.mxu0 0.0
    %1586 = vmatpush2.xpose.msra.mxu0 0.0
    %1587 = vmatprep.subr.mxu0 0.0
    %1588 = vmatpush2.xpose.msra.mxu0 0.0
    %1589 = vmatprep.subr.mxu0 0.0
    %1590 = vmatpush2.xpose.msra.mxu0 0.0
    %1591 = vmatprep.subr.mxu0 0.0
    %1592 = vmatpush2.xpose.msra.mxu0 0.0
    %1593 = vmatprep.subr.mxu0 0.0
    %1594 = vmatpush2.xpose.msra.mxu0 0.0
    %1595 = vmatprep.subr.mxu0 0.0
    %1596 = vmatpush2.xpose.msra.mxu0 0.0
    %1597 = vmatprep.subr.mxu0 0.0
    %1598 = vmatpush2.xpose.msra.mxu0 0.0
    %1599 = vmatprep.mubr.f32.mxu0 0.0
    %1600 = vmatmul.mubr.f32.gmra.mxu0 %v1530
    %v1601 = vpop.f32.mrf.mxu0
    %v1602 = vadd.f32 %v107, %v1601
    %v1603 = vpop.f32.mrf.mxu0
    %1604 = vdwg.mxu0
    %v1605 = vsel %vm13, %v1602, -inf
    %1606 = vmax.xlane.f32.xlu0 %v1605
    %v1607 = vpop.xlane.xlu0 %1606
    %v1608 = vsub.f32 %v1602, %v1607
    %v1609 = vmul.f32 %v1608, 1.442695
    %v1610 = vpow.pop %v1609
    %v1611 = vsel %vm13, %v1610, 0.0
    %1612 = vadd.xlane.f32.xlu0 %v1611
    %v1613 = vpop.xlane.xlu0 %1612
    %v1614 = vrcp.pop %v1613
    %v1615 = vmul.f32 %v1610, %v1614
    %v1617 = vsel %vm13, %v1615, 0
    %1619 = vmatprep.subr.mxu0 0.0
    %1620 = vmatpush1.msra.mxu0 0.0
    %1621 = vmatprep.subr.mxu0 0.0
    %1622 = vmatpush1.msra.mxu0 0.0
    %1623 = vmatprep.subr.mxu0 0.0
    %1624 = vmatpush1.msra.mxu0 0.0
    %1625 = vmatprep.subr.mxu0 0.0
    %1626 = vmatpush1.msra.mxu0 0.0
    %1627 = vmatprep.subr.mxu0 0.0
    %1628 = vmatpush1.msra.mxu0 0.0
    %1629 = vmatprep.subr.mxu0 0.0
    %1630 = vmatpush1.msra.mxu0 0.0
    %1631 = vmatprep.subr.mxu0 0.0
    %1632 = vmatpush1.msra.mxu0 0.0
    %1633 = vmatprep.subr.mxu0 0.0
    %1634 = vmatpush1.msra.mxu0 0.0
    %1635 = vmatprep.subr.mxu0 0.0
    %1636 = vmatpush1.msra.mxu0 0.0
    %1637 = vmatprep.subr.mxu0 0.0
    %1638 = vmatpush1.msra.mxu0 0.0
    %1639 = vmatprep.subr.mxu0 0.0
    %1640 = vmatpush1.msra.mxu0 0.0
    %1641 = vmatprep.subr.mxu0 0.0
    %1642 = vmatpush1.msra.mxu0 0.0
    %1643 = vmatprep.subr.mxu0 0.0
    %1644 = vmatpush1.msra.mxu0 0.0
    %1645 = vmatprep.subr.mxu0 0.0
    %1646 = vmatpush1.msra.mxu0 0.0
    %1647 = vmatprep.subr.mxu0 0.0
    %1648 = vmatpush1.msra.mxu0 0.0
    %1649 = vmatprep.subr.mxu0 0.0
    %1650 = vmatpush1.msra.mxu0 %v1526
    %1651 = vmatprep.subr.mxu0 0.0
    %1652 = vmatpush2.msra.mxu0 0.0
    %1653 = vmatprep.subr.mxu0 0.0
    %1654 = vmatpush2.msra.mxu0 0.0
    %1655 = vmatprep.subr.mxu0 0.0
    %1656 = vmatpush2.msra.mxu0 0.0
    %1657 = vmatprep.subr.mxu0 0.0
    %1658 = vmatpush2.msra.mxu0 0.0
    %1659 = vmatprep.subr.mxu0 0.0
    %1660 = vmatpush2.msra.mxu0 0.0
    %1661 = vmatprep.subr.mxu0 0.0
    %1662 = vmatpush2.msra.mxu0 0.0
    %1663 = vmatprep.subr.mxu0 0.0
    %1664 = vmatpush2.msra.mxu0 0.0
    %1665 = vmatprep.subr.mxu0 0.0
    %1666 = vmatpush2.msra.mxu0 0.0
    %1667 = vmatprep.subr.mxu0 0.0
    %1668 = vmatpush2.msra.mxu0 0.0
    %1669 = vmatprep.subr.mxu0 0.0
    %1670 = vmatpush2.msra.mxu0 0.0
    %1671 = vmatprep.subr.mxu0 0.0
    %1672 = vmatpush2.msra.mxu0 0.0
    %1673 = vmatprep.subr.mxu0 0.0
    %1674 = vmatpush2.msra.mxu0 0.0
    %1675 = vmatprep.subr.mxu0 0.0
    %1676 = vmatpush2.msra.mxu0 0.0
    %1677 = vmatprep.subr.mxu0 0.0
    %1678 = vmatpush2.msra.mxu0 0.0
    %1679 = vmatprep.subr.mxu0 0.0
    %1680 = vmatpush2.msra.mxu0 0.0
    %1681 = vmatprep.subr.mxu0 0.0
    %1682 = vmatpush2.msra.mxu0 0.0
    %1683 = vmatprep.mubr.f32.mxu0 0.0
    %1684 = vmatmul.mubr.f32.gmra.mxu0 %v1617
    %v1685 = vpop.f32.mrf.mxu0
    %v1686 = vadd.f32 0.0, %v1685
    %v1687 = vpop.f32.mrf.mxu0
    %1688 = vdwg.mxu0
    %v1689 = vld [vmem:[%s1 + $0x258] sm:$0xff]
    %v1690 = vld [vmem:[%s1 + $0x260] sm:$0xff]
    %v1691 = vld [vmem:[%s1 + $0x268] sm:$0xff]
    %v1692 = vld [vmem:[%s1 + $0x270] sm:$0xff]
    %v1693 = vld [vmem:[%s1 + $0x278] sm:$0xff]
    %v1694 = vld [vmem:[%s1 + $0x280] sm:$0xff]
    %v1695 = vld [vmem:[%s1 + $0x288] sm:$0xff]
    %v1696 = vld [vmem:[%s1 + $0x290] sm:$0xff]
    %v1697 = vld [vmem:[%s1 + $0x298] sm:$0x1]
    %v1698 = vlaneseq
    %v1699 = vshrl.u32 %v1698, 7
    %v1700 = vsub.s32 0, %v1699
    %v1701 = vrot.slane %v1697, %v1700
    %1702 = vmatprep.subr.mxu0 0.0
    %1703 = vmatpush1.msra.mxu0 0.0
    %1704 = vmatprep.subr.mxu0 0.0
    %1705 = vmatpush1.msra.mxu0 0.0
    %1706 = vmatprep.subr.mxu0 0.0
    %1707 = vmatpush1.msra.mxu0 0.0
    %1708 = vmatprep.subr.mxu0 0.0
    %1709 = vmatpush1.msra.mxu0 0.0
    %1710 = vmatprep.subr.mxu0 0.0
    %1711 = vmatpush1.msra.mxu0 0.0
    %1712 = vmatprep.subr.mxu0 0.0
    %1713 = vmatpush1.msra.mxu0 0.0
    %1714 = vmatprep.subr.mxu0 0.0
    %1715 = vmatpush1.msra.mxu0 0.0
    %1716 = vmatprep.subr.mxu0 0.0
    %1717 = vmatpush1.msra.mxu0 0.0
    %1718 = vmatprep.subr.mxu0 0.0
    %1719 = vmatpush1.msra.mxu0 0.0
    %1720 = vmatprep.subr.mxu0 0.0
    %1721 = vmatpush1.msra.mxu0 0.0
    %1722 = vmatprep.subr.mxu0 0.0
    %1723 = vmatpush1.msra.mxu0 0.0
    %1724 = vmatprep.subr.mxu0 0.0
    %1725 = vmatpush1.msra.mxu0 0.0
    %1726 = vmatprep.subr.mxu0 0.0
    %1727 = vmatpush1.msra.mxu0 %v1696
    %1728 = vmatprep.subr.mxu0 0.0
    %1729 = vmatpush1.msra.mxu0 %v1695
    %1730 = vmatprep.subr.mxu0 0.0
    %1731 = vmatpush1.msra.mxu0 %v1694
    %1732 = vmatprep.subr.mxu0 0.0
    %1733 = vmatpush1.msra.mxu0 %v1693
    %1734 = vmatprep.subr.mxu0 0.0
    %1735 = vmatpush2.msra.mxu0 0.0
    %1736 = vmatprep.subr.mxu0 0.0
    %1737 = vmatpush2.msra.mxu0 0.0
    %1738 = vmatprep.subr.mxu0 0.0
    %1739 = vmatpush2.msra.mxu0 0.0
    %1740 = vmatprep.subr.mxu0 0.0
    %1741 = vmatpush2.msra.mxu0 0.0
    %1742 = vmatprep.subr.mxu0 0.0
    %1743 = vmatpush2.msra.mxu0 0.0
    %1744 = vmatprep.subr.mxu0 0.0
    %1745 = vmatpush2.msra.mxu0 0.0
    %1746 = vmatprep.subr.mxu0 0.0
    %1747 = vmatpush2.msra.mxu0 0.0
    %1748 = vmatprep.subr.mxu0 0.0
    %1749 = vmatpush2.msra.mxu0 0.0
    %1750 = vmatprep.subr.mxu0 0.0
    %1751 = vmatpush2.msra.mxu0 0.0
    %1752 = vmatprep.subr.mxu0 0.0
    %1753 = vmatpush2.msra.mxu0 0.0
    %1754 = vmatprep.subr.mxu0 0.0
    %1755 = vmatpush2.msra.mxu0 0.0
    %1756 = vmatprep.subr.mxu0 0.0
    %1757 = vmatpush2.msra.mxu0 0.0
    %1758 = vmatprep.subr.mxu0 0.0
    %1759 = vmatpush2.msra.mxu0 0.0
    %1760 = vmatprep.subr.mxu0 0.0
    %1761 = vmatpush2.msra.mxu0 0.0
    %1762 = vmatprep.subr.mxu0 0.0
    %1763 = vmatpush2.msra.mxu0 0.0
    %1764 = vmatprep.subr.mxu0 0.0
    %1765 = vmatpush2.msra.mxu0 0.0
    %1766 = vmatprep.mubr.f32.mxu0 0.0
    %1767 = vmatmul.mubr.f32.gmra.mxu0 %v1299
    %v1768 = vpop.f32.mrf.mxu0
    %v1769 = vadd.f32 %v1701, %v1768
    %v1770 = vpop.f32.mrf.mxu0
    %1771 = vdwg.mxu0
    %v1772 = vld [vmem:[%s1 + $0x2a0] sm:$0xff]
    %v1773 = vld [vmem:[%s1 + $0x2a8] sm:$0xff]
    %v1774 = vld [vmem:[%s1 + $0x2b0] sm:$0xff]
    %v1775 = vld [vmem:[%s1 + $0x2b8] sm:$0xff]
    %v1776 = vld [vmem:[%s1 + $0x2c0] sm:$0x1]
    %v1777 = vlaneseq
    %v1778 = vshrl.u32 %v1777, 7
    %v1779 = vsub.s32 0, %v1778
    %v1780 = vrot.slane %v1776, %v1779
    %1781 = vmatprep.subr.mxu0 0.0
    %1782 = vmatpush1.msra.mxu0 0.0
    %1783 = vmatprep.subr.mxu0 0.0
    %1784 = vmatpush1.msra.mxu0 0.0
    %1785 = vmatprep.subr.mxu0 0.0
    %1786 = vmatpush1.msra.mxu0 0.0
    %1787 = vmatprep.subr.mxu0 0.0
    %1788 = vmatpush1.msra.mxu0 0.0
    %1789 = vmatprep.subr.mxu0 0.0
    %1790 = vmatpush1.msra.mxu0 0.0
    %1791 = vmatprep.subr.mxu0 0.0
    %1792 = vmatpush1.msra.mxu0 0.0
    %1793 = vmatprep.subr.mxu0 0.0
    %1794 = vmatpush1.msra.mxu0 0.0
    %1795 = vmatprep.subr.mxu0 0.0
    %1796 = vmatpush1.msra.mxu0 0.0
    %1797 = vmatprep.subr.mxu0 0.0
    %1798 = vmatpush1.msra.mxu0 0.0
    %1799 = vmatprep.subr.mxu0 0.0
    %1800 = vmatpush1.msra.mxu0 0.0
    %1801 = vmatprep.subr.mxu0 0.0
    %1802 = vmatpush1.msra.mxu0 0.0
    %1803 = vmatprep.subr.mxu0 0.0
    %1804 = vmatpush1.msra.mxu0 0.0
    %1805 = vmatprep.subr.mxu0 0.0
    %1806 = vmatpush1.msra.mxu0 %v1775
    %1807 = vmatprep.subr.mxu0 0.0
    %1808 = vmatpush1.msra.mxu0 %v1774
    %1809 = vmatprep.subr.mxu0 0.0
    %1810 = vmatpush1.msra.mxu0 %v1773
    %1811 = vmatprep.subr.mxu0 0.0
    %1812 = vmatpush1.msra.mxu0 %v1772
    %1813 = vmatprep.subr.mxu0 0.0
    %1814 = vmatpush2.msra.mxu0 0.0
    %1815 = vmatprep.subr.mxu0 0.0
    %1816 = vmatpush2.msra.mxu0 0.0
    %1817 = vmatprep.subr.mxu0 0.0
    %1818 = vmatpush2.msra.mxu0 0.0
    %1819 = vmatprep.subr.mxu0 0.0
    %1820 = vmatpush2.msra.mxu0 0.0
    %1821 = vmatprep.subr.mxu0 0.0
    %1822 = vmatpush2.msra.mxu0 0.0
    %1823 = vmatprep.subr.mxu0 0.0
    %1824 = vmatpush2.msra.mxu0 0.0
    %1825 = vmatprep.subr.mxu0 0.0
    %1826 = vmatpush2.msra.mxu0 0.0
    %1827 = vmatprep.subr.mxu0 0.0
    %1828 = vmatpush2.msra.mxu0 0.0
    %1829 = vmatprep.subr.mxu0 0.0
    %1830 = vmatpush2.msra.mxu0 0.0
    %1831 = vmatprep.subr.mxu0 0.0
    %1832 = vmatpush2.msra.mxu0 0.0
    %1833 = vmatprep.subr.mxu0 0.0
    %1834 = vmatpush2.msra.mxu0 0.0
    %1835 = vmatprep.subr.mxu0 0.0
    %1836 = vmatpush2.msra.mxu0 0.0
    %1837 = vmatprep.subr.mxu0 0.0
    %1838 = vmatpush2.msra.mxu0 0.0
    %1839 = vmatprep.subr.mxu0 0.0
    %1840 = vmatpush2.msra.mxu0 0.0
    %1841 = vmatprep.subr.mxu0 0.0
    %1842 = vmatpush2.msra.mxu0 0.0
    %1843 = vmatprep.subr.mxu0 0.0
    %1844 = vmatpush2.msra.mxu0 0.0
    %1845 = vmatprep.mubr.f32.mxu0 0.0
    %1846 = vmatmul.mubr.f32.gmra.mxu0 %v1299
    %v1847 = vpop.f32.mrf.mxu0
    %v1848 = vadd.f32 %v1780, %v1847
    %v1849 = vpop.f32.mrf.mxu0
    %1850 = vdwg.mxu0
    %v1851 = vld [vmem:[%s1 + $0x2c8] sm:$0xff]
    %v1852 = vld [vmem:[%s1 + $0x2d0] sm:$0xff]
    %v1853 = vld [vmem:[%s1 + $0x2d8] sm:$0xff]
    %v1854 = vld [vmem:[%s1 + $0x2e0] sm:$0xff]
    %v1855 = vld [vmem:[%s1 + $0x2e8] sm:$0x1]
    %v1856 = vlaneseq
    %v1857 = vshrl.u32 %v1856, 7
    %v1858 = vsub.s32 0, %v1857
    %v1859 = vrot.slane %v1855, %v1858
    %1860 = vmatprep.subr.mxu0 0.0
    %1861 = vmatpush1.msra.mxu0 0.0
    %1862 = vmatprep.subr.mxu0 0.0
    %1863 = vmatpush1.msra.mxu0 0.0
    %1864 = vmatprep.subr.mxu0 0.0
    %1865 = vmatpush1.msra.mxu0 0.0
    %1866 = vmatprep.subr.mxu0 0.0
    %1867 = vmatpush1.msra.mxu0 0.0
    %1868 = vmatprep.subr.mxu0 0.0
    %1869 = vmatpush1.msra.mxu0 0.0
    %1870 = vmatprep.subr.mxu0 0.0
    %1871 = vmatpush1.msra.mxu0 0.0
    %1872 = vmatprep.subr.mxu0 0.0
    %1873 = vmatpush1.msra.mxu0 0.0
    %1874 = vmatprep.subr.mxu0 0.0
    %1875 = vmatpush1.msra.mxu0 0.0
    %1876 = vmatprep.subr.mxu0 0.0
    %1877 = vmatpush1.msra.mxu0 0.0
    %1878 = vmatprep.subr.mxu0 0.0
    %1879 = vmatpush1.msra.mxu0 0.0
    %1880 = vmatprep.subr.mxu0 0.0
    %1881 = vmatpush1.msra.mxu0 0.0
    %1882 = vmatprep.subr.mxu0 0.0
    %1883 = vmatpush1.msra.mxu0 0.0
    %1884 = vmatprep.subr.mxu0 0.0
    %1885 = vmatpush1.msra.mxu0 %v1854
    %1886 = vmatprep.subr.mxu0 0.0
    %1887 = vmatpush1.msra.mxu0 %v1853
    %1888 = vmatprep.subr.mxu0 0.0
    %1889 = vmatpush1.msra.mxu0 %v1852
    %1890 = vmatprep.subr.mxu0 0.0
    %1891 = vmatpush1.msra.mxu0 %v1851
    %1892 = vmatprep.subr.mxu0 0.0
    %1893 = vmatpush2.msra.mxu0 0.0
    %1894 = vmatprep.subr.mxu0 0.0
    %1895 = vmatpush2.msra.mxu0 0.0
    %1896 = vmatprep.subr.mxu0 0.0
    %1897 = vmatpush2.msra.mxu0 0.0
    %1898 = vmatprep.subr.mxu0 0.0
    %1899 = vmatpush2.msra.mxu0 0.0
    %1900 = vmatprep.subr.mxu0 0.0
    %1901 = vmatpush2.msra.mxu0 0.0
    %1902 = vmatprep.subr.mxu0 0.0
    %1903 = vmatpush2.msra.mxu0 0.0
    %1904 = vmatprep.subr.mxu0 0.0
    %1905 = vmatpush2.msra.mxu0 0.0
    %1906 = vmatprep.subr.mxu0 0.0
    %1907 = vmatpush2.msra.mxu0 0.0
    %1908 = vmatprep.subr.mxu0 0.0
    %1909 = vmatpush2.msra.mxu0 0.0
    %1910 = vmatprep.subr.mxu0 0.0
    %1911 = vmatpush2.msra.mxu0 0.0
    %1912 = vmatprep.subr.mxu0 0.0
    %1913 = vmatpush2.msra.mxu0 0.0
    %1914 = vmatprep.subr.mxu0 0.0
    %1915 = vmatpush2.msra.mxu0 0.0
    %1916 = vmatprep.subr.mxu0 0.0
    %1917 = vmatpush2.msra.mxu0 0.0
    %1918 = vmatprep.subr.mxu0 0.0
    %1919 = vmatpush2.msra.mxu0 0.0
    %1920 = vmatprep.subr.mxu0 0.0
    %1921 = vmatpush2.msra.mxu0 0.0
    %1922 = vmatprep.subr.mxu0 0.0
    %1923 = vmatpush2.msra.mxu0 0.0
    %1924 = vmatprep.mubr.f32.mxu0 0.0
    %1925 = vmatmul.mubr.f32.gmra.mxu0 %v1299
    %v1926 = vpop.f32.mrf.mxu0
    %v1927 = vadd.f32 %v1859, %v1926
    %v1928 = vpop.f32.mrf.mxu0
    %1929 = vdwg.mxu0
    %v1931 = vsel %vm117, %v1769, 0
    %v1934 = vsel %vm117, %v1848, 0
    %1936 = vmatprep.subr.mxu0 0.0
    %1937 = vmatpush1.xpose.msra.mxu0 0.0
    %1938 = vmatprep.subr.mxu0 0.0
    %1939 = vmatpush1.xpose.msra.mxu0 0.0
    %1940 = vmatprep.subr.mxu0 0.0
    %1941 = vmatpush1.xpose.msra.mxu0 0.0
    %1942 = vmatprep.subr.mxu0 0.0
    %1943 = vmatpush1.xpose.msra.mxu0 0.0
    %1944 = vmatprep.subr.mxu0 0.0
    %1945 = vmatpush1.xpose.msra.mxu0 0.0
    %1946 = vmatprep.subr.mxu0 0.0
    %1947 = vmatpush1.xpose.msra.mxu0 0.0
    %1948 = vmatprep.subr.mxu0 0.0
    %1949 = vmatpush1.xpose.msra.mxu0 0.0
    %1950 = vmatprep.subr.mxu0 0.0
    %1951 = vmatpush1.xpose.msra.mxu0 0.0
    %1952 = vmatprep.subr.mxu0 0.0
    %1953 = vmatpush1.xpose.msra.mxu0 0.0
    %1954 = vmatprep.subr.mxu0 0.0
    %1955 = vmatpush1.xpose.msra.mxu0 0.0
    %1956 = vmatprep.subr.mxu0 0.0
    %1957 = vmatpush1.xpose.msra.mxu0 0.0
    %1958 = vmatprep.subr.mxu0 0.0
    %1959 = vmatpush1.xpose.msra.mxu0 0.0
    %1960 = vmatprep.subr.mxu0 0.0
    %1961 = vmatpush1.xpose.msra.mxu0 0.0
    %1962 = vmatprep.subr.mxu0 0.0
    %1963 = vmatpush1.xpose.msra.mxu0 0.0
    %1964 = vmatprep.subr.mxu0 0.0
    %1965 = vmatpush1.xpose.msra.mxu0 0.0
    %1966 = vmatprep.subr.mxu0 0.0
    %1967 = vmatpush1.xpose.msra.mxu0 %v1934
    %1968 = vmatprep.subr.mxu0 0.0
    %1969 = vmatpush2.xpose.msra.mxu0 0.0
    %1970 = vmatprep.subr.mxu0 0.0
    %1971 = vmatpush2.xpose.msra.mxu0 0.0
    %1972 = vmatprep.subr.mxu0 0.0
    %1973 = vmatpush2.xpose.msra.mxu0 0.0
    %1974 = vmatprep.subr.mxu0 0.0
    %1975 = vmatpush2.xpose.msra.mxu0 0.0
    %1976 = vmatprep.subr.mxu0 0.0
    %1977 = vmatpush2.xpose.msra.mxu0 0.0
    %1978 = vmatprep.subr.mxu0 0.0
    %1979 = vmatpush2.xpose.msra.mxu0 0.0
    %1980 = vmatprep.subr.mxu0 0.0
    %1981 = vmatpush2.xpose.msra.mxu0 0.0
    %1982 = vmatprep.subr.mxu0 0.0
    %1983 = vmatpush2.xpose.msra.mxu0 0.0
    %1984 = vmatprep.subr.mxu0 0.0
    %1985 = vmatpush2.xpose.msra.mxu0 0.0
    %1986 = vmatprep.subr.mxu0 0.0
    %1987 = vmatpush2.xpose.msra.mxu0 0.0
    %1988 = vmatprep.subr.mxu0 0.0
    %1989 = vmatpush2.xpose.msra.mxu0 0.0
    %1990 = vmatprep.subr.mxu0 0.0
    %1991 = vmatpush2.xpose.msra.mxu0 0.0
    %1992 = vmatprep.subr.mxu0 0.0
    %1993 = vmatpush2.xpose.msra.mxu0 0.0
    %1994 = vmatprep.subr.mxu0 0.0
    %1995 = vmatpush2.xpose.msra.mxu0 0.0
    %1996 = vmatprep.subr.mxu0 0.0
    %1997 = vmatpush2.xpose.msra.mxu0 0.0
    %1998 = vmatprep.subr.mxu0 0.0
    %1999 = vmatpush2.xpose.msra.mxu0 0.0
    %2000 = vmatprep.mubr.f32.mxu0 0.0
    %2001 = vmatmul.mubr.f32.gmra.mxu0 %v1931
    %v2002 = vpop.f32.mrf.mxu0
    %v2003 = vadd.f32 %v107, %v2002
    %v2004 = vpop.f32.mrf.mxu0
    %2005 = vdwg.mxu0
    %v2006 = vsel %vm13, %v2003, -inf
    %2007 = vmax.xlane.f32.xlu0 %v2006
    %v2008 = vpop.xlane.xlu0 %2007
    %v2009 = vsub.f32 %v2003, %v2008
    %v2010 = vmul.f32 %v2009, 1.442695
    %v2011 = vpow.pop %v2010
    %v2012 = vsel %vm13, %v2011, 0.0
    %2013 = vadd.xlane.f32.xlu0 %v2012
    %v2014 = vpop.xlane.xlu0 %2013
    %v2015 = vrcp.pop %v2014
    %v2016 = vmul.f32 %v2011, %v2015
    %v2018 = vsel %vm13, %v2016, 0
    %2020 = vmatprep.subr.mxu0 0.0
    %2021 = vmatpush1.msra.mxu0 0.0
    %2022 = vmatprep.subr.mxu0 0.0
    %2023 = vmatpush1.msra.mxu0 0.0
    %2024 = vmatprep.subr.mxu0 0.0
    %2025 = vmatpush1.msra.mxu0 0.0
    %2026 = vmatprep.subr.mxu0 0.0
    %2027 = vmatpush1.msra.mxu0 0.0
    %2028 = vmatprep.subr.mxu0 0.0
    %2029 = vmatpush1.msra.mxu0 0.0
    %2030 = vmatprep.subr.mxu0 0.0
    %2031 = vmatpush1.msra.mxu0 0.0
    %2032 = vmatprep.subr.mxu0 0.0
    %2033 = vmatpush1.msra.mxu0 0.0
    %2034 = vmatprep.subr.mxu0 0.0
    %2035 = vmatpush1.msra.mxu0 0.0
    %2036 = vmatprep.subr.mxu0 0.0
    %2037 = vmatpush1.msra.mxu0 0.0
    %2038 = vmatprep.subr.mxu0 0.0
    %2039 = vmatpush1.msra.mxu0 0.0
    %2040 = vmatprep.subr.mxu0 0.0
    %2041 = vmatpush1.msra.mxu0 0.0
    %2042 = vmatprep.subr.mxu0 0.0
    %2043 = vmatpush1.msra.mxu0 0.0
    %2044 = vmatprep.subr.mxu0 0.0
    %2045 = vmatpush1.msra.mxu0 0.0
    %2046 = vmatprep.subr.mxu0 0.0
    %2047 = vmatpush1.msra.mxu0 0.0
    %2048 = vmatprep.subr.mxu0 0.0
    %2049 = vmatpush1.msra.mxu0 0.0
    %2050 = vmatprep.subr.mxu0 0.0
    %2051 = vmatpush1.msra.mxu0 %v1927
    %2052 = vmatprep.subr.mxu0 0.0
    %2053 = vmatpush2.msra.mxu0 0.0
    %2054 = vmatprep.subr.mxu0 0.0
    %2055 = vmatpush2.msra.mxu0 0.0
    %2056 = vmatprep.subr.mxu0 0.0
    %2057 = vmatpush2.msra.mxu0 0.0
    %2058 = vmatprep.subr.mxu0 0.0
    %2059 = vmatpush2.msra.mxu0 0.0
    %2060 = vmatprep.subr.mxu0 0.0
    %2061 = vmatpush2.msra.mxu0 0.0
    %2062 = vmatprep.subr.mxu0 0.0
    %2063 = vmatpush2.msra.mxu0 0.0
    %2064 = vmatprep.subr.mxu0 0.0
    %2065 = vmatpush2.msra.mxu0 0.0
    %2066 = vmatprep.subr.mxu0 0.0
    %2067 = vmatpush2.msra.mxu0 0.0
    %2068 = vmatprep.subr.mxu0 0.0
    %2069 = vmatpush2.msra.mxu0 0.0
    %2070 = vmatprep.subr.mxu0 0.0
    %2071 = vmatpush2.msra.mxu0 0.0
    %2072 = vmatprep.subr.mxu0 0.0
    %2073 = vmatpush2.msra.mxu0 0.0
    %2074 = vmatprep.subr.mxu0 0.0
    %2075 = vmatpush2.msra.mxu0 0.0
    %2076 = vmatprep.subr.mxu0 0.0
    %2077 = vmatpush2.msra.mxu0 0.0
    %2078 = vmatprep.subr.mxu0 0.0
    %2079 = vmatpush2.msra.mxu0 0.0
    %2080 = vmatprep.subr.mxu0 0.0
    %2081 = vmatpush2.msra.mxu0 0.0
    %2082 = vmatprep.subr.mxu0 0.0
    %2083 = vmatpush2.msra.mxu0 0.0
    %2084 = vmatprep.mubr.f32.mxu0 0.0
    %2085 = vmatmul.mubr.f32.gmra.mxu0 %v2018
    %v2086 = vpop.f32.mrf.mxu0
    %v2087 = vadd.f32 0.0, %v2086
    %v2088 = vpop.f32.mrf.mxu0
    %2089 = vdwg.mxu0
    %v2090 = vld [vmem:[%s1 + $0x2f0] sm:$0xff]
    %v2091 = vld [vmem:[%s1 + $0x2f8] sm:$0xff]
    %v2092 = vld [vmem:[%s1 + $0x300] sm:$0xff]
    %v2093 = vld [vmem:[%s1 + $0x308] sm:$0xff]
    %v2095 = vsel %vm117, %v2087, 0
    %2097 = vmatprep.subr.mxu0 0.0
    %2098 = vmatpush1.msra.mxu0 0.0
    %2099 = vmatprep.subr.mxu0 0.0
    %2100 = vmatpush1.msra.mxu0 0.0
    %2101 = vmatprep.subr.mxu0 0.0
    %2102 = vmatpush1.msra.mxu0 0.0
    %2103 = vmatprep.subr.mxu0 0.0
    %2104 = vmatpush1.msra.mxu0 0.0
    %2105 = vmatprep.subr.mxu0 0.0
    %2106 = vmatpush1.msra.mxu0 0.0
    %2107 = vmatprep.subr.mxu0 0.0
    %2108 = vmatpush1.msra.mxu0 0.0
    %2109 = vmatprep.subr.mxu0 0.0
    %2110 = vmatpush1.msra.mxu0 0.0
    %2111 = vmatprep.subr.mxu0 0.0
    %2112 = vmatpush1.msra.mxu0 0.0
    %2113 = vmatprep.subr.mxu0 0.0
    %2114 = vmatpush1.msra.mxu0 0.0
    %2115 = vmatprep.subr.mxu0 0.0
    %2116 = vmatpush1.msra.mxu0 0.0
    %2117 = vmatprep.subr.mxu0 0.0
    %2118 = vmatpush1.msra.mxu0 0.0
    %2119 = vmatprep.subr.mxu0 0.0
    %2120 = vmatpush1.msra.mxu0 0.0
    %2121 = vmatprep.subr.mxu0 0.0
    %2122 = vmatpush1.msra.mxu0 %v2093
    %2123 = vmatprep.subr.mxu0 0.0
    %2124 = vmatpush1.msra.mxu0 %v2092
    %2125 = vmatprep.subr.mxu0 0.0
    %2126 = vmatpush1.msra.mxu0 %v2091
    %2127 = vmatprep.subr.mxu0 0.0
    %2128 = vmatpush1.msra.mxu0 %v2090
    %2129 = vmatprep.subr.mxu0 0.0
    %2130 = vmatpush2.msra.mxu0 0.0
    %2131 = vmatprep.subr.mxu0 0.0
    %2132 = vmatpush2.msra.mxu0 0.0
    %2133 = vmatprep.subr.mxu0 0.0
    %2134 = vmatpush2.msra.mxu0 0.0
    %2135 = vmatprep.subr.mxu0 0.0
    %2136 = vmatpush2.msra.mxu0 0.0
    %2137 = vmatprep.subr.mxu0 0.0
    %2138 = vmatpush2.msra.mxu0 0.0
    %2139 = vmatprep.subr.mxu0 0.0
    %2140 = vmatpush2.msra.mxu0 0.0
    %2141 = vmatprep.subr.mxu0 0.0
    %2142 = vmatpush2.msra.mxu0 0.0
    %2143 = vmatprep.subr.mxu0 0.0
    %2144 = vmatpush2.msra.mxu0 0.0
    %2145 = vmatprep.subr.mxu0 0.0
    %2146 = vmatpush2.msra.mxu0 0.0
    %2147 = vmatprep.subr.mxu0 0.0
    %2148 = vmatpush2.msra.mxu0 0.0
    %2149 = vmatprep.subr.mxu0 0.0
    %2150 = vmatpush2.msra.mxu0 0.0
    %2151 = vmatprep.subr.mxu0 0.0
    %2152 = vmatpush2.msra.mxu0 0.0
    %2153 = vmatprep.subr.mxu0 0.0
    %2154 = vmatpush2.msra.mxu0 0.0
    %2155 = vmatprep.subr.mxu0 0.0
    %2156 = vmatpush2.msra.mxu0 0.0
    %2157 = vmatprep.subr.mxu0 0.0
    %2158 = vmatpush2.msra.mxu0 0.0
    %2159 = vmatprep.subr.mxu0 0.0
    %2160 = vmatpush2.msra.mxu0 0.0
    %2161 = vmatprep.mubr.f32.mxu0 0.0
    %2162 = vmatmul.mubr.f32.gmra.mxu0 %v2095
    %v2163 = vpop.f32.mrf.mxu0
    %v2164 = vadd.f32 0.0, %v2163
    %v2165 = vpop.f32.mrf.mxu0
    %2166 = vdwg.mxu0
    %v2168 = vsel %vm117, %v1686, 0
    %2170 = vmatprep.subr.mxu0 0.0
    %2171 = vmatpush1.msra.mxu0 0.0
    %2172 = vmatprep.subr.mxu0 0.0
    %2173 = vmatpush1.msra.mxu0 0.0
    %2174 = vmatprep.subr.mxu0 0.0
    %2175 = vmatpush1.msra.mxu0 0.0
    %2176 = vmatprep.subr.mxu0 0.0
    %2177 = vmatpush1.msra.mxu0 0.0
    %2178 = vmatprep.subr.mxu0 0.0
    %2179 = vmatpush1.msra.mxu0 0.0
    %2180 = vmatprep.subr.mxu0 0.0
    %2181 = vmatpush1.msra.mxu0 0.0
    %2182 = vmatprep.subr.mxu0 0.0
    %2183 = vmatpush1.msra.mxu0 0.0
    %2184 = vmatprep.subr.mxu0 0.0
    %2185 = vmatpush1.msra.mxu0 0.0
    %2186 = vmatprep.subr.mxu0 0.0
    %2187 = vmatpush1.msra.mxu0 0.0
    %2188 = vmatprep.subr.mxu0 0.0
    %2189 = vmatpush1.msra.mxu0 0.0
    %2190 = vmatprep.subr.mxu0 0.0
    %2191 = vmatpush1.msra.mxu0 0.0
    %2192 = vmatprep.subr.mxu0 0.0
    %2193 = vmatpush1.msra.mxu0 0.0
    %2194 = vmatprep.subr.mxu0 0.0
    %2195 = vmatpush1.msra.mxu0 %v1692
    %2196 = vmatprep.subr.mxu0 0.0
    %2197 = vmatpush1.msra.mxu0 %v1691
    %2198 = vmatprep.subr.mxu0 0.0
    %2199 = vmatpush1.msra.mxu0 %v1690
    %2200 = vmatprep.subr.mxu0 0.0
    %2201 = vmatpush1.msra.mxu0 %v1689
    %2202 = vmatprep.subr.mxu0 0.0
    %2203 = vmatpush2.msra.mxu0 0.0
    %2204 = vmatprep.subr.mxu0 0.0
    %2205 = vmatpush2.msra.mxu0 0.0
    %2206 = vmatprep.subr.mxu0 0.0
    %2207 = vmatpush2.msra.mxu0 0.0
    %2208 = vmatprep.subr.mxu0 0.0
    %2209 = vmatpush2.msra.mxu0 0.0
    %2210 = vmatprep.subr.mxu0 0.0
    %2211 = vmatpush2.msra.mxu0 0.0
    %2212 = vmatprep.subr.mxu0 0.0
    %2213 = vmatpush2.msra.mxu0 0.0
    %2214 = vmatprep.subr.mxu0 0.0
    %2215 = vmatpush2.msra.mxu0 0.0
    %2216 = vmatprep.subr.mxu0 0.0
    %2217 = vmatpush2.msra.mxu0 0.0
    %2218 = vmatprep.subr.mxu0 0.0
    %2219 = vmatpush2.msra.mxu0 0.0
    %2220 = vmatprep.subr.mxu0 0.0
    %2221 = vmatpush2.msra.mxu0 0.0
    %2222 = vmatprep.subr.mxu0 0.0
    %2223 = vmatpush2.msra.mxu0 0.0
    %2224 = vmatprep.subr.mxu0 0.0
    %2225 = vmatpush2.msra.mxu0 0.0
    %2226 = vmatprep.subr.mxu0 0.0
    %2227 = vmatpush2.msra.mxu0 0.0
    %2228 = vmatprep.subr.mxu0 0.0
    %2229 = vmatpush2.msra.mxu0 0.0
    %2230 = vmatprep.subr.mxu0 0.0
    %2231 = vmatpush2.msra.mxu0 0.0
    %2232 = vmatprep.subr.mxu0 0.0
    %2233 = vmatpush2.msra.mxu0 0.0
    %2234 = vmatprep.mubr.f32.mxu0 0.0
    %2235 = vmatmul.mubr.f32.gmra.mxu0 %v2168
    %v2236 = vpop.f32.mrf.mxu0
    %v2237 = vadd.f32 %v2164, %v2236
    %v2238 = vpop.f32.mrf.mxu0
    %2239 = vdwg.mxu0
    %v2240 = vadd.f32 %v1288, %v2237
    %v2241 = vld [vmem:[%s1 + $0x310] sm:$0x1]
    %v2242 = vlaneseq
    %v2243 = vshrl.u32 %v2242, 7
    %v2244 = vsub.s32 0, %v2243
    %v2245 = vrot.slane %v2241, %v2244
    %v2246 = vadd.f32 %v2240, %v2245
    %v2247 = vsel %vm117, %v2246, 0.0
    %2248 = vadd.xlane.f32.xlu0 %v2247
    %v2249 = vpop.xlane.xlu0 %2248
    %v2250 = vmul.f32 %v2249, %v1070
    %v2251 = vsub.f32 %v2246, %v2250
    %v2252 = vmul.f32 %v2251, %v2251
    %v2253 = vsel %vm117, %v2252, 0.0
    %2254 = vadd.xlane.f32.xlu0 %v2253
    %v2255 = vpop.xlane.xlu0 %2254
    %v2256 = vmul.f32 %v2255, %v1070
    %v2257 = vadd.f32 %v2256, 1e-05
    %v2258 = vrsqrt.pop %v2257
    %v2259 = vmul.f32 %v2251, %v2258
    %v2260 = vld [vmem:[%s1 + $0x388] sm:$0x1]
    %v2261 = vlaneseq
    %v2262 = vshrl.u32 %v2261, 7
    %v2263 = vsub.s32 0, %v2262
    %v2264 = vrot.slane %v2260, %v2263
    %v2265 = vmul.f32 %v2259, %v2264
    %v2266 = vld [vmem:[%s1 + $0x390] sm:$0x1]
    %v2267 = vlaneseq
    %v2268 = vshrl.u32 %v2267, 7
    %v2269 = vsub.s32 0, %v2268
    %v2270 = vrot.slane %v2266, %v2269
    %v2271 = vadd.f32 %v2265, %v2270
    %v2272 = vld [vmem:[%s1 + $0x318] sm:$0xff]
    %v2273 = vld [vmem:[%s1 + $0x320] sm:$0xff]
    %v2274 = vld [vmem:[%s1 + $0x328] sm:$0xff]
    %v2275 = vld [vmem:[%s1 + $0x330] sm:$0xff]
    %v2276 = vld [vmem:[%s1 + $0x338] sm:$0x1]
    %v2277 = vlaneseq
    %v2278 = vshrl.u32 %v2277, 7
    %v2279 = vsub.s32 0, %v2278
    %v2280 = vrot.slane %v2276, %v2279
    %v2282 = vsel %vm117, %v2271, 0
    %2284 = vmatprep.subr.mxu0 0.0
    %2285 = vmatpush1.msra.mxu0 0.0
    %2286 = vmatprep.subr.mxu0 0.0
    %2287 = vmatpush1.msra.mxu0 0.0
    %2288 = vmatprep.subr.mxu0 0.0
    %2289 = vmatpush1.msra.mxu0 0.0
    %2290 = vmatprep.subr.mxu0 0.0
    %2291 = vmatpush1.msra.mxu0 0.0
    %2292 = vmatprep.subr.mxu0 0.0
    %2293 = vmatpush1.msra.mxu0 0.0
    %2294 = vmatprep.subr.mxu0 0.0
    %2295 = vmatpush1.msra.mxu0 0.0
    %2296 = vmatprep.subr.mxu0 0.0
    %2297 = vmatpush1.msra.mxu0 0.0
    %2298 = vmatprep.subr.mxu0 0.0
    %2299 = vmatpush1.msra.mxu0 0.0
    %2300 = vmatprep.subr.mxu0 0.0
    %2301 = vmatpush1.msra.mxu0 0.0
    %2302 = vmatprep.subr.mxu0 0.0
    %2303 = vmatpush1.msra.mxu0 0.0
    %2304 = vmatprep.subr.mxu0 0.0
    %2305 = vmatpush1.msra.mxu0 0.0
    %2306 = vmatprep.subr.mxu0 0.0
    %2307 = vmatpush1.msra.mxu0 0.0
    %2308 = vmatprep.subr.mxu0 0.0
    %2309 = vmatpush1.msra.mxu0 %v2275
    %2310 = vmatprep.subr.mxu0 0.0
    %2311 = vmatpush1.msra.mxu0 %v2274
    %2312 = vmatprep.subr.mxu0 0.0
    %2313 = vmatpush1.msra.mxu0 %v2273
    %2314 = vmatprep.subr.mxu0 0.0
    %2315 = vmatpush1.msra.mxu0 %v2272
    %2316 = vmatprep.subr.mxu0 0.0
    %2317 = vmatpush2.msra.mxu0 0.0
    %2318 = vmatprep.subr.mxu0 0.0
    %2319 = vmatpush2.msra.mxu0 0.0
    %2320 = vmatprep.subr.mxu0 0.0
    %2321 = vmatpush2.msra.mxu0 0.0
    %2322 = vmatprep.subr.mxu0 0.0
    %2323 = vmatpush2.msra.mxu0 0.0
    %2324 = vmatprep.subr.mxu0 0.0
    %2325 = vmatpush2.msra.mxu0 0.0
    %2326 = vmatprep.subr.mxu0 0.0
    %2327 = vmatpush2.msra.mxu0 0.0
    %2328 = vmatprep.subr.mxu0 0.0
    %2329 = vmatpush2.msra.mxu0 0.0
    %2330 = vmatprep.subr.mxu0 0.0
    %2331 = vmatpush2.msra.mxu0 0.0
    %2332 = vmatprep.subr.mxu0 0.0
    %2333 = vmatpush2.msra.mxu0 0.0
    %2334 = vmatprep.subr.mxu0 0.0
    %2335 = vmatpush2.msra.mxu0 0.0
    %2336 = vmatprep.subr.mxu0 0.0
    %2337 = vmatpush2.msra.mxu0 0.0
    %2338 = vmatprep.subr.mxu0 0.0
    %2339 = vmatpush2.msra.mxu0 0.0
    %2340 = vmatprep.subr.mxu0 0.0
    %2341 = vmatpush2.msra.mxu0 0.0
    %2342 = vmatprep.subr.mxu0 0.0
    %2343 = vmatpush2.msra.mxu0 0.0
    %2344 = vmatprep.subr.mxu0 0.0
    %2345 = vmatpush2.msra.mxu0 0.0
    %2346 = vmatprep.subr.mxu0 0.0
    %2347 = vmatpush2.msra.mxu0 0.0
    %2348 = vmatprep.mubr.f32.mxu0 0.0
    %2349 = vmatmul.mubr.f32.gmra.mxu0 %v2282
    %v2350 = vpop.f32.mrf.mxu0
    %v2351 = vadd.f32 %v2280, %v2350
    %v2352 = vpop.f32.mrf.mxu0
    %2353 = vdwg.mxu0
    %v2354 = vmax.f32 %v2351, 0.0
    %v2355 = vld [vmem:[%s1 + $0x340] sm:$0xff]
    %v2356 = vld [vmem:[%s1 + $0x348] sm:$0xff]
    %v2357 = vld [vmem:[%s1 + $0x350] sm:$0xff]
    %v2358 = vld [vmem:[%s1 + $0x358] sm:$0xff]
    %v2359 = vld [vmem:[%s1 + $0x360] sm:$0xff]
    %v2360 = vld [vmem:[%s1 + $0x368] sm:$0xff]
    %v2361 = vld [vmem:[%s1 + $0x370] sm:$0xff]
    %v2362 = vld [vmem:[%s1 + $0x378] sm:$0xff]
    %v2363 = vld [vmem:[%s1 + $0x380] sm:$0x1]
    %v2364 = vlaneseq
    %v2365 = vshrl.u32 %v2364, 7
    %v2366 = vsub.s32 0, %v2365
    %v2367 = vrot.slane %v2363, %v2366
    %v2369 = vsel %vm1189, %v2354, 0
    %2371 = vmatprep.subr.mxu0 0.0
    %2372 = vmatpush1.msra.mxu0 0.0
    %2373 = vmatprep.subr.mxu0 0.0
    %2374 = vmatpush1.msra.mxu0 0.0
    %2375 = vmatprep.subr.mxu0 0.0
    %2376 = vmatpush1.msra.mxu0 0.0
    %2377 = vmatprep.subr.mxu0 0.0
    %2378 = vmatpush1.msra.mxu0 0.0
    %2379 = vmatprep.subr.mxu0 0.0
    %2380 = vmatpush1.msra.mxu0 0.0
    %2381 = vmatprep.subr.mxu0 0.0
    %2382 = vmatpush1.msra.mxu0 0.0
    %2383 = vmatprep.subr.mxu0 0.0
    %2384 = vmatpush1.msra.mxu0 0.0
    %2385 = vmatprep.subr.mxu0 0.0
    %2386 = vmatpush1.msra.mxu0 0.0
    %2387 = vmatprep.subr.mxu0 0.0
    %2388 = vmatpush1.msra.mxu0 %v2362
    %2389 = vmatprep.subr.mxu0 0.0
    %2390 = vmatpush1.msra.mxu0 %v2361
    %2391 = vmatprep.subr.mxu0 0.0
    %2392 = vmatpush1.msra.mxu0 %v2360
    %2393 = vmatprep.subr.mxu0 0.0
    %2394 = vmatpush1.msra.mxu0 %v2359
    %2395 = vmatprep.subr.mxu0 0.0
    %2396 = vmatpush1.msra.mxu0 %v2358
    %2397 = vmatprep.subr.mxu0 0.0
    %2398 = vmatpush1.msra.mxu0 %v2357
    %2399 = vmatprep.subr.mxu0 0.0
    %2400 = vmatpush1.msra.mxu0 %v2356
    %2401 = vmatprep.subr.mxu0 0.0
    %2402 = vmatpush1.msra.mxu0 %v2355
    %2403 = vmatprep.subr.mxu0 0.0
    %2404 = vmatpush2.msra.mxu0 0.0
    %2405 = vmatprep.subr.mxu0 0.0
    %2406 = vmatpush2.msra.mxu0 0.0
    %2407 = vmatprep.subr.mxu0 0.0
    %2408 = vmatpush2.msra.mxu0 0.0
    %2409 = vmatprep.subr.mxu0 0.0
    %2410 = vmatpush2.msra.mxu0 0.0
    %2411 = vmatprep.subr.mxu0 0.0
    %2412 = vmatpush2.msra.mxu0 0.0
    %2413 = vmatprep.subr.mxu0 0.0
    %2414 = vmatpush2.msra.mxu0 0.0
    %2415 = vmatprep.subr.mxu0 0.0
    %2416 = vmatpush2.msra.mxu0 0.0
    %2417 = vmatprep.subr.mxu0 0.0
    %2418 = vmatpush2.msra.mxu0 0.0
    %2419 = vmatprep.subr.mxu0 0.0
    %2420 = vmatpush2.msra.mxu0 0.0
    %2421 = vmatprep.subr.mxu0 0.0
    %2422 = vmatpush2.msra.mxu0 0.0
    %2423 = vmatprep.subr.mxu0 0.0
    %2424 = vmatpush2.msra.mxu0 0.0
    %2425 = vmatprep.subr.mxu0 0.0
    %2426 = vmatpush2.msra.mxu0 0.0
    %2427 = vmatprep.subr.mxu0 0.0
    %2428 = vmatpush2.msra.mxu0 0.0
    %2429 = vmatprep.subr.mxu0 0.0
    %2430 = vmatpush2.msra.mxu0 0.0
    %2431 = vmatprep.subr.mxu0 0.0
    %2432 = vmatpush2.msra.mxu0 0.0
    %2433 = vmatprep.subr.mxu0 0.0
    %2434 = vmatpush2.msra.mxu0 0.0
    %2435 = vmatprep.mubr.f32.mxu0 0.0
    %2436 = vmatmul.mubr.f32.gmra.mxu0 %v2369
    %v2437 = vpop.f32.mrf.mxu0
    %v2438 = vadd.f32 %v2367, %v2437
    %v2439 = vpop.f32.mrf.mxu0
    %2440 = vdwg.mxu0
    %v2441 = vadd.f32 %v2271, %v2438
    %v2442 = vsel %vm117, %v2441, 0.0
    %2443 = vadd.xlane.f32.xlu0 %v2442
    %v2444 = vpop.xlane.xlu0 %2443
    %v2445 = vmul.f32 %v2444, %v1070
    %v2446 = vsub.f32 %v2441, %v2445
    %v2447 = vmul.f32 %v2446, %v2446
    %v2448 = vsel %vm117, %v2447, 0.0
    %2449 = vadd.xlane.f32.xlu0 %v2448
    %v2450 = vpop.xlane.xlu0 %2449
    %v2451 = vmul.f32 %v2450, %v1070
    %v2452 = vadd.f32 %v2451, 1e-05
    %v2453 = vrsqrt.pop %v2452
    %v2454 = vmul.f32 %v2446, %v2453
    %v2455 = vld [vmem:[%s1 + $0x398] sm:$0x1]
    %v2456 = vlaneseq
    %v2457 = vshrl.u32 %v2456, 7
    %v2458 = vsub.s32 0, %v2457
    %v2459 = vrot.slane %v2455, %v2458
    %v2460 = vmul.f32 %v2454, %v2459
    %v2461 = vld [vmem:[%s1 + $0x3a0] sm:$0x1]
    %v2462 = vlaneseq
    %v2463 = vshrl.u32 %v2462, 7
    %v2464 = vsub.s32 0, %v2463
    %v2465 = vrot.slane %v2461, %v2464
    %v2466 = vadd.f32 %v2460, %v2465
    %2467 = vst.msk [vmem:[#allocation2] sm:$0xff] %vm117, %v2466
    // Predicated region
    $region10: #{tpu_custom_call.1} parent=1 // pred_check
      _
    $region11: #{tpu_custom_call.1} parent=1 // pred_check_branch
      %2469 = sbr.rel (0) target = $region13
    $region12: #{tpu_custom_call.1} parent=1 // pred_region
      %s2471 = ssub.s32 128, 128
      %2472 = vsyncadd [#allocation3], %s2471
      %s2474 = sshll.u32 [#allocation2], 4
      %s2475 = int_to_ptr.vmem [resolvable:$true] %s2474
      %2477 = dma.vmem_to_hbm [thread:$0]  %s2475, 128, %s2, [#allocation3]
    $region13: #{tpu_custom_call.1} parent=1 // pred_fallthru
      _
    // Predicated region
    $region14: #{tpu_custom_call.1} parent=1 // pred_check
      _
    $region15: #{tpu_custom_call.1} parent=1 // pred_check_branch
      %2479 = sbr.rel (0) target = $region17
    $region16: #{tpu_custom_call.1} parent=1 // pred_region
      %2480 = dma.done [#allocation3], 128
    $region17: #{tpu_custom_call.1} parent=1 // pred_fallthru
      _
    %2481 = vsyncpa [#allocation3], 1

</llo_original>
